<compile_context>
chip_gen: v7x
topology: tpu7x:2x2x1
jax: 0.10.0
libtpu: 0.0.40
codegen_flags: <defaults>
</compile_context>

<pallas_src>
import functools
import math

import jax
import jax.numpy as jnp
from jax import lax
from jax.experimental import pallas as pl
from jax.experimental.pallas import tpu as pltpu


# ----------------------------------------------------------------------------
# Small in-kernel helpers (all lane-flat; no in-kernel reshapes / transposes)
# ----------------------------------------------------------------------------
def _softmax_last(x):
    m = jnp.max(x, axis=-1, keepdims=True)
    e = jnp.exp(x - m)
    return e / jnp.sum(e, axis=-1, keepdims=True)


def _expand_oc(x, od):
    # x: (..., OC) -> (..., OC*OD): broadcast each per-capsule scalar across
    # the OD lanes of its capsule block (lane-block broadcast; no reshape).
    oc = x.shape[-1]
    tgt = x.shape[:-1] + (od,)
    return jnp.concatenate(
        [jnp.broadcast_to(x[..., o:o + 1], tgt) for o in range(oc)], axis=-1
    )


def _reduce_oc(x, oc, od):
    # x: (..., OC*OD) -> (..., OC): sum the OD lanes of each capsule block.
    return jnp.concatenate(
        [jnp.sum(x[..., o * od:(o + 1) * od], axis=-1, keepdims=True)
         for o in range(oc)],
        axis=-1,
    )


def _squash_flat(s, oc, od, eps=1e-9):
    # s: (Bt, OC*OD); squash each length-OD capsule vector:
    #   v = s * n2 / (1 + n2) / sqrt(n2)
    # computed as rsqrt + reciprocal (both EUP slots) with an epsilon so a
    # zero capsule does not produce NaN/Inf.
    n2 = _reduce_oc(s * s, oc, od)                                # (Bt, OC)
    scale = n2 * lax.rsqrt(n2 + eps) * pl.reciprocal(1.0 + n2, approx=False)
    return s * _expand_oc(scale, od)                              # (Bt, OC*OD)


# ----------------------------------------------------------------------------
# Fused kernel: per-capsule prediction matmuls (MXU) + agreement routing.
# One batch tile per grid step; u_predict lives only in VMEM scratch.
# ----------------------------------------------------------------------------
def _caps_layer_kernel(caps_ref, w_ref, b_ref, v_ref, u_ref, *,
                       n_iterations, oc, od):
    # caps_ref: (Bt, IC, D_in)     input capsules for this batch tile
    # w_ref:    (IC, D_in, OC*OD)  weights (resident across the grid)
    # b_ref:    (IC, OC)           routing logits (resident)
    # v_ref:    (Bt, OC*OD)        lane-dense output slab
    # u_ref:    (IC, Bt, OC*OD)    VMEM scratch holding u_predict
    ic, bt, _ = u_ref.shape

    # ---- 1. u_predict: one (Bt, D_in) @ (D_in, OC*OD) MXU matmul per input
    #         capsule, written straight into VMEM scratch (never to HBM).
    #         IC is small here, so a static unroll is fine.
    for i in range(ic):
        u_ref[i] = jnp.dot(
            caps_ref[:, i, :], w_ref[i], preferred_element_type=jnp.float32
        )
    u = u_ref[...]                                        # (IC, Bt, OC*OD)

    b0 = b_ref[...]                                       # (IC, OC)

    # ---- 2. routing, iteration 0: coupling from b0 is batch invariant ----
    c0 = _softmax_last(b0)                                # (IC, OC)
    c0_e = _expand_oc(c0, od)[:, None, :]                 # (IC, 1, OC*OD)
    s = jnp.sum(c0_e * u, axis=0)                         # (Bt, OC*OD)
    v = _squash_flat(s, oc, od)

    # ---- 3. dynamic routing iterations (short fixed count -> unrolled) ----
    bb = jnp.broadcast_to(b0[:, None, :], (ic, bt, oc))   # logits per (i, b)
    for _ in range(n_iterations):
        # agreement <u_ib, v_b> per output capsule  -> (IC, Bt, OC)
        bb = bb + _reduce_oc(u * v[None, :, :], oc, od)
        c = _softmax_last(bb)                             # (IC, Bt, OC)
        s = jnp.sum(_expand_oc(c, od) * u, axis=0)        # (Bt, OC*OD)
        v = _squash_flat(s, oc, od)

    v_ref[...] = v                                        # lane-dense store


# ----------------------------------------------------------------------------
# Wrapper (CapsLayer.forward equivalent)
# ----------------------------------------------------------------------------
def caps_layer_forward(caps_output, weights, b_logits, n_iterations=3,
                       batch_tile=None):
    B, IC, D_in = caps_output.shape
    OC = b_logits.shape[1]
    OCOD = weights.shape[2]
    OD = OCOD // OC

    bt = B if batch_tile is None else batch_tile
    assert B % bt == 0, "batch must be divisible by the batch tile"
    assert bt == B or bt % 8 == 0, "partial batch tiles must be 8-aligned"

    kernel = functools.partial(
        _caps_layer_kernel, n_iterations=n_iterations, oc=OC, od=OD
    )

    v_flat = pl.pallas_call(
        kernel,
        out_shape=jax.ShapeDtypeStruct((B, OCOD), jnp.float32),
        grid=(B // bt,),
        in_specs=[
            # batch tile of the input capsules (original layout, no wrapper
            # transpose of the input)
            pl.BlockSpec((bt, IC, D_in), lambda b: (b, 0, 0)),
            # weights + routing logits: constant index_map -> VMEM-resident
            pl.BlockSpec((IC, D_in, OCOD), lambda b: (0, 0, 0)),
            pl.BlockSpec((IC, OC), lambda b: (0, 0)),
        ],
        out_specs=pl.BlockSpec((bt, OCOD), lambda b: (b, 0)),
        scratch_shapes=[pltpu.VMEM((IC, bt, OCOD), jnp.float32)],
        compiler_params=pltpu.CompilerParams(
            dimension_semantics=("parallel",),      # batch tiles independent
            vmem_limit_bytes=32 * 1024 * 1024,      # safe on v5e/v6e/v7x
        ),
    )(caps_output, weights, b_logits)

    # u_predict.view(B, input_caps, output_caps, output_dim) only ever exists
    # implicitly inside the kernel; the public output view is a free reshape.
    return v_flat.reshape(B, OC, OD)


# ----------------------------------------------------------------------------
# Pure-JAX reference (mirrors the PyTorch forward + AgreementRouting)
# ----------------------------------------------------------------------------
def caps_layer_reference(caps_output, weights, b_logits, n_iterations=3):
    B, IC, D_in = caps_output.shape
    OC = b_logits.shape[1]
    OD = weights.shape[2] // OC

    u = jnp.einsum("bid,idm->bim", caps_output, weights).reshape(B, IC, OC, OD)

    def squash(s):
        n2 = jnp.sum(s * s, axis=-1, keepdims=True)
        return s * (n2 / (1.0 + n2)) * lax.rsqrt(n2 + 1e-9)

    c = jax.nn.softmax(b_logits, axis=-1)                 # (IC, OC)
    s = jnp.sum(c[None, :, :, None] * u, axis=1)          # (B, OC, OD)
    v = squash(s)

    b_batch = jnp.broadcast_to(b_logits, (B, IC, OC))
    for _ in range(n_iterations):
        b_batch = b_batch + jnp.sum(u * v[:, None, :, :], axis=-1)
        c = jax.nn.softmax(b_batch, axis=-1)
        s = jnp.sum(c[..., None] * u, axis=1)
        v = squash(s)
    return v


if __name__ == "__main__":
    # Small, module-consistent shapes.
    B = 2            # batch
    INPUT_CAPS = 16
    INPUT_DIM = 8
    OUTPUT_CAPS = 4
    OUTPUT_DIM = 16
    N_ITER = 3

    key = jax.random.PRNGKey(0)
    k_x, k_w = jax.random.split(key)

    # Deterministic parameter init, matching reset_parameters():
    #   weights ~ U(-1/sqrt(input_caps), 1/sqrt(input_caps))
    stdv = 1.0 / math.sqrt(INPUT_CAPS)
    weights = jax.random.uniform(
        k_w,
        (INPUT_CAPS, INPUT_DIM, OUTPUT_CAPS * OUTPUT_DIM),
        dtype=jnp.float32,
        minval=-stdv,
        maxval=stdv,
    )
    # AgreementRouting logits b, initialized to zeros.
    b_logits = jnp.zeros((INPUT_CAPS, OUTPUT_CAPS), dtype=jnp.float32)

    caps_output = jax.random.normal(
        k_x, (B, INPUT_CAPS, INPUT_DIM), dtype=jnp.float32
    )

    v = caps_layer_forward(caps_output, weights, b_logits, n_iterations=N_ITER)
    v = jax.block_until_ready(v)

    v_ref = caps_layer_reference(
        caps_output, weights, b_logits, n_iterations=N_ITER
    )
    assert v.shape == (B, OUTPUT_CAPS, OUTPUT_DIM)
    assert jnp.allclose(v, v_ref, atol=1e-5, rtol=1e-4), "mismatch vs reference"

    print("KERNEL_OK")
</pallas_src>

<mosaic_0001>
module attributes {stable_mosaic.version = 11 : i64} {
  func.func @_caps_layer_kernel(%arg0: i32, %arg1: memref<2x16x8xf32, #tpu.memory_space<vmem>>, %arg2: memref<16x8x64xf32, #tpu.memory_space<vmem>>, %arg3: memref<16x4xf32, #tpu.memory_space<vmem>>, %arg4: memref<2x64xf32, #tpu.memory_space<vmem>>, %arg5: memref<16x2x64xf32, #tpu.memory_space<vmem>>) attributes {dimension_semantics = [#tpu.dimension_semantics<parallel>], iteration_bounds = array<i64: 1>, scalar_prefetch = 0 : i64, scratch_operands = 1 : i64, tpu.core_type = #tpu.core_type<tc>, window_params = [{transform_indices = @transform_0, window_bounds = array<i64: 2, 16, 8>}, {pipeline_mode = #tpu.pipeline_mode<synchronous>, transform_indices = @transform_1, window_bounds = array<i64: 16, 8, 64>}, {pipeline_mode = #tpu.pipeline_mode<synchronous>, transform_indices = @transform_2, window_bounds = array<i64: 16, 4>}, {transform_indices = @transform_3, window_bounds = array<i64: 2, 64>}]} {
    %c0 = arith.constant 0 : index
    %c0_0 = arith.constant 0 : index
    %c0_1 = arith.constant 0 : index
    %0 = vector.load %arg1[%c0, %c0_0, %c0_1] : memref<2x16x8xf32, #tpu.memory_space<vmem>>, vector<2x1x8xf32>
    %1 = vector.shape_cast %0 : vector<2x1x8xf32> to vector<2x8xf32>
    %c0_2 = arith.constant 0 : index
    %c0_3 = arith.constant 0 : index
    %c0_4 = arith.constant 0 : index
    %2 = vector.load %arg2[%c0_2, %c0_3, %c0_4] : memref<16x8x64xf32, #tpu.memory_space<vmem>>, vector<1x8x64xf32>
    %3 = vector.shape_cast %2 : vector<1x8x64xf32> to vector<8x64xf32>
    %cst = arith.constant dense<0.000000e+00> : vector<2x64xf32>
    %4 = tpu.matmul %1, %3, %cst {dimension_numbers = #tpu.dot_dimension_numbers<[1], [0], [0], [1], [0, 0, 1, 1], [], []>} : vector<2x8xf32>, vector<8x64xf32>, vector<2x64xf32> -> vector<2x64xf32>
    %c0_5 = arith.constant 0 : index
    %c0_6 = arith.constant 0 : index
    %c0_7 = arith.constant 0 : index
    %5 = vector.load %arg5[%c0_5, %c0_6, %c0_7] : memref<16x2x64xf32, #tpu.memory_space<vmem>>, vector<1x2x64xf32>
    %6 = vector.shape_cast %5 : vector<1x2x64xf32> to vector<2x64xf32>
    %7 = vector.shape_cast %4 : vector<2x64xf32> to vector<1x2x64xf32>
    tpu.vector_store %arg5[%c0_5, %c0_6, %c0_7], %7 {strides = array<i32>} : memref<16x2x64xf32, #tpu.memory_space<vmem>>, vector<1x2x64xf32>,
    %c0_8 = arith.constant 0 : index
    %c1 = arith.constant 1 : index
    %c0_9 = arith.constant 0 : index
    %8 = vector.load %arg1[%c0_8, %c1, %c0_9] : memref<2x16x8xf32, #tpu.memory_space<vmem>>, vector<2x1x8xf32>
    %9 = vector.shape_cast %8 : vector<2x1x8xf32> to vector<2x8xf32>
    %c1_10 = arith.constant 1 : index
    %c0_11 = arith.constant 0 : index
    %c0_12 = arith.constant 0 : index
    %10 = vector.load %arg2[%c1_10, %c0_11, %c0_12] : memref<16x8x64xf32, #tpu.memory_space<vmem>>, vector<1x8x64xf32>
    %11 = vector.shape_cast %10 : vector<1x8x64xf32> to vector<8x64xf32>
    %cst_13 = arith.constant dense<0.000000e+00> : vector<2x64xf32>
    %12 = tpu.matmul %9, %11, %cst_13 {dimension_numbers = #tpu.dot_dimension_numbers<[1], [0], [0], [1], [0, 0, 1, 1], [], []>} : vector<2x8xf32>, vector<8x64xf32>, vector<2x64xf32> -> vector<2x64xf32>
    %c1_14 = arith.constant 1 : index
    %c0_15 = arith.constant 0 : index
    %c0_16 = arith.constant 0 : index
    %13 = vector.load %arg5[%c1_14, %c0_15, %c0_16] : memref<16x2x64xf32, #tpu.memory_space<vmem>>, vector<1x2x64xf32>
    %14 = vector.shape_cast %13 : vector<1x2x64xf32> to vector<2x64xf32>
    %15 = vector.shape_cast %12 : vector<2x64xf32> to vector<1x2x64xf32>
    tpu.vector_store %arg5[%c1_14, %c0_15, %c0_16], %15 {strides = array<i32>} : memref<16x2x64xf32, #tpu.memory_space<vmem>>, vector<1x2x64xf32>,
    %c0_17 = arith.constant 0 : index
    %c2 = arith.constant 2 : index
    %c0_18 = arith.constant 0 : index
    %16 = vector.load %arg1[%c0_17, %c2, %c0_18] : memref<2x16x8xf32, #tpu.memory_space<vmem>>, vector<2x1x8xf32>
    %17 = vector.shape_cast %16 : vector<2x1x8xf32> to vector<2x8xf32>
    %c2_19 = arith.constant 2 : index
    %c0_20 = arith.constant 0 : index
    %c0_21 = arith.constant 0 : index
    %18 = vector.load %arg2[%c2_19, %c0_20, %c0_21] : memref<16x8x64xf32, #tpu.memory_space<vmem>>, vector<1x8x64xf32>
    %19 = vector.shape_cast %18 : vector<1x8x64xf32> to vector<8x64xf32>
    %cst_22 = arith.constant dense<0.000000e+00> : vector<2x64xf32>
    %20 = tpu.matmul %17, %19, %cst_22 {dimension_numbers = #tpu.dot_dimension_numbers<[1], [0], [0], [1], [0, 0, 1, 1], [], []>} : vector<2x8xf32>, vector<8x64xf32>, vector<2x64xf32> -> vector<2x64xf32>
    %c2_23 = arith.constant 2 : index
    %c0_24 = arith.constant 0 : index
    %c0_25 = arith.constant 0 : index
    %21 = vector.load %arg5[%c2_23, %c0_24, %c0_25] : memref<16x2x64xf32, #tpu.memory_space<vmem>>, vector<1x2x64xf32>
    %22 = vector.shape_cast %21 : vector<1x2x64xf32> to vector<2x64xf32>
    %23 = vector.shape_cast %20 : vector<2x64xf32> to vector<1x2x64xf32>
    tpu.vector_store %arg5[%c2_23, %c0_24, %c0_25], %23 {strides = array<i32>} : memref<16x2x64xf32, #tpu.memory_space<vmem>>, vector<1x2x64xf32>,
    %c0_26 = arith.constant 0 : index
    %c3 = arith.constant 3 : index
    %c0_27 = arith.constant 0 : index
    %24 = vector.load %arg1[%c0_26, %c3, %c0_27] : memref<2x16x8xf32, #tpu.memory_space<vmem>>, vector<2x1x8xf32>
    %25 = vector.shape_cast %24 : vector<2x1x8xf32> to vector<2x8xf32>
    %c3_28 = arith.constant 3 : index
    %c0_29 = arith.constant 0 : index
    %c0_30 = arith.constant 0 : index
    %26 = vector.load %arg2[%c3_28, %c0_29, %c0_30] : memref<16x8x64xf32, #tpu.memory_space<vmem>>, vector<1x8x64xf32>
    %27 = vector.shape_cast %26 : vector<1x8x64xf32> to vector<8x64xf32>
    %cst_31 = arith.constant dense<0.000000e+00> : vector<2x64xf32>
    %28 = tpu.matmul %25, %27, %cst_31 {dimension_numbers = #tpu.dot_dimension_numbers<[1], [0], [0], [1], [0, 0, 1, 1], [], []>} : vector<2x8xf32>, vector<8x64xf32>, vector<2x64xf32> -> vector<2x64xf32>
    %c3_32 = arith.constant 3 : index
    %c0_33 = arith.constant 0 : index
    %c0_34 = arith.constant 0 : index
    %29 = vector.load %arg5[%c3_32, %c0_33, %c0_34] : memref<16x2x64xf32, #tpu.memory_space<vmem>>, vector<1x2x64xf32>
    %30 = vector.shape_cast %29 : vector<1x2x64xf32> to vector<2x64xf32>
    %31 = vector.shape_cast %28 : vector<2x64xf32> to vector<1x2x64xf32>
    tpu.vector_store %arg5[%c3_32, %c0_33, %c0_34], %31 {strides = array<i32>} : memref<16x2x64xf32, #tpu.memory_space<vmem>>, vector<1x2x64xf32>,
    %c0_35 = arith.constant 0 : index
    %c4 = arith.constant 4 : index
    %c0_36 = arith.constant 0 : index
    %32 = vector.load %arg1[%c0_35, %c4, %c0_36] : memref<2x16x8xf32, #tpu.memory_space<vmem>>, vector<2x1x8xf32>
    %33 = vector.shape_cast %32 : vector<2x1x8xf32> to vector<2x8xf32>
    %c4_37 = arith.constant 4 : index
    %c0_38 = arith.constant 0 : index
    %c0_39 = arith.constant 0 : index
    %34 = vector.load %arg2[%c4_37, %c0_38, %c0_39] : memref<16x8x64xf32, #tpu.memory_space<vmem>>, vector<1x8x64xf32>
    %35 = vector.shape_cast %34 : vector<1x8x64xf32> to vector<8x64xf32>
    %cst_40 = arith.constant dense<0.000000e+00> : vector<2x64xf32>
    %36 = tpu.matmul %33, %35, %cst_40 {dimension_numbers = #tpu.dot_dimension_numbers<[1], [0], [0], [1], [0, 0, 1, 1], [], []>} : vector<2x8xf32>, vector<8x64xf32>, vector<2x64xf32> -> vector<2x64xf32>
    %c4_41 = arith.constant 4 : index
    %c0_42 = arith.constant 0 : index
    %c0_43 = arith.constant 0 : index
    %37 = vector.load %arg5[%c4_41, %c0_42, %c0_43] : memref<16x2x64xf32, #tpu.memory_space<vmem>>, vector<1x2x64xf32>
    %38 = vector.shape_cast %37 : vector<1x2x64xf32> to vector<2x64xf32>
    %39 = vector.shape_cast %36 : vector<2x64xf32> to vector<1x2x64xf32>
    tpu.vector_store %arg5[%c4_41, %c0_42, %c0_43], %39 {strides = array<i32>} : memref<16x2x64xf32, #tpu.memory_space<vmem>>, vector<1x2x64xf32>,
    %c0_44 = arith.constant 0 : index
    %c5 = arith.constant 5 : index
    %c0_45 = arith.constant 0 : index
    %40 = vector.load %arg1[%c0_44, %c5, %c0_45] : memref<2x16x8xf32, #tpu.memory_space<vmem>>, vector<2x1x8xf32>
    %41 = vector.shape_cast %40 : vector<2x1x8xf32> to vector<2x8xf32>
    %c5_46 = arith.constant 5 : index
    %c0_47 = arith.constant 0 : index
    %c0_48 = arith.constant 0 : index
    %42 = vector.load %arg2[%c5_46, %c0_47, %c0_48] : memref<16x8x64xf32, #tpu.memory_space<vmem>>, vector<1x8x64xf32>
    %43 = vector.shape_cast %42 : vector<1x8x64xf32> to vector<8x64xf32>
    %cst_49 = arith.constant dense<0.000000e+00> : vector<2x64xf32>
    %44 = tpu.matmul %41, %43, %cst_49 {dimension_numbers = #tpu.dot_dimension_numbers<[1], [0], [0], [1], [0, 0, 1, 1], [], []>} : vector<2x8xf32>, vector<8x64xf32>, vector<2x64xf32> -> vector<2x64xf32>
    %c5_50 = arith.constant 5 : index
    %c0_51 = arith.constant 0 : index
    %c0_52 = arith.constant 0 : index
    %45 = vector.load %arg5[%c5_50, %c0_51, %c0_52] : memref<16x2x64xf32, #tpu.memory_space<vmem>>, vector<1x2x64xf32>
    %46 = vector.shape_cast %45 : vector<1x2x64xf32> to vector<2x64xf32>
    %47 = vector.shape_cast %44 : vector<2x64xf32> to vector<1x2x64xf32>
    tpu.vector_store %arg5[%c5_50, %c0_51, %c0_52], %47 {strides = array<i32>} : memref<16x2x64xf32, #tpu.memory_space<vmem>>, vector<1x2x64xf32>,
    %c0_53 = arith.constant 0 : index
    %c6 = arith.constant 6 : index
    %c0_54 = arith.constant 0 : index
    %48 = vector.load %arg1[%c0_53, %c6, %c0_54] : memref<2x16x8xf32, #tpu.memory_space<vmem>>, vector<2x1x8xf32>
    %49 = vector.shape_cast %48 : vector<2x1x8xf32> to vector<2x8xf32>
    %c6_55 = arith.constant 6 : index
    %c0_56 = arith.constant 0 : index
    %c0_57 = arith.constant 0 : index
    %50 = vector.load %arg2[%c6_55, %c0_56, %c0_57] : memref<16x8x64xf32, #tpu.memory_space<vmem>>, vector<1x8x64xf32>
    %51 = vector.shape_cast %50 : vector<1x8x64xf32> to vector<8x64xf32>
    %cst_58 = arith.constant dense<0.000000e+00> : vector<2x64xf32>
    %52 = tpu.matmul %49, %51, %cst_58 {dimension_numbers = #tpu.dot_dimension_numbers<[1], [0], [0], [1], [0, 0, 1, 1], [], []>} : vector<2x8xf32>, vector<8x64xf32>, vector<2x64xf32> -> vector<2x64xf32>
    %c6_59 = arith.constant 6 : index
    %c0_60 = arith.constant 0 : index
    %c0_61 = arith.constant 0 : index
    %53 = vector.load %arg5[%c6_59, %c0_60, %c0_61] : memref<16x2x64xf32, #tpu.memory_space<vmem>>, vector<1x2x64xf32>
    %54 = vector.shape_cast %53 : vector<1x2x64xf32> to vector<2x64xf32>
    %55 = vector.shape_cast %52 : vector<2x64xf32> to vector<1x2x64xf32>
    tpu.vector_store %arg5[%c6_59, %c0_60, %c0_61], %55 {strides = array<i32>} : memref<16x2x64xf32, #tpu.memory_space<vmem>>, vector<1x2x64xf32>,
    %c0_62 = arith.constant 0 : index
    %c7 = arith.constant 7 : index
    %c0_63 = arith.constant 0 : index
    %56 = vector.load %arg1[%c0_62, %c7, %c0_63] : memref<2x16x8xf32, #tpu.memory_space<vmem>>, vector<2x1x8xf32>
    %57 = vector.shape_cast %56 : vector<2x1x8xf32> to vector<2x8xf32>
    %c7_64 = arith.constant 7 : index
    %c0_65 = arith.constant 0 : index
    %c0_66 = arith.constant 0 : index
    %58 = vector.load %arg2[%c7_64, %c0_65, %c0_66] : memref<16x8x64xf32, #tpu.memory_space<vmem>>, vector<1x8x64xf32>
    %59 = vector.shape_cast %58 : vector<1x8x64xf32> to vector<8x64xf32>
    %cst_67 = arith.constant dense<0.000000e+00> : vector<2x64xf32>
    %60 = tpu.matmul %57, %59, %cst_67 {dimension_numbers = #tpu.dot_dimension_numbers<[1], [0], [0], [1], [0, 0, 1, 1], [], []>} : vector<2x8xf32>, vector<8x64xf32>, vector<2x64xf32> -> vector<2x64xf32>
    %c7_68 = arith.constant 7 : index
    %c0_69 = arith.constant 0 : index
    %c0_70 = arith.constant 0 : index
    %61 = vector.load %arg5[%c7_68, %c0_69, %c0_70] : memref<16x2x64xf32, #tpu.memory_space<vmem>>, vector<1x2x64xf32>
    %62 = vector.shape_cast %61 : vector<1x2x64xf32> to vector<2x64xf32>
    %63 = vector.shape_cast %60 : vector<2x64xf32> to vector<1x2x64xf32>
    tpu.vector_store %arg5[%c7_68, %c0_69, %c0_70], %63 {strides = array<i32>} : memref<16x2x64xf32, #tpu.memory_space<vmem>>, vector<1x2x64xf32>,
    %c0_71 = arith.constant 0 : index
    %c8 = arith.constant 8 : index
    %c0_72 = arith.constant 0 : index
    %64 = vector.load %arg1[%c0_71, %c8, %c0_72] : memref<2x16x8xf32, #tpu.memory_space<vmem>>, vector<2x1x8xf32>
    %65 = vector.shape_cast %64 : vector<2x1x8xf32> to vector<2x8xf32>
    %c8_73 = arith.constant 8 : index
    %c0_74 = arith.constant 0 : index
    %c0_75 = arith.constant 0 : index
    %66 = vector.load %arg2[%c8_73, %c0_74, %c0_75] : memref<16x8x64xf32, #tpu.memory_space<vmem>>, vector<1x8x64xf32>
    %67 = vector.shape_cast %66 : vector<1x8x64xf32> to vector<8x64xf32>
    %cst_76 = arith.constant dense<0.000000e+00> : vector<2x64xf32>
    %68 = tpu.matmul %65, %67, %cst_76 {dimension_numbers = #tpu.dot_dimension_numbers<[1], [0], [0], [1], [0, 0, 1, 1], [], []>} : vector<2x8xf32>, vector<8x64xf32>, vector<2x64xf32> -> vector<2x64xf32>
    %c8_77 = arith.constant 8 : index
    %c0_78 = arith.constant 0 : index
    %c0_79 = arith.constant 0 : index
    %69 = vector.load %arg5[%c8_77, %c0_78, %c0_79] : memref<16x2x64xf32, #tpu.memory_space<vmem>>, vector<1x2x64xf32>
    %70 = vector.shape_cast %69 : vector<1x2x64xf32> to vector<2x64xf32>
    %71 = vector.shape_cast %68 : vector<2x64xf32> to vector<1x2x64xf32>
    tpu.vector_store %arg5[%c8_77, %c0_78, %c0_79], %71 {strides = array<i32>} : memref<16x2x64xf32, #tpu.memory_space<vmem>>, vector<1x2x64xf32>,
    %c0_80 = arith.constant 0 : index
    %c9 = arith.constant 9 : index
    %c0_81 = arith.constant 0 : index
    %72 = vector.load %arg1[%c0_80, %c9, %c0_81] : memref<2x16x8xf32, #tpu.memory_space<vmem>>, vector<2x1x8xf32>
    %73 = vector.shape_cast %72 : vector<2x1x8xf32> to vector<2x8xf32>
    %c9_82 = arith.constant 9 : index
    %c0_83 = arith.constant 0 : index
    %c0_84 = arith.constant 0 : index
    %74 = vector.load %arg2[%c9_82, %c0_83, %c0_84] : memref<16x8x64xf32, #tpu.memory_space<vmem>>, vector<1x8x64xf32>
    %75 = vector.shape_cast %74 : vector<1x8x64xf32> to vector<8x64xf32>
    %cst_85 = arith.constant dense<0.000000e+00> : vector<2x64xf32>
    %76 = tpu.matmul %73, %75, %cst_85 {dimension_numbers = #tpu.dot_dimension_numbers<[1], [0], [0], [1], [0, 0, 1, 1], [], []>} : vector<2x8xf32>, vector<8x64xf32>, vector<2x64xf32> -> vector<2x64xf32>
    %c9_86 = arith.constant 9 : index
    %c0_87 = arith.constant 0 : index
    %c0_88 = arith.constant 0 : index
    %77 = vector.load %arg5[%c9_86, %c0_87, %c0_88] : memref<16x2x64xf32, #tpu.memory_space<vmem>>, vector<1x2x64xf32>
    %78 = vector.shape_cast %77 : vector<1x2x64xf32> to vector<2x64xf32>
    %79 = vector.shape_cast %76 : vector<2x64xf32> to vector<1x2x64xf32>
    tpu.vector_store %arg5[%c9_86, %c0_87, %c0_88], %79 {strides = array<i32>} : memref<16x2x64xf32, #tpu.memory_space<vmem>>, vector<1x2x64xf32>,
    %c0_89 = arith.constant 0 : index
    %c10 = arith.constant 10 : index
    %c0_90 = arith.constant 0 : index
    %80 = vector.load %arg1[%c0_89, %c10, %c0_90] : memref<2x16x8xf32, #tpu.memory_space<vmem>>, vector<2x1x8xf32>
    %81 = vector.shape_cast %80 : vector<2x1x8xf32> to vector<2x8xf32>
    %c10_91 = arith.constant 10 : index
    %c0_92 = arith.constant 0 : index
    %c0_93 = arith.constant 0 : index
    %82 = vector.load %arg2[%c10_91, %c0_92, %c0_93] : memref<16x8x64xf32, #tpu.memory_space<vmem>>, vector<1x8x64xf32>
    %83 = vector.shape_cast %82 : vector<1x8x64xf32> to vector<8x64xf32>
    %cst_94 = arith.constant dense<0.000000e+00> : vector<2x64xf32>
    %84 = tpu.matmul %81, %83, %cst_94 {dimension_numbers = #tpu.dot_dimension_numbers<[1], [0], [0], [1], [0, 0, 1, 1], [], []>} : vector<2x8xf32>, vector<8x64xf32>, vector<2x64xf32> -> vector<2x64xf32>
    %c10_95 = arith.constant 10 : index
    %c0_96 = arith.constant 0 : index
    %c0_97 = arith.constant 0 : index
    %85 = vector.load %arg5[%c10_95, %c0_96, %c0_97] : memref<16x2x64xf32, #tpu.memory_space<vmem>>, vector<1x2x64xf32>
    %86 = vector.shape_cast %85 : vector<1x2x64xf32> to vector<2x64xf32>
    %87 = vector.shape_cast %84 : vector<2x64xf32> to vector<1x2x64xf32>
    tpu.vector_store %arg5[%c10_95, %c0_96, %c0_97], %87 {strides = array<i32>} : memref<16x2x64xf32, #tpu.memory_space<vmem>>, vector<1x2x64xf32>,
    %c0_98 = arith.constant 0 : index
    %c11 = arith.constant 11 : index
    %c0_99 = arith.constant 0 : index
    %88 = vector.load %arg1[%c0_98, %c11, %c0_99] : memref<2x16x8xf32, #tpu.memory_space<vmem>>, vector<2x1x8xf32>
    %89 = vector.shape_cast %88 : vector<2x1x8xf32> to vector<2x8xf32>
    %c11_100 = arith.constant 11 : index
    %c0_101 = arith.constant 0 : index
    %c0_102 = arith.constant 0 : index
    %90 = vector.load %arg2[%c11_100, %c0_101, %c0_102] : memref<16x8x64xf32, #tpu.memory_space<vmem>>, vector<1x8x64xf32>
    %91 = vector.shape_cast %90 : vector<1x8x64xf32> to vector<8x64xf32>
    %cst_103 = arith.constant dense<0.000000e+00> : vector<2x64xf32>
    %92 = tpu.matmul %89, %91, %cst_103 {dimension_numbers = #tpu.dot_dimension_numbers<[1], [0], [0], [1], [0, 0, 1, 1], [], []>} : vector<2x8xf32>, vector<8x64xf32>, vector<2x64xf32> -> vector<2x64xf32>
    %c11_104 = arith.constant 11 : index
    %c0_105 = arith.constant 0 : index
    %c0_106 = arith.constant 0 : index
    %93 = vector.load %arg5[%c11_104, %c0_105, %c0_106] : memref<16x2x64xf32, #tpu.memory_space<vmem>>, vector<1x2x64xf32>
    %94 = vector.shape_cast %93 : vector<1x2x64xf32> to vector<2x64xf32>
    %95 = vector.shape_cast %92 : vector<2x64xf32> to vector<1x2x64xf32>
    tpu.vector_store %arg5[%c11_104, %c0_105, %c0_106], %95 {strides = array<i32>} : memref<16x2x64xf32, #tpu.memory_space<vmem>>, vector<1x2x64xf32>,
    %c0_107 = arith.constant 0 : index
    %c12 = arith.constant 12 : index
    %c0_108 = arith.constant 0 : index
    %96 = vector.load %arg1[%c0_107, %c12, %c0_108] : memref<2x16x8xf32, #tpu.memory_space<vmem>>, vector<2x1x8xf32>
    %97 = vector.shape_cast %96 : vector<2x1x8xf32> to vector<2x8xf32>
    %c12_109 = arith.constant 12 : index
    %c0_110 = arith.constant 0 : index
    %c0_111 = arith.constant 0 : index
    %98 = vector.load %arg2[%c12_109, %c0_110, %c0_111] : memref<16x8x64xf32, #tpu.memory_space<vmem>>, vector<1x8x64xf32>
    %99 = vector.shape_cast %98 : vector<1x8x64xf32> to vector<8x64xf32>
    %cst_112 = arith.constant dense<0.000000e+00> : vector<2x64xf32>
    %100 = tpu.matmul %97, %99, %cst_112 {dimension_numbers = #tpu.dot_dimension_numbers<[1], [0], [0], [1], [0, 0, 1, 1], [], []>} : vector<2x8xf32>, vector<8x64xf32>, vector<2x64xf32> -> vector<2x64xf32>
    %c12_113 = arith.constant 12 : index
    %c0_114 = arith.constant 0 : index
    %c0_115 = arith.constant 0 : index
    %101 = vector.load %arg5[%c12_113, %c0_114, %c0_115] : memref<16x2x64xf32, #tpu.memory_space<vmem>>, vector<1x2x64xf32>
    %102 = vector.shape_cast %101 : vector<1x2x64xf32> to vector<2x64xf32>
    %103 = vector.shape_cast %100 : vector<2x64xf32> to vector<1x2x64xf32>
    tpu.vector_store %arg5[%c12_113, %c0_114, %c0_115], %103 {strides = array<i32>} : memref<16x2x64xf32, #tpu.memory_space<vmem>>, vector<1x2x64xf32>,
    %c0_116 = arith.constant 0 : index
    %c13 = arith.constant 13 : index
    %c0_117 = arith.constant 0 : index
    %104 = vector.load %arg1[%c0_116, %c13, %c0_117] : memref<2x16x8xf32, #tpu.memory_space<vmem>>, vector<2x1x8xf32>
    %105 = vector.shape_cast %104 : vector<2x1x8xf32> to vector<2x8xf32>
    %c13_118 = arith.constant 13 : index
    %c0_119 = arith.constant 0 : index
    %c0_120 = arith.constant 0 : index
    %106 = vector.load %arg2[%c13_118, %c0_119, %c0_120] : memref<16x8x64xf32, #tpu.memory_space<vmem>>, vector<1x8x64xf32>
    %107 = vector.shape_cast %106 : vector<1x8x64xf32> to vector<8x64xf32>
    %cst_121 = arith.constant dense<0.000000e+00> : vector<2x64xf32>
    %108 = tpu.matmul %105, %107, %cst_121 {dimension_numbers = #tpu.dot_dimension_numbers<[1], [0], [0], [1], [0, 0, 1, 1], [], []>} : vector<2x8xf32>, vector<8x64xf32>, vector<2x64xf32> -> vector<2x64xf32>
    %c13_122 = arith.constant 13 : index
    %c0_123 = arith.constant 0 : index
    %c0_124 = arith.constant 0 : index
    %109 = vector.load %arg5[%c13_122, %c0_123, %c0_124] : memref<16x2x64xf32, #tpu.memory_space<vmem>>, vector<1x2x64xf32>
    %110 = vector.shape_cast %109 : vector<1x2x64xf32> to vector<2x64xf32>
    %111 = vector.shape_cast %108 : vector<2x64xf32> to vector<1x2x64xf32>
    tpu.vector_store %arg5[%c13_122, %c0_123, %c0_124], %111 {strides = array<i32>} : memref<16x2x64xf32, #tpu.memory_space<vmem>>, vector<1x2x64xf32>,
    %c0_125 = arith.constant 0 : index
    %c14 = arith.constant 14 : index
    %c0_126 = arith.constant 0 : index
    %112 = vector.load %arg1[%c0_125, %c14, %c0_126] : memref<2x16x8xf32, #tpu.memory_space<vmem>>, vector<2x1x8xf32>
    %113 = vector.shape_cast %112 : vector<2x1x8xf32> to vector<2x8xf32>
    %c14_127 = arith.constant 14 : index
    %c0_128 = arith.constant 0 : index
    %c0_129 = arith.constant 0 : index
    %114 = vector.load %arg2[%c14_127, %c0_128, %c0_129] : memref<16x8x64xf32, #tpu.memory_space<vmem>>, vector<1x8x64xf32>
    %115 = vector.shape_cast %114 : vector<1x8x64xf32> to vector<8x64xf32>
    %cst_130 = arith.constant dense<0.000000e+00> : vector<2x64xf32>
    %116 = tpu.matmul %113, %115, %cst_130 {dimension_numbers = #tpu.dot_dimension_numbers<[1], [0], [0], [1], [0, 0, 1, 1], [], []>} : vector<2x8xf32>, vector<8x64xf32>, vector<2x64xf32> -> vector<2x64xf32>
    %c14_131 = arith.constant 14 : index
    %c0_132 = arith.constant 0 : index
    %c0_133 = arith.constant 0 : index
    %117 = vector.load %arg5[%c14_131, %c0_132, %c0_133] : memref<16x2x64xf32, #tpu.memory_space<vmem>>, vector<1x2x64xf32>
    %118 = vector.shape_cast %117 : vector<1x2x64xf32> to vector<2x64xf32>
    %119 = vector.shape_cast %116 : vector<2x64xf32> to vector<1x2x64xf32>
    tpu.vector_store %arg5[%c14_131, %c0_132, %c0_133], %119 {strides = array<i32>} : memref<16x2x64xf32, #tpu.memory_space<vmem>>, vector<1x2x64xf32>,
    %c0_134 = arith.constant 0 : index
    %c15 = arith.constant 15 : index
    %c0_135 = arith.constant 0 : index
    %120 = vector.load %arg1[%c0_134, %c15, %c0_135] : memref<2x16x8xf32, #tpu.memory_space<vmem>>, vector<2x1x8xf32>
    %121 = vector.shape_cast %120 : vector<2x1x8xf32> to vector<2x8xf32>
    %c15_136 = arith.constant 15 : index
    %c0_137 = arith.constant 0 : index
    %c0_138 = arith.constant 0 : index
    %122 = vector.load %arg2[%c15_136, %c0_137, %c0_138] : memref<16x8x64xf32, #tpu.memory_space<vmem>>, vector<1x8x64xf32>
    %123 = vector.shape_cast %122 : vector<1x8x64xf32> to vector<8x64xf32>
    %cst_139 = arith.constant dense<0.000000e+00> : vector<2x64xf32>
    %124 = tpu.matmul %121, %123, %cst_139 {dimension_numbers = #tpu.dot_dimension_numbers<[1], [0], [0], [1], [0, 0, 1, 1], [], []>} : vector<2x8xf32>, vector<8x64xf32>, vector<2x64xf32> -> vector<2x64xf32>
    %c15_140 = arith.constant 15 : index
    %c0_141 = arith.constant 0 : index
    %c0_142 = arith.constant 0 : index
    %125 = vector.load %arg5[%c15_140, %c0_141, %c0_142] : memref<16x2x64xf32, #tpu.memory_space<vmem>>, vector<1x2x64xf32>
    %126 = vector.shape_cast %125 : vector<1x2x64xf32> to vector<2x64xf32>
    %127 = vector.shape_cast %124 : vector<2x64xf32> to vector<1x2x64xf32>
    tpu.vector_store %arg5[%c15_140, %c0_141, %c0_142], %127 {strides = array<i32>} : memref<16x2x64xf32, #tpu.memory_space<vmem>>, vector<1x2x64xf32>,
    %c0_143 = arith.constant 0 : index
    %c0_144 = arith.constant 0 : index
    %c0_145 = arith.constant 0 : index
    %128 = vector.load %arg5[%c0_143, %c0_144, %c0_145] : memref<16x2x64xf32, #tpu.memory_space<vmem>>, vector<16x2x64xf32>
    %c0_146 = arith.constant 0 : index
    %c0_147 = arith.constant 0 : index
    %129 = vector.load %arg3[%c0_146, %c0_147] : memref<16x4xf32, #tpu.memory_space<vmem>>, vector<16x4xf32>
    %cst_148 = arith.constant dense<0xFF800000> : vector<16xf32>
    %130 = vector.multi_reduction <maximumf>, %129, %cst_148 [1] : vector<16x4xf32> to vector<16xf32>
    %131 = vector.shape_cast %130 : vector<16xf32> to vector<16x1xf32>
    %132 = vector.broadcast %131 : vector<16x1xf32> to vector<16x4xf32>
    %133 = arith.subf %129, %132 : vector<16x4xf32>
    %134 = math.exp %133 : vector<16x4xf32>
    %cst_149 = arith.constant dense<0.000000e+00> : vector<16xf32>
    %135 = vector.multi_reduction <add>, %134, %cst_149 [1] : vector<16x4xf32> to vector<16xf32>
    %136 = vector.shape_cast %135 : vector<16xf32> to vector<16x1xf32>
    %137 = vector.broadcast %136 : vector<16x1xf32> to vector<16x4xf32>
    %138 = arith.divf %134, %137 : vector<16x4xf32>
    %139 = vector.extract_strided_slice %138 {offsets = [0, 0], sizes = [16, 1], strides = [1, 1]} : vector<16x4xf32> to vector<16x1xf32>
    %140 = vector.shape_cast %139 : vector<16x1xf32> to vector<16x1xf32>
    %141 = vector.broadcast %140 : vector<16x1xf32> to vector<16x16xf32>
    %142 = vector.extract_strided_slice %138 {offsets = [0, 1], sizes = [16, 1], strides = [1, 1]} : vector<16x4xf32> to vector<16x1xf32>
    %143 = vector.shape_cast %142 : vector<16x1xf32> to vector<16x1xf32>
    %144 = vector.broadcast %143 : vector<16x1xf32> to vector<16x16xf32>
    %145 = vector.extract_strided_slice %138 {offsets = [0, 2], sizes = [16, 1], strides = [1, 1]} : vector<16x4xf32> to vector<16x1xf32>
    %146 = vector.shape_cast %145 : vector<16x1xf32> to vector<16x1xf32>
    %147 = vector.broadcast %146 : vector<16x1xf32> to vector<16x16xf32>
    %148 = vector.extract_strided_slice %138 {offsets = [0, 3], sizes = [16, 1], strides = [1, 1]} : vector<16x4xf32> to vector<16x1xf32>
    %149 = vector.shape_cast %148 : vector<16x1xf32> to vector<16x1xf32>
    %150 = vector.broadcast %149 : vector<16x1xf32> to vector<16x16xf32>
    %151 = tpu.concatenate %141, %144, %147, %150 in 1 : vector<16x16xf32>, vector<16x16xf32>, vector<16x16xf32>, vector<16x16xf32> -> vector<16x64xf32>
    %152 = vector.shape_cast %151 : vector<16x64xf32> to vector<16x1x64xf32>
    %153 = vector.broadcast %152 : vector<16x1x64xf32> to vector<16x2x64xf32>
    %154 = arith.mulf %153, %128 : vector<16x2x64xf32>
    %cst_150 = arith.constant dense<0.000000e+00> : vector<2x64xf32>
    %155 = vector.multi_reduction <add>, %154, %cst_150 [0] : vector<16x2x64xf32> to vector<2x64xf32>
    %156 = arith.mulf %155, %155 : vector<2x64xf32>
    %157 = vector.extract_strided_slice %156 {offsets = [0, 0], sizes = [2, 16], strides = [1, 1]} : vector<2x64xf32> to vector<2x16xf32>
    %cst_151 = arith.constant dense<0.000000e+00> : vector<2xf32>
    %158 = vector.multi_reduction <add>, %157, %cst_151 [1] : vector<2x16xf32> to vector<2xf32>
    %159 = vector.shape_cast %158 : vector<2xf32> to vector<2x1xf32>
    %160 = vector.extract_strided_slice %156 {offsets = [0, 16], sizes = [2, 16], strides = [1, 1]} : vector<2x64xf32> to vector<2x16xf32>
    %cst_152 = arith.constant dense<0.000000e+00> : vector<2xf32>
    %161 = vector.multi_reduction <add>, %160, %cst_152 [1] : vector<2x16xf32> to vector<2xf32>
    %162 = vector.shape_cast %161 : vector<2xf32> to vector<2x1xf32>
    %163 = vector.extract_strided_slice %156 {offsets = [0, 32], sizes = [2, 16], strides = [1, 1]} : vector<2x64xf32> to vector<2x16xf32>
    %cst_153 = arith.constant dense<0.000000e+00> : vector<2xf32>
    %164 = vector.multi_reduction <add>, %163, %cst_153 [1] : vector<2x16xf32> to vector<2xf32>
    %165 = vector.shape_cast %164 : vector<2xf32> to vector<2x1xf32>
    %166 = vector.extract_strided_slice %156 {offsets = [0, 48], sizes = [2, 16], strides = [1, 1]} : vector<2x64xf32> to vector<2x16xf32>
    %cst_154 = arith.constant dense<0.000000e+00> : vector<2xf32>
    %167 = vector.multi_reduction <add>, %166, %cst_154 [1] : vector<2x16xf32> to vector<2xf32>
    %168 = vector.shape_cast %167 : vector<2xf32> to vector<2x1xf32>
    %169 = tpu.concatenate %159, %162, %165, %168 in 1 : vector<2x1xf32>, vector<2x1xf32>, vector<2x1xf32>, vector<2x1xf32> -> vector<2x4xf32>
    %cst_155 = arith.constant 9.99999971E-10 : f32
    %170 = vector.broadcast %cst_155 : f32 to vector<2x4xf32>
    %171 = arith.addf %169, %170 : vector<2x4xf32>
    %172 = math.rsqrt %171 : vector<2x4xf32>
    %173 = arith.mulf %169, %172 : vector<2x4xf32>
    %cst_156 = arith.constant 1.000000e+00 : f32
    %174 = vector.broadcast %cst_156 : f32 to vector<2x4xf32>
    %175 = arith.addf %174, %169 : vector<2x4xf32>
    %176 = tpu.reciprocal %175 : vector<2x4xf32> -> vector<2x4xf32>
    %177 = arith.mulf %173, %176 : vector<2x4xf32>
    %178 = vector.extract_strided_slice %177 {offsets = [0, 0], sizes = [2, 1], strides = [1, 1]} : vector<2x4xf32> to vector<2x1xf32>
    %179 = vector.shape_cast %178 : vector<2x1xf32> to vector<2x1xf32>
    %180 = vector.broadcast %179 : vector<2x1xf32> to vector<2x16xf32>
    %181 = vector.extract_strided_slice %177 {offsets = [0, 1], sizes = [2, 1], strides = [1, 1]} : vector<2x4xf32> to vector<2x1xf32>
    %182 = vector.shape_cast %181 : vector<2x1xf32> to vector<2x1xf32>
    %183 = vector.broadcast %182 : vector<2x1xf32> to vector<2x16xf32>
    %184 = vector.extract_strided_slice %177 {offsets = [0, 2], sizes = [2, 1], strides = [1, 1]} : vector<2x4xf32> to vector<2x1xf32>
    %185 = vector.shape_cast %184 : vector<2x1xf32> to vector<2x1xf32>
    %186 = vector.broadcast %185 : vector<2x1xf32> to vector<2x16xf32>
    %187 = vector.extract_strided_slice %177 {offsets = [0, 3], sizes = [2, 1], strides = [1, 1]} : vector<2x4xf32> to vector<2x1xf32>
    %188 = vector.shape_cast %187 : vector<2x1xf32> to vector<2x1xf32>
    %189 = vector.broadcast %188 : vector<2x1xf32> to vector<2x16xf32>
    %190 = tpu.concatenate %180, %183, %186, %189 in 1 : vector<2x16xf32>, vector<2x16xf32>, vector<2x16xf32>, vector<2x16xf32> -> vector<2x64xf32>
    %191 = arith.mulf %155, %190 : vector<2x64xf32>
    %192 = vector.shape_cast %129 : vector<16x4xf32> to vector<16x1x4xf32>
    %193 = vector.shape_cast %192 : vector<16x1x4xf32> to vector<16x1x4xf32>
    %194 = vector.broadcast %193 : vector<16x1x4xf32> to vector<16x2x4xf32>
    %195 = vector.shape_cast %191 : vector<2x64xf32> to vector<1x2x64xf32>
    %196 = vector.broadcast %195 : vector<1x2x64xf32> to vector<16x2x64xf32>
    %197 = arith.mulf %128, %196 : vector<16x2x64xf32>
    %198 = vector.extract_strided_slice %197 {offsets = [0, 0, 0], sizes = [16, 2, 16], strides = [1, 1, 1]} : vector<16x2x64xf32> to vector<16x2x16xf32>
    %cst_157 = arith.constant dense<0.000000e+00> : vector<16x2xf32>
    %199 = vector.multi_reduction <add>, %198, %cst_157 [2] : vector<16x2x16xf32> to vector<16x2xf32>
    %200 = vector.shape_cast %199 : vector<16x2xf32> to vector<16x2x1xf32>
    %201 = vector.extract_strided_slice %197 {offsets = [0, 0, 16], sizes = [16, 2, 16], strides = [1, 1, 1]} : vector<16x2x64xf32> to vector<16x2x16xf32>
    %cst_158 = arith.constant dense<0.000000e+00> : vector<16x2xf32>
    %202 = vector.multi_reduction <add>, %201, %cst_158 [2] : vector<16x2x16xf32> to vector<16x2xf32>
    %203 = vector.shape_cast %202 : vector<16x2xf32> to vector<16x2x1xf32>
    %204 = vector.extract_strided_slice %197 {offsets = [0, 0, 32], sizes = [16, 2, 16], strides = [1, 1, 1]} : vector<16x2x64xf32> to vector<16x2x16xf32>
    %cst_159 = arith.constant dense<0.000000e+00> : vector<16x2xf32>
    %205 = vector.multi_reduction <add>, %204, %cst_159 [2] : vector<16x2x16xf32> to vector<16x2xf32>
    %206 = vector.shape_cast %205 : vector<16x2xf32> to vector<16x2x1xf32>
    %207 = vector.extract_strided_slice %197 {offsets = [0, 0, 48], sizes = [16, 2, 16], strides = [1, 1, 1]} : vector<16x2x64xf32> to vector<16x2x16xf32>
    %cst_160 = arith.constant dense<0.000000e+00> : vector<16x2xf32>
    %208 = vector.multi_reduction <add>, %207, %cst_160 [2] : vector<16x2x16xf32> to vector<16x2xf32>
    %209 = vector.shape_cast %208 : vector<16x2xf32> to vector<16x2x1xf32>
    %210 = tpu.concatenate %200, %203, %206, %209 in 2 : vector<16x2x1xf32>, vector<16x2x1xf32>, vector<16x2x1xf32>, vector<16x2x1xf32> -> vector<16x2x4xf32>
    %211 = arith.addf %194, %210 : vector<16x2x4xf32>
    %cst_161 = arith.constant dense<0xFF800000> : vector<16x2xf32>
    %212 = vector.multi_reduction <maximumf>, %211, %cst_161 [2] : vector<16x2x4xf32> to vector<16x2xf32>
    %213 = vector.shape_cast %212 : vector<16x2xf32> to vector<16x2x1xf32>
    %214 = vector.broadcast %213 : vector<16x2x1xf32> to vector<16x2x4xf32>
    %215 = arith.subf %211, %214 : vector<16x2x4xf32>
    %216 = math.exp %215 : vector<16x2x4xf32>
    %cst_162 = arith.constant dense<0.000000e+00> : vector<16x2xf32>
    %217 = vector.multi_reduction <add>, %216, %cst_162 [2] : vector<16x2x4xf32> to vector<16x2xf32>
    %218 = vector.shape_cast %217 : vector<16x2xf32> to vector<16x2x1xf32>
    %219 = vector.broadcast %218 : vector<16x2x1xf32> to vector<16x2x4xf32>
    %220 = arith.divf %216, %219 : vector<16x2x4xf32>
    %221 = vector.extract_strided_slice %220 {offsets = [0, 0, 0], sizes = [16, 2, 1], strides = [1, 1, 1]} : vector<16x2x4xf32> to vector<16x2x1xf32>
    %222 = vector.shape_cast %221 : vector<16x2x1xf32> to vector<16x2x1xf32>
    %223 = vector.broadcast %222 : vector<16x2x1xf32> to vector<16x2x16xf32>
    %224 = vector.extract_strided_slice %220 {offsets = [0, 0, 1], sizes = [16, 2, 1], strides = [1, 1, 1]} : vector<16x2x4xf32> to vector<16x2x1xf32>
    %225 = vector.shape_cast %224 : vector<16x2x1xf32> to vector<16x2x1xf32>
    %226 = vector.broadcast %225 : vector<16x2x1xf32> to vector<16x2x16xf32>
    %227 = vector.extract_strided_slice %220 {offsets = [0, 0, 2], sizes = [16, 2, 1], strides = [1, 1, 1]} : vector<16x2x4xf32> to vector<16x2x1xf32>
    %228 = vector.shape_cast %227 : vector<16x2x1xf32> to vector<16x2x1xf32>
    %229 = vector.broadcast %228 : vector<16x2x1xf32> to vector<16x2x16xf32>
    %230 = vector.extract_strided_slice %220 {offsets = [0, 0, 3], sizes = [16, 2, 1], strides = [1, 1, 1]} : vector<16x2x4xf32> to vector<16x2x1xf32>
    %231 = vector.shape_cast %230 : vector<16x2x1xf32> to vector<16x2x1xf32>
    %232 = vector.broadcast %231 : vector<16x2x1xf32> to vector<16x2x16xf32>
    %233 = tpu.concatenate %223, %226, %229, %232 in 2 : vector<16x2x16xf32>, vector<16x2x16xf32>, vector<16x2x16xf32>, vector<16x2x16xf32> -> vector<16x2x64xf32>
    %234 = arith.mulf %233, %128 : vector<16x2x64xf32>
    %cst_163 = arith.constant dense<0.000000e+00> : vector<2x64xf32>
    %235 = vector.multi_reduction <add>, %234, %cst_163 [0] : vector<16x2x64xf32> to vector<2x64xf32>
    %236 = arith.mulf %235, %235 : vector<2x64xf32>
    %237 = vector.extract_strided_slice %236 {offsets = [0, 0], sizes = [2, 16], strides = [1, 1]} : vector<2x64xf32> to vector<2x16xf32>
    %cst_164 = arith.constant dense<0.000000e+00> : vector<2xf32>
    %238 = vector.multi_reduction <add>, %237, %cst_164 [1] : vector<2x16xf32> to vector<2xf32>
    %239 = vector.shape_cast %238 : vector<2xf32> to vector<2x1xf32>
    %240 = vector.extract_strided_slice %236 {offsets = [0, 16], sizes = [2, 16], strides = [1, 1]} : vector<2x64xf32> to vector<2x16xf32>
    %cst_165 = arith.constant dense<0.000000e+00> : vector<2xf32>
    %241 = vector.multi_reduction <add>, %240, %cst_165 [1] : vector<2x16xf32> to vector<2xf32>
    %242 = vector.shape_cast %241 : vector<2xf32> to vector<2x1xf32>
    %243 = vector.extract_strided_slice %236 {offsets = [0, 32], sizes = [2, 16], strides = [1, 1]} : vector<2x64xf32> to vector<2x16xf32>
    %cst_166 = arith.constant dense<0.000000e+00> : vector<2xf32>
    %244 = vector.multi_reduction <add>, %243, %cst_166 [1] : vector<2x16xf32> to vector<2xf32>
    %245 = vector.shape_cast %244 : vector<2xf32> to vector<2x1xf32>
    %246 = vector.extract_strided_slice %236 {offsets = [0, 48], sizes = [2, 16], strides = [1, 1]} : vector<2x64xf32> to vector<2x16xf32>
    %cst_167 = arith.constant dense<0.000000e+00> : vector<2xf32>
    %247 = vector.multi_reduction <add>, %246, %cst_167 [1] : vector<2x16xf32> to vector<2xf32>
    %248 = vector.shape_cast %247 : vector<2xf32> to vector<2x1xf32>
    %249 = tpu.concatenate %239, %242, %245, %248 in 1 : vector<2x1xf32>, vector<2x1xf32>, vector<2x1xf32>, vector<2x1xf32> -> vector<2x4xf32>
    %cst_168 = arith.constant 9.99999971E-10 : f32
    %250 = vector.broadcast %cst_168 : f32 to vector<2x4xf32>
    %251 = arith.addf %249, %250 : vector<2x4xf32>
    %252 = math.rsqrt %251 : vector<2x4xf32>
    %253 = arith.mulf %249, %252 : vector<2x4xf32>
    %cst_169 = arith.constant 1.000000e+00 : f32
    %254 = vector.broadcast %cst_169 : f32 to vector<2x4xf32>
    %255 = arith.addf %254, %249 : vector<2x4xf32>
    %256 = tpu.reciprocal %255 : vector<2x4xf32> -> vector<2x4xf32>
    %257 = arith.mulf %253, %256 : vector<2x4xf32>
    %258 = vector.extract_strided_slice %257 {offsets = [0, 0], sizes = [2, 1], strides = [1, 1]} : vector<2x4xf32> to vector<2x1xf32>
    %259 = vector.shape_cast %258 : vector<2x1xf32> to vector<2x1xf32>
    %260 = vector.broadcast %259 : vector<2x1xf32> to vector<2x16xf32>
    %261 = vector.extract_strided_slice %257 {offsets = [0, 1], sizes = [2, 1], strides = [1, 1]} : vector<2x4xf32> to vector<2x1xf32>
    %262 = vector.shape_cast %261 : vector<2x1xf32> to vector<2x1xf32>
    %263 = vector.broadcast %262 : vector<2x1xf32> to vector<2x16xf32>
    %264 = vector.extract_strided_slice %257 {offsets = [0, 2], sizes = [2, 1], strides = [1, 1]} : vector<2x4xf32> to vector<2x1xf32>
    %265 = vector.shape_cast %264 : vector<2x1xf32> to vector<2x1xf32>
    %266 = vector.broadcast %265 : vector<2x1xf32> to vector<2x16xf32>
    %267 = vector.extract_strided_slice %257 {offsets = [0, 3], sizes = [2, 1], strides = [1, 1]} : vector<2x4xf32> to vector<2x1xf32>
    %268 = vector.shape_cast %267 : vector<2x1xf32> to vector<2x1xf32>
    %269 = vector.broadcast %268 : vector<2x1xf32> to vector<2x16xf32>
    %270 = tpu.concatenate %260, %263, %266, %269 in 1 : vector<2x16xf32>, vector<2x16xf32>, vector<2x16xf32>, vector<2x16xf32> -> vector<2x64xf32>
    %271 = arith.mulf %235, %270 : vector<2x64xf32>
    %272 = vector.shape_cast %271 : vector<2x64xf32> to vector<1x2x64xf32>
    %273 = vector.broadcast %272 : vector<1x2x64xf32> to vector<16x2x64xf32>
    %274 = arith.mulf %128, %273 : vector<16x2x64xf32>
    %275 = vector.extract_strided_slice %274 {offsets = [0, 0, 0], sizes = [16, 2, 16], strides = [1, 1, 1]} : vector<16x2x64xf32> to vector<16x2x16xf32>
    %cst_170 = arith.constant dense<0.000000e+00> : vector<16x2xf32>
    %276 = vector.multi_reduction <add>, %275, %cst_170 [2] : vector<16x2x16xf32> to vector<16x2xf32>
    %277 = vector.shape_cast %276 : vector<16x2xf32> to vector<16x2x1xf32>
    %278 = vector.extract_strided_slice %274 {offsets = [0, 0, 16], sizes = [16, 2, 16], strides = [1, 1, 1]} : vector<16x2x64xf32> to vector<16x2x16xf32>
    %cst_171 = arith.constant dense<0.000000e+00> : vector<16x2xf32>
    %279 = vector.multi_reduction <add>, %278, %cst_171 [2] : vector<16x2x16xf32> to vector<16x2xf32>
    %280 = vector.shape_cast %279 : vector<16x2xf32> to vector<16x2x1xf32>
    %281 = vector.extract_strided_slice %274 {offsets = [0, 0, 32], sizes = [16, 2, 16], strides = [1, 1, 1]} : vector<16x2x64xf32> to vector<16x2x16xf32>
    %cst_172 = arith.constant dense<0.000000e+00> : vector<16x2xf32>
    %282 = vector.multi_reduction <add>, %281, %cst_172 [2] : vector<16x2x16xf32> to vector<16x2xf32>
    %283 = vector.shape_cast %282 : vector<16x2xf32> to vector<16x2x1xf32>
    %284 = vector.extract_strided_slice %274 {offsets = [0, 0, 48], sizes = [16, 2, 16], strides = [1, 1, 1]} : vector<16x2x64xf32> to vector<16x2x16xf32>
    %cst_173 = arith.constant dense<0.000000e+00> : vector<16x2xf32>
    %285 = vector.multi_reduction <add>, %284, %cst_173 [2] : vector<16x2x16xf32> to vector<16x2xf32>
    %286 = vector.shape_cast %285 : vector<16x2xf32> to vector<16x2x1xf32>
    %287 = tpu.concatenate %277, %280, %283, %286 in 2 : vector<16x2x1xf32>, vector<16x2x1xf32>, vector<16x2x1xf32>, vector<16x2x1xf32> -> vector<16x2x4xf32>
    %288 = arith.addf %211, %287 : vector<16x2x4xf32>
    %cst_174 = arith.constant dense<0xFF800000> : vector<16x2xf32>
    %289 = vector.multi_reduction <maximumf>, %288, %cst_174 [2] : vector<16x2x4xf32> to vector<16x2xf32>
    %290 = vector.shape_cast %289 : vector<16x2xf32> to vector<16x2x1xf32>
    %291 = vector.broadcast %290 : vector<16x2x1xf32> to vector<16x2x4xf32>
    %292 = arith.subf %288, %291 : vector<16x2x4xf32>
    %293 = math.exp %292 : vector<16x2x4xf32>
    %cst_175 = arith.constant dense<0.000000e+00> : vector<16x2xf32>
    %294 = vector.multi_reduction <add>, %293, %cst_175 [2] : vector<16x2x4xf32> to vector<16x2xf32>
    %295 = vector.shape_cast %294 : vector<16x2xf32> to vector<16x2x1xf32>
    %296 = vector.broadcast %295 : vector<16x2x1xf32> to vector<16x2x4xf32>
    %297 = arith.divf %293, %296 : vector<16x2x4xf32>
    %298 = vector.extract_strided_slice %297 {offsets = [0, 0, 0], sizes = [16, 2, 1], strides = [1, 1, 1]} : vector<16x2x4xf32> to vector<16x2x1xf32>
    %299 = vector.shape_cast %298 : vector<16x2x1xf32> to vector<16x2x1xf32>
    %300 = vector.broadcast %299 : vector<16x2x1xf32> to vector<16x2x16xf32>
    %301 = vector.extract_strided_slice %297 {offsets = [0, 0, 1], sizes = [16, 2, 1], strides = [1, 1, 1]} : vector<16x2x4xf32> to vector<16x2x1xf32>
    %302 = vector.shape_cast %301 : vector<16x2x1xf32> to vector<16x2x1xf32>
    %303 = vector.broadcast %302 : vector<16x2x1xf32> to vector<16x2x16xf32>
    %304 = vector.extract_strided_slice %297 {offsets = [0, 0, 2], sizes = [16, 2, 1], strides = [1, 1, 1]} : vector<16x2x4xf32> to vector<16x2x1xf32>
    %305 = vector.shape_cast %304 : vector<16x2x1xf32> to vector<16x2x1xf32>
    %306 = vector.broadcast %305 : vector<16x2x1xf32> to vector<16x2x16xf32>
    %307 = vector.extract_strided_slice %297 {offsets = [0, 0, 3], sizes = [16, 2, 1], strides = [1, 1, 1]} : vector<16x2x4xf32> to vector<16x2x1xf32>
    %308 = vector.shape_cast %307 : vector<16x2x1xf32> to vector<16x2x1xf32>
    %309 = vector.broadcast %308 : vector<16x2x1xf32> to vector<16x2x16xf32>
    %310 = tpu.concatenate %300, %303, %306, %309 in 2 : vector<16x2x16xf32>, vector<16x2x16xf32>, vector<16x2x16xf32>, vector<16x2x16xf32> -> vector<16x2x64xf32>
    %311 = arith.mulf %310, %128 : vector<16x2x64xf32>
    %cst_176 = arith.constant dense<0.000000e+00> : vector<2x64xf32>
    %312 = vector.multi_reduction <add>, %311, %cst_176 [0] : vector<16x2x64xf32> to vector<2x64xf32>
    %313 = arith.mulf %312, %312 : vector<2x64xf32>
    %314 = vector.extract_strided_slice %313 {offsets = [0, 0], sizes = [2, 16], strides = [1, 1]} : vector<2x64xf32> to vector<2x16xf32>
    %cst_177 = arith.constant dense<0.000000e+00> : vector<2xf32>
    %315 = vector.multi_reduction <add>, %314, %cst_177 [1] : vector<2x16xf32> to vector<2xf32>
    %316 = vector.shape_cast %315 : vector<2xf32> to vector<2x1xf32>
    %317 = vector.extract_strided_slice %313 {offsets = [0, 16], sizes = [2, 16], strides = [1, 1]} : vector<2x64xf32> to vector<2x16xf32>
    %cst_178 = arith.constant dense<0.000000e+00> : vector<2xf32>
    %318 = vector.multi_reduction <add>, %317, %cst_178 [1] : vector<2x16xf32> to vector<2xf32>
    %319 = vector.shape_cast %318 : vector<2xf32> to vector<2x1xf32>
    %320 = vector.extract_strided_slice %313 {offsets = [0, 32], sizes = [2, 16], strides = [1, 1]} : vector<2x64xf32> to vector<2x16xf32>
    %cst_179 = arith.constant dense<0.000000e+00> : vector<2xf32>
    %321 = vector.multi_reduction <add>, %320, %cst_179 [1] : vector<2x16xf32> to vector<2xf32>
    %322 = vector.shape_cast %321 : vector<2xf32> to vector<2x1xf32>
    %323 = vector.extract_strided_slice %313 {offsets = [0, 48], sizes = [2, 16], strides = [1, 1]} : vector<2x64xf32> to vector<2x16xf32>
    %cst_180 = arith.constant dense<0.000000e+00> : vector<2xf32>
    %324 = vector.multi_reduction <add>, %323, %cst_180 [1] : vector<2x16xf32> to vector<2xf32>
    %325 = vector.shape_cast %324 : vector<2xf32> to vector<2x1xf32>
    %326 = tpu.concatenate %316, %319, %322, %325 in 1 : vector<2x1xf32>, vector<2x1xf32>, vector<2x1xf32>, vector<2x1xf32> -> vector<2x4xf32>
    %cst_181 = arith.constant 9.99999971E-10 : f32
    %327 = vector.broadcast %cst_181 : f32 to vector<2x4xf32>
    %328 = arith.addf %326, %327 : vector<2x4xf32>
    %329 = math.rsqrt %328 : vector<2x4xf32>
    %330 = arith.mulf %326, %329 : vector<2x4xf32>
    %cst_182 = arith.constant 1.000000e+00 : f32
    %331 = vector.broadcast %cst_182 : f32 to vector<2x4xf32>
    %332 = arith.addf %331, %326 : vector<2x4xf32>
    %333 = tpu.reciprocal %332 : vector<2x4xf32> -> vector<2x4xf32>
    %334 = arith.mulf %330, %333 : vector<2x4xf32>
    %335 = vector.extract_strided_slice %334 {offsets = [0, 0], sizes = [2, 1], strides = [1, 1]} : vector<2x4xf32> to vector<2x1xf32>
    %336 = vector.shape_cast %335 : vector<2x1xf32> to vector<2x1xf32>
    %337 = vector.broadcast %336 : vector<2x1xf32> to vector<2x16xf32>
    %338 = vector.extract_strided_slice %334 {offsets = [0, 1], sizes = [2, 1], strides = [1, 1]} : vector<2x4xf32> to vector<2x1xf32>
    %339 = vector.shape_cast %338 : vector<2x1xf32> to vector<2x1xf32>
    %340 = vector.broadcast %339 : vector<2x1xf32> to vector<2x16xf32>
    %341 = vector.extract_strided_slice %334 {offsets = [0, 2], sizes = [2, 1], strides = [1, 1]} : vector<2x4xf32> to vector<2x1xf32>
    %342 = vector.shape_cast %341 : vector<2x1xf32> to vector<2x1xf32>
    %343 = vector.broadcast %342 : vector<2x1xf32> to vector<2x16xf32>
    %344 = vector.extract_strided_slice %334 {offsets = [0, 3], sizes = [2, 1], strides = [1, 1]} : vector<2x4xf32> to vector<2x1xf32>
    %345 = vector.shape_cast %344 : vector<2x1xf32> to vector<2x1xf32>
    %346 = vector.broadcast %345 : vector<2x1xf32> to vector<2x16xf32>
    %347 = tpu.concatenate %337, %340, %343, %346 in 1 : vector<2x16xf32>, vector<2x16xf32>, vector<2x16xf32>, vector<2x16xf32> -> vector<2x64xf32>
    %348 = arith.mulf %312, %347 : vector<2x64xf32>
    %349 = vector.shape_cast %348 : vector<2x64xf32> to vector<1x2x64xf32>
    %350 = vector.broadcast %349 : vector<1x2x64xf32> to vector<16x2x64xf32>
    %351 = arith.mulf %128, %350 : vector<16x2x64xf32>
    %352 = vector.extract_strided_slice %351 {offsets = [0, 0, 0], sizes = [16, 2, 16], strides = [1, 1, 1]} : vector<16x2x64xf32> to vector<16x2x16xf32>
    %cst_183 = arith.constant dense<0.000000e+00> : vector<16x2xf32>
    %353 = vector.multi_reduction <add>, %352, %cst_183 [2] : vector<16x2x16xf32> to vector<16x2xf32>
    %354 = vector.shape_cast %353 : vector<16x2xf32> to vector<16x2x1xf32>
    %355 = vector.extract_strided_slice %351 {offsets = [0, 0, 16], sizes = [16, 2, 16], strides = [1, 1, 1]} : vector<16x2x64xf32> to vector<16x2x16xf32>
    %cst_184 = arith.constant dense<0.000000e+00> : vector<16x2xf32>
    %356 = vector.multi_reduction <add>, %355, %cst_184 [2] : vector<16x2x16xf32> to vector<16x2xf32>
    %357 = vector.shape_cast %356 : vector<16x2xf32> to vector<16x2x1xf32>
    %358 = vector.extract_strided_slice %351 {offsets = [0, 0, 32], sizes = [16, 2, 16], strides = [1, 1, 1]} : vector<16x2x64xf32> to vector<16x2x16xf32>
    %cst_185 = arith.constant dense<0.000000e+00> : vector<16x2xf32>
    %359 = vector.multi_reduction <add>, %358, %cst_185 [2] : vector<16x2x16xf32> to vector<16x2xf32>
    %360 = vector.shape_cast %359 : vector<16x2xf32> to vector<16x2x1xf32>
    %361 = vector.extract_strided_slice %351 {offsets = [0, 0, 48], sizes = [16, 2, 16], strides = [1, 1, 1]} : vector<16x2x64xf32> to vector<16x2x16xf32>
    %cst_186 = arith.constant dense<0.000000e+00> : vector<16x2xf32>
    %362 = vector.multi_reduction <add>, %361, %cst_186 [2] : vector<16x2x16xf32> to vector<16x2xf32>
    %363 = vector.shape_cast %362 : vector<16x2xf32> to vector<16x2x1xf32>
    %364 = tpu.concatenate %354, %357, %360, %363 in 2 : vector<16x2x1xf32>, vector<16x2x1xf32>, vector<16x2x1xf32>, vector<16x2x1xf32> -> vector<16x2x4xf32>
    %365 = arith.addf %288, %364 : vector<16x2x4xf32>
    %cst_187 = arith.constant dense<0xFF800000> : vector<16x2xf32>
    %366 = vector.multi_reduction <maximumf>, %365, %cst_187 [2] : vector<16x2x4xf32> to vector<16x2xf32>
    %367 = vector.shape_cast %366 : vector<16x2xf32> to vector<16x2x1xf32>
    %368 = vector.broadcast %367 : vector<16x2x1xf32> to vector<16x2x4xf32>
    %369 = arith.subf %365, %368 : vector<16x2x4xf32>
    %370 = math.exp %369 : vector<16x2x4xf32>
    %cst_188 = arith.constant dense<0.000000e+00> : vector<16x2xf32>
    %371 = vector.multi_reduction <add>, %370, %cst_188 [2] : vector<16x2x4xf32> to vector<16x2xf32>
    %372 = vector.shape_cast %371 : vector<16x2xf32> to vector<16x2x1xf32>
    %373 = vector.broadcast %372 : vector<16x2x1xf32> to vector<16x2x4xf32>
    %374 = arith.divf %370, %373 : vector<16x2x4xf32>
    %375 = vector.extract_strided_slice %374 {offsets = [0, 0, 0], sizes = [16, 2, 1], strides = [1, 1, 1]} : vector<16x2x4xf32> to vector<16x2x1xf32>
    %376 = vector.shape_cast %375 : vector<16x2x1xf32> to vector<16x2x1xf32>
    %377 = vector.broadcast %376 : vector<16x2x1xf32> to vector<16x2x16xf32>
    %378 = vector.extract_strided_slice %374 {offsets = [0, 0, 1], sizes = [16, 2, 1], strides = [1, 1, 1]} : vector<16x2x4xf32> to vector<16x2x1xf32>
    %379 = vector.shape_cast %378 : vector<16x2x1xf32> to vector<16x2x1xf32>
    %380 = vector.broadcast %379 : vector<16x2x1xf32> to vector<16x2x16xf32>
    %381 = vector.extract_strided_slice %374 {offsets = [0, 0, 2], sizes = [16, 2, 1], strides = [1, 1, 1]} : vector<16x2x4xf32> to vector<16x2x1xf32>
    %382 = vector.shape_cast %381 : vector<16x2x1xf32> to vector<16x2x1xf32>
    %383 = vector.broadcast %382 : vector<16x2x1xf32> to vector<16x2x16xf32>
    %384 = vector.extract_strided_slice %374 {offsets = [0, 0, 3], sizes = [16, 2, 1], strides = [1, 1, 1]} : vector<16x2x4xf32> to vector<16x2x1xf32>
    %385 = vector.shape_cast %384 : vector<16x2x1xf32> to vector<16x2x1xf32>
    %386 = vector.broadcast %385 : vector<16x2x1xf32> to vector<16x2x16xf32>
    %387 = tpu.concatenate %377, %380, %383, %386 in 2 : vector<16x2x16xf32>, vector<16x2x16xf32>, vector<16x2x16xf32>, vector<16x2x16xf32> -> vector<16x2x64xf32>
    %388 = arith.mulf %387, %128 : vector<16x2x64xf32>
    %cst_189 = arith.constant dense<0.000000e+00> : vector<2x64xf32>
    %389 = vector.multi_reduction <add>, %388, %cst_189 [0] : vector<16x2x64xf32> to vector<2x64xf32>
    %390 = arith.mulf %389, %389 : vector<2x64xf32>
    %391 = vector.extract_strided_slice %390 {offsets = [0, 0], sizes = [2, 16], strides = [1, 1]} : vector<2x64xf32> to vector<2x16xf32>
    %cst_190 = arith.constant dense<0.000000e+00> : vector<2xf32>
    %392 = vector.multi_reduction <add>, %391, %cst_190 [1] : vector<2x16xf32> to vector<2xf32>
    %393 = vector.shape_cast %392 : vector<2xf32> to vector<2x1xf32>
    %394 = vector.extract_strided_slice %390 {offsets = [0, 16], sizes = [2, 16], strides = [1, 1]} : vector<2x64xf32> to vector<2x16xf32>
    %cst_191 = arith.constant dense<0.000000e+00> : vector<2xf32>
    %395 = vector.multi_reduction <add>, %394, %cst_191 [1] : vector<2x16xf32> to vector<2xf32>
    %396 = vector.shape_cast %395 : vector<2xf32> to vector<2x1xf32>
    %397 = vector.extract_strided_slice %390 {offsets = [0, 32], sizes = [2, 16], strides = [1, 1]} : vector<2x64xf32> to vector<2x16xf32>
    %cst_192 = arith.constant dense<0.000000e+00> : vector<2xf32>
    %398 = vector.multi_reduction <add>, %397, %cst_192 [1] : vector<2x16xf32> to vector<2xf32>
    %399 = vector.shape_cast %398 : vector<2xf32> to vector<2x1xf32>
    %400 = vector.extract_strided_slice %390 {offsets = [0, 48], sizes = [2, 16], strides = [1, 1]} : vector<2x64xf32> to vector<2x16xf32>
    %cst_193 = arith.constant dense<0.000000e+00> : vector<2xf32>
    %401 = vector.multi_reduction <add>, %400, %cst_193 [1] : vector<2x16xf32> to vector<2xf32>
    %402 = vector.shape_cast %401 : vector<2xf32> to vector<2x1xf32>
    %403 = tpu.concatenate %393, %396, %399, %402 in 1 : vector<2x1xf32>, vector<2x1xf32>, vector<2x1xf32>, vector<2x1xf32> -> vector<2x4xf32>
    %cst_194 = arith.constant 9.99999971E-10 : f32
    %404 = vector.broadcast %cst_194 : f32 to vector<2x4xf32>
    %405 = arith.addf %403, %404 : vector<2x4xf32>
    %406 = math.rsqrt %405 : vector<2x4xf32>
    %407 = arith.mulf %403, %406 : vector<2x4xf32>
    %cst_195 = arith.constant 1.000000e+00 : f32
    %408 = vector.broadcast %cst_195 : f32 to vector<2x4xf32>
    %409 = arith.addf %408, %403 : vector<2x4xf32>
    %410 = tpu.reciprocal %409 : vector<2x4xf32> -> vector<2x4xf32>
    %411 = arith.mulf %407, %410 : vector<2x4xf32>
    %412 = vector.extract_strided_slice %411 {offsets = [0, 0], sizes = [2, 1], strides = [1, 1]} : vector<2x4xf32> to vector<2x1xf32>
    %413 = vector.shape_cast %412 : vector<2x1xf32> to vector<2x1xf32>
    %414 = vector.broadcast %413 : vector<2x1xf32> to vector<2x16xf32>
    %415 = vector.extract_strided_slice %411 {offsets = [0, 1], sizes = [2, 1], strides = [1, 1]} : vector<2x4xf32> to vector<2x1xf32>
    %416 = vector.shape_cast %415 : vector<2x1xf32> to vector<2x1xf32>
    %417 = vector.broadcast %416 : vector<2x1xf32> to vector<2x16xf32>
    %418 = vector.extract_strided_slice %411 {offsets = [0, 2], sizes = [2, 1], strides = [1, 1]} : vector<2x4xf32> to vector<2x1xf32>
    %419 = vector.shape_cast %418 : vector<2x1xf32> to vector<2x1xf32>
    %420 = vector.broadcast %419 : vector<2x1xf32> to vector<2x16xf32>
    %421 = vector.extract_strided_slice %411 {offsets = [0, 3], sizes = [2, 1], strides = [1, 1]} : vector<2x4xf32> to vector<2x1xf32>
    %422 = vector.shape_cast %421 : vector<2x1xf32> to vector<2x1xf32>
    %423 = vector.broadcast %422 : vector<2x1xf32> to vector<2x16xf32>
    %424 = tpu.concatenate %414, %417, %420, %423 in 1 : vector<2x16xf32>, vector<2x16xf32>, vector<2x16xf32>, vector<2x16xf32> -> vector<2x64xf32>
    %425 = arith.mulf %389, %424 : vector<2x64xf32>
    %c0_196 = arith.constant 0 : index
    %c0_197 = arith.constant 0 : index
    %426 = vector.load %arg4[%c0_196, %c0_197] : memref<2x64xf32, #tpu.memory_space<vmem>>, vector<2x64xf32>
    tpu.vector_store %arg4[%c0_196, %c0_197], %425 {strides = array<i32>} : memref<2x64xf32, #tpu.memory_space<vmem>>, vector<2x64xf32>,
    return
  }
  func.func @transform_0(%arg0: i32) -> (i32, i32, i32) {
    %c0_i32 = arith.constant 0 : i32
    %c0_i32_0 = arith.constant 0 : i32
    %c0_i32_1 = arith.constant 0 : i32
    return %arg0, %c0_i32, %c0_i32_0 : i32, i32, i32
  }
  func.func @transform_1(%arg0: i32) -> (i32, i32, i32) {
    %c0_i32 = arith.constant 0 : i32
    %c0_i32_0 = arith.constant 0 : i32
    %c0_i32_1 = arith.constant 0 : i32
    %c0_i32_2 = arith.constant 0 : i32
    return %c0_i32, %c0_i32_0, %c0_i32_1 : i32, i32, i32
  }
  func.func @transform_2(%arg0: i32) -> (i32, i32) {
    %c0_i32 = arith.constant 0 : i32
    %c0_i32_0 = arith.constant 0 : i32
    %c0_i32_1 = arith.constant 0 : i32
    return %c0_i32, %c0_i32_0 : i32, i32
  }
  func.func @transform_3(%arg0: i32) -> (i32, i32) {
    %c0_i32 = arith.constant 0 : i32
    %c0_i32_0 = arith.constant 0 : i32
    return %arg0, %c0_i32 : i32, i32
  }
}

</mosaic_0001>

<llo_original>
// kernel: tpu_custom_call.1
$region0: #{tpu_custom_call.1}
  #allocation0 [shape = 'u32[]', space=smem, size = 0x4, offset = 0x4, fixed_abs, tag = 'smem constant byte address 0x4 - core index']
  #allocation1 [shape = 'u32[144,128]{1,0:T(1,128)}', space=vmem, size = 0x12000, scoped, tag = 'internal scratch']
  #allocation2 [shape = 'f32[16,2,64]{2,1,0:T(2,128)}', space=vmem, size = 0x4000, scoped, tag = 'scratch operand']
  %s0 = inlined_call_operand.vmem [shape: f32[2,16,8], index: 0, kind: input, shape index: {}]
  %s1 = inlined_call_operand.hbm [shape: f32[16,8,64], index: 1, kind: input, shape index: {}]
  %s2 = inlined_call_operand.vmem [shape: f32[16,4], index: 2, kind: input, shape index: {}]
  %s3 = inlined_call_operand.hbm [shape: f32[2,64], index: 3, kind: output, shape index: {}]
  %s4 = sld [smem:[#allocation0]]
  $region26: #{tpu_custom_call.1} parent=0
    _
  %s6 = ssub.s32 1, %s4
  %s7 = scalar_select 0, %s6, %s4
  $region1: #{tpu_custom_call.1} parent=0
    #allocation3 [shape = 'u8[65536]{0}', space=vmem, size = 0x10000, scoped, tag = 'input window, operand 1, single buffered']
    #allocation4 [shape = 's32[1]{0}', space=sflag, size = 0x4, scoped, tag = 'scoped memory for tpu_custom_call.1']
    #allocation5 [shape = 's32[1]{0}', space=sflag, size = 0x4, scoped, tag = 'scoped memory for tpu_custom_call.1']
    #allocation6 [shape = 'u8[1024]{0}', space=vmem, size = 0x400, scoped, tag = 'output window, operand 0, single buffered']
    %8 = vsyncpa [#allocation4], 0
    %9 = vsyncpa [#allocation5], 0
    // Predicated region
    $region2: #{tpu_custom_call.1} parent=1 // pred_check
      _
    $region3: #{tpu_custom_call.1} parent=1 // pred_check_branch
      %11 = sbr.rel (0) target = $region5
    $region4: #{tpu_custom_call.1} parent=1 // pred_region
      _
    $region5: #{tpu_custom_call.1} parent=1 // pred_fallthru
      _
    // Predicated region
    $region6: #{tpu_custom_call.1} parent=1 // pred_check
      _
    $region7: #{tpu_custom_call.1} parent=1 // pred_check_branch
      %13 = sbr.rel (0) target = $region9
    $region8: #{tpu_custom_call.1} parent=1 // pred_region
      %s15 = ssub.s32 2048, 2048
      %16 = vsyncadd [#allocation4], %s15
      %s17 = sshll.u32 [#allocation3], 4
      %s18 = int_to_ptr.vmem [resolvable:$true] %s17
      %23 = dma.hbm_to_vmem [thread:$0]  %s1, 2048, %s18, [#allocation4], 128, 128, 8
    $region9: #{tpu_custom_call.1} parent=1 // pred_fallthru
      _
    // Predicated region
    $region10: #{tpu_custom_call.1} parent=1 // pred_check
      _
    $region11: #{tpu_custom_call.1} parent=1 // pred_check_branch
      %25 = sbr.rel (0) target = $region13
    $region12: #{tpu_custom_call.1} parent=1 // pred_region
      _
    $region13: #{tpu_custom_call.1} parent=1 // pred_fallthru
      _
    // Predicated region
    $region14: #{tpu_custom_call.1} parent=1 // pred_check
      _
    $region15: #{tpu_custom_call.1} parent=1 // pred_check_branch
      %27 = sbr.rel (0) target = $region17
    $region16: #{tpu_custom_call.1} parent=1 // pred_region
      %28 = dma.done [#allocation4], 2048
    $region17: #{tpu_custom_call.1} parent=1 // pred_fallthru
      _
    %v29 = vld [vmem:[%s0] sm:$0x1]
    %v30 = vld [vmem:[%s0 + $0x10] sm:$0x1]
    %v31 = vld [vmem:[#allocation3] sm:$0xff]
    %v34 = vrot.slane %v30, 7
    %vm35 = vcmask 1041409
    %v36 = vsel %vm35, %v34, %v29
    %vm37 = vcmask 64512
    %v38 = vsel %vm37, %v36, 0
    %40 = vmatprep.subr.mxu0 0.0
    %41 = vmatpush1.msra.mxu0 %v31
    %42 = vmatprep.subr.mxu0 0.0
    %43 = vmatpush1.msra.mxu0 0.0
    %44 = vmatprep.subr.mxu0 0.0
    %45 = vmatpush1.msra.mxu0 0.0
    %46 = vmatprep.subr.mxu0 0.0
    %47 = vmatpush1.msra.mxu0 0.0
    %48 = vmatprep.subr.mxu0 0.0
    %49 = vmatpush1.msra.mxu0 0.0
    %50 = vmatprep.subr.mxu0 0.0
    %51 = vmatpush1.msra.mxu0 0.0
    %52 = vmatprep.subr.mxu0 0.0
    %53 = vmatpush1.msra.mxu0 0.0
    %54 = vmatprep.subr.mxu0 0.0
    %55 = vmatpush1.msra.mxu0 0.0
    %56 = vmatprep.subr.mxu0 0.0
    %57 = vmatpush1.msra.mxu0 0.0
    %58 = vmatprep.subr.mxu0 0.0
    %59 = vmatpush1.msra.mxu0 0.0
    %60 = vmatprep.subr.mxu0 0.0
    %61 = vmatpush1.msra.mxu0 0.0
    %62 = vmatprep.subr.mxu0 0.0
    %63 = vmatpush1.msra.mxu0 0.0
    %64 = vmatprep.subr.mxu0 0.0
    %65 = vmatpush1.msra.mxu0 0.0
    %66 = vmatprep.subr.mxu0 0.0
    %67 = vmatpush1.msra.mxu0 0.0
    %68 = vmatprep.subr.mxu0 0.0
    %69 = vmatpush1.msra.mxu0 0.0
    %70 = vmatprep.subr.mxu0 0.0
    %71 = vmatpush1.msra.mxu0 0.0
    %72 = vmatprep.subr.mxu0 0.0
    %73 = vmatpush1.msra.mxu0 0.0
    %74 = vmatprep.subr.mxu0 0.0
    %75 = vmatpush1.msra.mxu0 0.0
    %76 = vmatprep.subr.mxu0 0.0
    %77 = vmatpush1.msra.mxu0 0.0
    %78 = vmatprep.subr.mxu0 0.0
    %79 = vmatpush1.msra.mxu0 0.0
    %80 = vmatprep.subr.mxu0 0.0
    %81 = vmatpush1.msra.mxu0 0.0
    %82 = vmatprep.subr.mxu0 0.0
    %83 = vmatpush1.msra.mxu0 0.0
    %84 = vmatprep.subr.mxu0 0.0
    %85 = vmatpush1.msra.mxu0 0.0
    %86 = vmatprep.subr.mxu0 0.0
    %87 = vmatpush1.msra.mxu0 0.0
    %88 = vmatprep.subr.mxu0 0.0
    %89 = vmatpush1.msra.mxu0 0.0
    %90 = vmatprep.subr.mxu0 0.0
    %91 = vmatpush1.msra.mxu0 0.0
    %92 = vmatprep.subr.mxu0 0.0
    %93 = vmatpush1.msra.mxu0 0.0
    %94 = vmatprep.subr.mxu0 0.0
    %95 = vmatpush1.msra.mxu0 0.0
    %96 = vmatprep.subr.mxu0 0.0
    %97 = vmatpush1.msra.mxu0 0.0
    %98 = vmatprep.subr.mxu0 0.0
    %99 = vmatpush1.msra.mxu0 0.0
    %100 = vmatprep.subr.mxu0 0.0
    %101 = vmatpush1.msra.mxu0 0.0
    %102 = vmatprep.subr.mxu0 0.0
    %103 = vmatpush1.msra.mxu0 0.0
    %104 = vmatprep.mubr.f32.mxu0 0.0
    %105 = vmatmul.mubr.f32.gmra.mrb[0].mxu0 %v38
    %v106 = vpop.f32.mrb[0].mxu0
    %v107 = vadd.f32 0.0, %v106
    %v108 = vpop.f32.mrb[0].mxu0
    %109 = vdwg.mxu0
    %vm110 = vcmask 517120
    %111 = vst.msk [vmem:[#allocation2] sm:$0x3] %vm110, %v107
    %v112 = vld [vmem:[%s0 + $0x1] sm:$0x1]
    %v113 = vld [vmem:[%s0 + $0x11] sm:$0x1]
    %s114 = scalar_lea.vmem [#allocation3], 8
    %v115 = vld [vmem:[%s114] sm:$0xff]
    %v118 = vrot.slane %v113, 7
    %v119 = vsel %vm35, %v118, %v112
    %v120 = vsel %vm37, %v119, 0
    %122 = vmatprep.subr.mxu0 0.0
    %123 = vmatpush1.msra.mxu0 %v115
    %124 = vmatprep.subr.mxu0 0.0
    %125 = vmatpush1.msra.mxu0 0.0
    %126 = vmatprep.subr.mxu0 0.0
    %127 = vmatpush1.msra.mxu0 0.0
    %128 = vmatprep.subr.mxu0 0.0
    %129 = vmatpush1.msra.mxu0 0.0
    %130 = vmatprep.subr.mxu0 0.0
    %131 = vmatpush1.msra.mxu0 0.0
    %132 = vmatprep.subr.mxu0 0.0
    %133 = vmatpush1.msra.mxu0 0.0
    %134 = vmatprep.subr.mxu0 0.0
    %135 = vmatpush1.msra.mxu0 0.0
    %136 = vmatprep.subr.mxu0 0.0
    %137 = vmatpush1.msra.mxu0 0.0
    %138 = vmatprep.subr.mxu0 0.0
    %139 = vmatpush1.msra.mxu0 0.0
    %140 = vmatprep.subr.mxu0 0.0
    %141 = vmatpush1.msra.mxu0 0.0
    %142 = vmatprep.subr.mxu0 0.0
    %143 = vmatpush1.msra.mxu0 0.0
    %144 = vmatprep.subr.mxu0 0.0
    %145 = vmatpush1.msra.mxu0 0.0
    %146 = vmatprep.subr.mxu0 0.0
    %147 = vmatpush1.msra.mxu0 0.0
    %148 = vmatprep.subr.mxu0 0.0
    %149 = vmatpush1.msra.mxu0 0.0
    %150 = vmatprep.subr.mxu0 0.0
    %151 = vmatpush1.msra.mxu0 0.0
    %152 = vmatprep.subr.mxu0 0.0
    %153 = vmatpush1.msra.mxu0 0.0
    %154 = vmatprep.subr.mxu0 0.0
    %155 = vmatpush1.msra.mxu0 0.0
    %156 = vmatprep.subr.mxu0 0.0
    %157 = vmatpush1.msra.mxu0 0.0
    %158 = vmatprep.subr.mxu0 0.0
    %159 = vmatpush1.msra.mxu0 0.0
    %160 = vmatprep.subr.mxu0 0.0
    %161 = vmatpush1.msra.mxu0 0.0
    %162 = vmatprep.subr.mxu0 0.0
    %163 = vmatpush1.msra.mxu0 0.0
    %164 = vmatprep.subr.mxu0 0.0
    %165 = vmatpush1.msra.mxu0 0.0
    %166 = vmatprep.subr.mxu0 0.0
    %167 = vmatpush1.msra.mxu0 0.0
    %168 = vmatprep.subr.mxu0 0.0
    %169 = vmatpush1.msra.mxu0 0.0
    %170 = vmatprep.subr.mxu0 0.0
    %171 = vmatpush1.msra.mxu0 0.0
    %172 = vmatprep.subr.mxu0 0.0
    %173 = vmatpush1.msra.mxu0 0.0
    %174 = vmatprep.subr.mxu0 0.0
    %175 = vmatpush1.msra.mxu0 0.0
    %176 = vmatprep.subr.mxu0 0.0
    %177 = vmatpush1.msra.mxu0 0.0
    %178 = vmatprep.subr.mxu0 0.0
    %179 = vmatpush1.msra.mxu0 0.0
    %180 = vmatprep.subr.mxu0 0.0
    %181 = vmatpush1.msra.mxu0 0.0
    %182 = vmatprep.subr.mxu0 0.0
    %183 = vmatpush1.msra.mxu0 0.0
    %184 = vmatprep.subr.mxu0 0.0
    %185 = vmatpush1.msra.mxu0 0.0
    %186 = vmatprep.mubr.f32.mxu0 0.0
    %187 = vmatmul.mubr.f32.gmra.mrb[0].mxu0 %v120
    %v188 = vpop.f32.mrb[0].mxu0
    %v189 = vadd.f32 0.0, %v188
    %v190 = vpop.f32.mrb[0].mxu0
    %191 = vdwg.mxu0
    %s192 = scalar_lea.vmem [#allocation2], 2
    %193 = vst.msk [vmem:[%s192] sm:$0x3] %vm110, %v189
    %v194 = vld [vmem:[%s0 + $0x2] sm:$0x1]
    %v195 = vld [vmem:[%s0 + $0x12] sm:$0x1]
    %s196 = scalar_lea.vmem [#allocation3], 16
    %v197 = vld [vmem:[%s196] sm:$0xff]
    %v200 = vrot.slane %v195, 7
    %v201 = vsel %vm35, %v200, %v194
    %v202 = vsel %vm37, %v201, 0
    %204 = vmatprep.subr.mxu0 0.0
    %205 = vmatpush1.msra.mxu0 %v197
    %206 = vmatprep.subr.mxu0 0.0
    %207 = vmatpush1.msra.mxu0 0.0
    %208 = vmatprep.subr.mxu0 0.0
    %209 = vmatpush1.msra.mxu0 0.0
    %210 = vmatprep.subr.mxu0 0.0
    %211 = vmatpush1.msra.mxu0 0.0
    %212 = vmatprep.subr.mxu0 0.0
    %213 = vmatpush1.msra.mxu0 0.0
    %214 = vmatprep.subr.mxu0 0.0
    %215 = vmatpush1.msra.mxu0 0.0
    %216 = vmatprep.subr.mxu0 0.0
    %217 = vmatpush1.msra.mxu0 0.0
    %218 = vmatprep.subr.mxu0 0.0
    %219 = vmatpush1.msra.mxu0 0.0
    %220 = vmatprep.subr.mxu0 0.0
    %221 = vmatpush1.msra.mxu0 0.0
    %222 = vmatprep.subr.mxu0 0.0
    %223 = vmatpush1.msra.mxu0 0.0
    %224 = vmatprep.subr.mxu0 0.0
    %225 = vmatpush1.msra.mxu0 0.0
    %226 = vmatprep.subr.mxu0 0.0
    %227 = vmatpush1.msra.mxu0 0.0
    %228 = vmatprep.subr.mxu0 0.0
    %229 = vmatpush1.msra.mxu0 0.0
    %230 = vmatprep.subr.mxu0 0.0
    %231 = vmatpush1.msra.mxu0 0.0
    %232 = vmatprep.subr.mxu0 0.0
    %233 = vmatpush1.msra.mxu0 0.0
    %234 = vmatprep.subr.mxu0 0.0
    %235 = vmatpush1.msra.mxu0 0.0
    %236 = vmatprep.subr.mxu0 0.0
    %237 = vmatpush1.msra.mxu0 0.0
    %238 = vmatprep.subr.mxu0 0.0
    %239 = vmatpush1.msra.mxu0 0.0
    %240 = vmatprep.subr.mxu0 0.0
    %241 = vmatpush1.msra.mxu0 0.0
    %242 = vmatprep.subr.mxu0 0.0
    %243 = vmatpush1.msra.mxu0 0.0
    %244 = vmatprep.subr.mxu0 0.0
    %245 = vmatpush1.msra.mxu0 0.0
    %246 = vmatprep.subr.mxu0 0.0
    %247 = vmatpush1.msra.mxu0 0.0
    %248 = vmatprep.subr.mxu0 0.0
    %249 = vmatpush1.msra.mxu0 0.0
    %250 = vmatprep.subr.mxu0 0.0
    %251 = vmatpush1.msra.mxu0 0.0
    %252 = vmatprep.subr.mxu0 0.0
    %253 = vmatpush1.msra.mxu0 0.0
    %254 = vmatprep.subr.mxu0 0.0
    %255 = vmatpush1.msra.mxu0 0.0
    %256 = vmatprep.subr.mxu0 0.0
    %257 = vmatpush1.msra.mxu0 0.0
    %258 = vmatprep.subr.mxu0 0.0
    %259 = vmatpush1.msra.mxu0 0.0
    %260 = vmatprep.subr.mxu0 0.0
    %261 = vmatpush1.msra.mxu0 0.0
    %262 = vmatprep.subr.mxu0 0.0
    %263 = vmatpush1.msra.mxu0 0.0
    %264 = vmatprep.subr.mxu0 0.0
    %265 = vmatpush1.msra.mxu0 0.0
    %266 = vmatprep.subr.mxu0 0.0
    %267 = vmatpush1.msra.mxu0 0.0
    %268 = vmatprep.mubr.f32.mxu0 0.0
    %269 = vmatmul.mubr.f32.gmra.mrb[0].mxu0 %v202
    %v270 = vpop.f32.mrb[0].mxu0
    %v271 = vadd.f32 0.0, %v270
    %v272 = vpop.f32.mrb[0].mxu0
    %273 = vdwg.mxu0
    %s274 = scalar_lea.vmem [#allocation2], 4
    %275 = vst.msk [vmem:[%s274] sm:$0x3] %vm110, %v271
    %v276 = vld [vmem:[%s0 + $0x3] sm:$0x1]
    %v277 = vld [vmem:[%s0 + $0x13] sm:$0x1]
    %s278 = scalar_lea.vmem [#allocation3], 24
    %v279 = vld [vmem:[%s278] sm:$0xff]
    %v282 = vrot.slane %v277, 7
    %v283 = vsel %vm35, %v282, %v276
    %v284 = vsel %vm37, %v283, 0
    %286 = vmatprep.subr.mxu0 0.0
    %287 = vmatpush1.msra.mxu0 %v279
    %288 = vmatprep.subr.mxu0 0.0
    %289 = vmatpush1.msra.mxu0 0.0
    %290 = vmatprep.subr.mxu0 0.0
    %291 = vmatpush1.msra.mxu0 0.0
    %292 = vmatprep.subr.mxu0 0.0
    %293 = vmatpush1.msra.mxu0 0.0
    %294 = vmatprep.subr.mxu0 0.0
    %295 = vmatpush1.msra.mxu0 0.0
    %296 = vmatprep.subr.mxu0 0.0
    %297 = vmatpush1.msra.mxu0 0.0
    %298 = vmatprep.subr.mxu0 0.0
    %299 = vmatpush1.msra.mxu0 0.0
    %300 = vmatprep.subr.mxu0 0.0
    %301 = vmatpush1.msra.mxu0 0.0
    %302 = vmatprep.subr.mxu0 0.0
    %303 = vmatpush1.msra.mxu0 0.0
    %304 = vmatprep.subr.mxu0 0.0
    %305 = vmatpush1.msra.mxu0 0.0
    %306 = vmatprep.subr.mxu0 0.0
    %307 = vmatpush1.msra.mxu0 0.0
    %308 = vmatprep.subr.mxu0 0.0
    %309 = vmatpush1.msra.mxu0 0.0
    %310 = vmatprep.subr.mxu0 0.0
    %311 = vmatpush1.msra.mxu0 0.0
    %312 = vmatprep.subr.mxu0 0.0
    %313 = vmatpush1.msra.mxu0 0.0
    %314 = vmatprep.subr.mxu0 0.0
    %315 = vmatpush1.msra.mxu0 0.0
    %316 = vmatprep.subr.mxu0 0.0
    %317 = vmatpush1.msra.mxu0 0.0
    %318 = vmatprep.subr.mxu0 0.0
    %319 = vmatpush1.msra.mxu0 0.0
    %320 = vmatprep.subr.mxu0 0.0
    %321 = vmatpush1.msra.mxu0 0.0
    %322 = vmatprep.subr.mxu0 0.0
    %323 = vmatpush1.msra.mxu0 0.0
    %324 = vmatprep.subr.mxu0 0.0
    %325 = vmatpush1.msra.mxu0 0.0
    %326 = vmatprep.subr.mxu0 0.0
    %327 = vmatpush1.msra.mxu0 0.0
    %328 = vmatprep.subr.mxu0 0.0
    %329 = vmatpush1.msra.mxu0 0.0
    %330 = vmatprep.subr.mxu0 0.0
    %331 = vmatpush1.msra.mxu0 0.0
    %332 = vmatprep.subr.mxu0 0.0
    %333 = vmatpush1.msra.mxu0 0.0
    %334 = vmatprep.subr.mxu0 0.0
    %335 = vmatpush1.msra.mxu0 0.0
    %336 = vmatprep.subr.mxu0 0.0
    %337 = vmatpush1.msra.mxu0 0.0
    %338 = vmatprep.subr.mxu0 0.0
    %339 = vmatpush1.msra.mxu0 0.0
    %340 = vmatprep.subr.mxu0 0.0
    %341 = vmatpush1.msra.mxu0 0.0
    %342 = vmatprep.subr.mxu0 0.0
    %343 = vmatpush1.msra.mxu0 0.0
    %344 = vmatprep.subr.mxu0 0.0
    %345 = vmatpush1.msra.mxu0 0.0
    %346 = vmatprep.subr.mxu0 0.0
    %347 = vmatpush1.msra.mxu0 0.0
    %348 = vmatprep.subr.mxu0 0.0
    %349 = vmatpush1.msra.mxu0 0.0
    %350 = vmatprep.mubr.f32.mxu0 0.0
    %351 = vmatmul.mubr.f32.gmra.mrb[0].mxu0 %v284
    %v352 = vpop.f32.mrb[0].mxu0
    %v353 = vadd.f32 0.0, %v352
    %v354 = vpop.f32.mrb[0].mxu0
    %355 = vdwg.mxu0
    %s356 = scalar_lea.vmem [#allocation2], 6
    %357 = vst.msk [vmem:[%s356] sm:$0x3] %vm110, %v353
    %v358 = vld [vmem:[%s0 + $0x4] sm:$0x1]
    %v359 = vld [vmem:[%s0 + $0x14] sm:$0x1]
    %s360 = scalar_lea.vmem [#allocation3], 32
    %v361 = vld [vmem:[%s360] sm:$0xff]
    %v364 = vrot.slane %v359, 7
    %v365 = vsel %vm35, %v364, %v358
    %v366 = vsel %vm37, %v365, 0
    %368 = vmatprep.subr.mxu0 0.0
    %369 = vmatpush1.msra.mxu0 %v361
    %370 = vmatprep.subr.mxu0 0.0
    %371 = vmatpush1.msra.mxu0 0.0
    %372 = vmatprep.subr.mxu0 0.0
    %373 = vmatpush1.msra.mxu0 0.0
    %374 = vmatprep.subr.mxu0 0.0
    %375 = vmatpush1.msra.mxu0 0.0
    %376 = vmatprep.subr.mxu0 0.0
    %377 = vmatpush1.msra.mxu0 0.0
    %378 = vmatprep.subr.mxu0 0.0
    %379 = vmatpush1.msra.mxu0 0.0
    %380 = vmatprep.subr.mxu0 0.0
    %381 = vmatpush1.msra.mxu0 0.0
    %382 = vmatprep.subr.mxu0 0.0
    %383 = vmatpush1.msra.mxu0 0.0
    %384 = vmatprep.subr.mxu0 0.0
    %385 = vmatpush1.msra.mxu0 0.0
    %386 = vmatprep.subr.mxu0 0.0
    %387 = vmatpush1.msra.mxu0 0.0
    %388 = vmatprep.subr.mxu0 0.0
    %389 = vmatpush1.msra.mxu0 0.0
    %390 = vmatprep.subr.mxu0 0.0
    %391 = vmatpush1.msra.mxu0 0.0
    %392 = vmatprep.subr.mxu0 0.0
    %393 = vmatpush1.msra.mxu0 0.0
    %394 = vmatprep.subr.mxu0 0.0
    %395 = vmatpush1.msra.mxu0 0.0
    %396 = vmatprep.subr.mxu0 0.0
    %397 = vmatpush1.msra.mxu0 0.0
    %398 = vmatprep.subr.mxu0 0.0
    %399 = vmatpush1.msra.mxu0 0.0
    %400 = vmatprep.subr.mxu0 0.0
    %401 = vmatpush1.msra.mxu0 0.0
    %402 = vmatprep.subr.mxu0 0.0
    %403 = vmatpush1.msra.mxu0 0.0
    %404 = vmatprep.subr.mxu0 0.0
    %405 = vmatpush1.msra.mxu0 0.0
    %406 = vmatprep.subr.mxu0 0.0
    %407 = vmatpush1.msra.mxu0 0.0
    %408 = vmatprep.subr.mxu0 0.0
    %409 = vmatpush1.msra.mxu0 0.0
    %410 = vmatprep.subr.mxu0 0.0
    %411 = vmatpush1.msra.mxu0 0.0
    %412 = vmatprep.subr.mxu0 0.0
    %413 = vmatpush1.msra.mxu0 0.0
    %414 = vmatprep.subr.mxu0 0.0
    %415 = vmatpush1.msra.mxu0 0.0
    %416 = vmatprep.subr.mxu0 0.0
    %417 = vmatpush1.msra.mxu0 0.0
    %418 = vmatprep.subr.mxu0 0.0
    %419 = vmatpush1.msra.mxu0 0.0
    %420 = vmatprep.subr.mxu0 0.0
    %421 = vmatpush1.msra.mxu0 0.0
    %422 = vmatprep.subr.mxu0 0.0
    %423 = vmatpush1.msra.mxu0 0.0
    %424 = vmatprep.subr.mxu0 0.0
    %425 = vmatpush1.msra.mxu0 0.0
    %426 = vmatprep.subr.mxu0 0.0
    %427 = vmatpush1.msra.mxu0 0.0
    %428 = vmatprep.subr.mxu0 0.0
    %429 = vmatpush1.msra.mxu0 0.0
    %430 = vmatprep.subr.mxu0 0.0
    %431 = vmatpush1.msra.mxu0 0.0
    %432 = vmatprep.mubr.f32.mxu0 0.0
    %433 = vmatmul.mubr.f32.gmra.mrb[0].mxu0 %v366
    %v434 = vpop.f32.mrb[0].mxu0
    %v435 = vadd.f32 0.0, %v434
    %v436 = vpop.f32.mrb[0].mxu0
    %437 = vdwg.mxu0
    %s438 = scalar_lea.vmem [#allocation2], 8
    %439 = vst.msk [vmem:[%s438] sm:$0x3] %vm110, %v435
    %v440 = vld [vmem:[%s0 + $0x5] sm:$0x1]
    %v441 = vld [vmem:[%s0 + $0x15] sm:$0x1]
    %s442 = scalar_lea.vmem [#allocation3], 40
    %v443 = vld [vmem:[%s442] sm:$0xff]
    %v446 = vrot.slane %v441, 7
    %v447 = vsel %vm35, %v446, %v440
    %v448 = vsel %vm37, %v447, 0
    %450 = vmatprep.subr.mxu0 0.0
    %451 = vmatpush1.msra.mxu0 %v443
    %452 = vmatprep.subr.mxu0 0.0
    %453 = vmatpush1.msra.mxu0 0.0
    %454 = vmatprep.subr.mxu0 0.0
    %455 = vmatpush1.msra.mxu0 0.0
    %456 = vmatprep.subr.mxu0 0.0
    %457 = vmatpush1.msra.mxu0 0.0
    %458 = vmatprep.subr.mxu0 0.0
    %459 = vmatpush1.msra.mxu0 0.0
    %460 = vmatprep.subr.mxu0 0.0
    %461 = vmatpush1.msra.mxu0 0.0
    %462 = vmatprep.subr.mxu0 0.0
    %463 = vmatpush1.msra.mxu0 0.0
    %464 = vmatprep.subr.mxu0 0.0
    %465 = vmatpush1.msra.mxu0 0.0
    %466 = vmatprep.subr.mxu0 0.0
    %467 = vmatpush1.msra.mxu0 0.0
    %468 = vmatprep.subr.mxu0 0.0
    %469 = vmatpush1.msra.mxu0 0.0
    %470 = vmatprep.subr.mxu0 0.0
    %471 = vmatpush1.msra.mxu0 0.0
    %472 = vmatprep.subr.mxu0 0.0
    %473 = vmatpush1.msra.mxu0 0.0
    %474 = vmatprep.subr.mxu0 0.0
    %475 = vmatpush1.msra.mxu0 0.0
    %476 = vmatprep.subr.mxu0 0.0
    %477 = vmatpush1.msra.mxu0 0.0
    %478 = vmatprep.subr.mxu0 0.0
    %479 = vmatpush1.msra.mxu0 0.0
    %480 = vmatprep.subr.mxu0 0.0
    %481 = vmatpush1.msra.mxu0 0.0
    %482 = vmatprep.subr.mxu0 0.0
    %483 = vmatpush1.msra.mxu0 0.0
    %484 = vmatprep.subr.mxu0 0.0
    %485 = vmatpush1.msra.mxu0 0.0
    %486 = vmatprep.subr.mxu0 0.0
    %487 = vmatpush1.msra.mxu0 0.0
    %488 = vmatprep.subr.mxu0 0.0
    %489 = vmatpush1.msra.mxu0 0.0
    %490 = vmatprep.subr.mxu0 0.0
    %491 = vmatpush1.msra.mxu0 0.0
    %492 = vmatprep.subr.mxu0 0.0
    %493 = vmatpush1.msra.mxu0 0.0
    %494 = vmatprep.subr.mxu0 0.0
    %495 = vmatpush1.msra.mxu0 0.0
    %496 = vmatprep.subr.mxu0 0.0
    %497 = vmatpush1.msra.mxu0 0.0
    %498 = vmatprep.subr.mxu0 0.0
    %499 = vmatpush1.msra.mxu0 0.0
    %500 = vmatprep.subr.mxu0 0.0
    %501 = vmatpush1.msra.mxu0 0.0
    %502 = vmatprep.subr.mxu0 0.0
    %503 = vmatpush1.msra.mxu0 0.0
    %504 = vmatprep.subr.mxu0 0.0
    %505 = vmatpush1.msra.mxu0 0.0
    %506 = vmatprep.subr.mxu0 0.0
    %507 = vmatpush1.msra.mxu0 0.0
    %508 = vmatprep.subr.mxu0 0.0
    %509 = vmatpush1.msra.mxu0 0.0
    %510 = vmatprep.subr.mxu0 0.0
    %511 = vmatpush1.msra.mxu0 0.0
    %512 = vmatprep.subr.mxu0 0.0
    %513 = vmatpush1.msra.mxu0 0.0
    %514 = vmatprep.mubr.f32.mxu0 0.0
    %515 = vmatmul.mubr.f32.gmra.mrb[0].mxu0 %v448
    %v516 = vpop.f32.mrb[0].mxu0
    %v517 = vadd.f32 0.0, %v516
    %v518 = vpop.f32.mrb[0].mxu0
    %519 = vdwg.mxu0
    %s520 = scalar_lea.vmem [#allocation2], 10
    %521 = vst.msk [vmem:[%s520] sm:$0x3] %vm110, %v517
    %v522 = vld [vmem:[%s0 + $0x6] sm:$0x1]
    %v523 = vld [vmem:[%s0 + $0x16] sm:$0x1]
    %s524 = scalar_lea.vmem [#allocation3], 48
    %v525 = vld [vmem:[%s524] sm:$0xff]
    %v528 = vrot.slane %v523, 7
    %v529 = vsel %vm35, %v528, %v522
    %v530 = vsel %vm37, %v529, 0
    %532 = vmatprep.subr.mxu0 0.0
    %533 = vmatpush1.msra.mxu0 %v525
    %534 = vmatprep.subr.mxu0 0.0
    %535 = vmatpush1.msra.mxu0 0.0
    %536 = vmatprep.subr.mxu0 0.0
    %537 = vmatpush1.msra.mxu0 0.0
    %538 = vmatprep.subr.mxu0 0.0
    %539 = vmatpush1.msra.mxu0 0.0
    %540 = vmatprep.subr.mxu0 0.0
    %541 = vmatpush1.msra.mxu0 0.0
    %542 = vmatprep.subr.mxu0 0.0
    %543 = vmatpush1.msra.mxu0 0.0
    %544 = vmatprep.subr.mxu0 0.0
    %545 = vmatpush1.msra.mxu0 0.0
    %546 = vmatprep.subr.mxu0 0.0
    %547 = vmatpush1.msra.mxu0 0.0
    %548 = vmatprep.subr.mxu0 0.0
    %549 = vmatpush1.msra.mxu0 0.0
    %550 = vmatprep.subr.mxu0 0.0
    %551 = vmatpush1.msra.mxu0 0.0
    %552 = vmatprep.subr.mxu0 0.0
    %553 = vmatpush1.msra.mxu0 0.0
    %554 = vmatprep.subr.mxu0 0.0
    %555 = vmatpush1.msra.mxu0 0.0
    %556 = vmatprep.subr.mxu0 0.0
    %557 = vmatpush1.msra.mxu0 0.0
    %558 = vmatprep.subr.mxu0 0.0
    %559 = vmatpush1.msra.mxu0 0.0
    %560 = vmatprep.subr.mxu0 0.0
    %561 = vmatpush1.msra.mxu0 0.0
    %562 = vmatprep.subr.mxu0 0.0
    %563 = vmatpush1.msra.mxu0 0.0
    %564 = vmatprep.subr.mxu0 0.0
    %565 = vmatpush1.msra.mxu0 0.0
    %566 = vmatprep.subr.mxu0 0.0
    %567 = vmatpush1.msra.mxu0 0.0
    %568 = vmatprep.subr.mxu0 0.0
    %569 = vmatpush1.msra.mxu0 0.0
    %570 = vmatprep.subr.mxu0 0.0
    %571 = vmatpush1.msra.mxu0 0.0
    %572 = vmatprep.subr.mxu0 0.0
    %573 = vmatpush1.msra.mxu0 0.0
    %574 = vmatprep.subr.mxu0 0.0
    %575 = vmatpush1.msra.mxu0 0.0
    %576 = vmatprep.subr.mxu0 0.0
    %577 = vmatpush1.msra.mxu0 0.0
    %578 = vmatprep.subr.mxu0 0.0
    %579 = vmatpush1.msra.mxu0 0.0
    %580 = vmatprep.subr.mxu0 0.0
    %581 = vmatpush1.msra.mxu0 0.0
    %582 = vmatprep.subr.mxu0 0.0
    %583 = vmatpush1.msra.mxu0 0.0
    %584 = vmatprep.subr.mxu0 0.0
    %585 = vmatpush1.msra.mxu0 0.0
    %586 = vmatprep.subr.mxu0 0.0
    %587 = vmatpush1.msra.mxu0 0.0
    %588 = vmatprep.subr.mxu0 0.0
    %589 = vmatpush1.msra.mxu0 0.0
    %590 = vmatprep.subr.mxu0 0.0
    %591 = vmatpush1.msra.mxu0 0.0
    %592 = vmatprep.subr.mxu0 0.0
    %593 = vmatpush1.msra.mxu0 0.0
    %594 = vmatprep.subr.mxu0 0.0
    %595 = vmatpush1.msra.mxu0 0.0
    %596 = vmatprep.mubr.f32.mxu0 0.0
    %597 = vmatmul.mubr.f32.gmra.mrb[0].mxu0 %v530
    %v598 = vpop.f32.mrb[0].mxu0
    %v599 = vadd.f32 0.0, %v598
    %v600 = vpop.f32.mrb[0].mxu0
    %601 = vdwg.mxu0
    %s602 = scalar_lea.vmem [#allocation2], 12
    %603 = vst.msk [vmem:[%s602] sm:$0x3] %vm110, %v599
    %v604 = vld [vmem:[%s0 + $0x7] sm:$0x1]
    %v605 = vld [vmem:[%s0 + $0x17] sm:$0x1]
    %s606 = scalar_lea.vmem [#allocation3], 56
    %v607 = vld [vmem:[%s606] sm:$0xff]
    %v610 = vrot.slane %v605, 7
    %v611 = vsel %vm35, %v610, %v604
    %v612 = vsel %vm37, %v611, 0
    %614 = vmatprep.subr.mxu0 0.0
    %615 = vmatpush1.msra.mxu0 %v607
    %616 = vmatprep.subr.mxu0 0.0
    %617 = vmatpush1.msra.mxu0 0.0
    %618 = vmatprep.subr.mxu0 0.0
    %619 = vmatpush1.msra.mxu0 0.0
    %620 = vmatprep.subr.mxu0 0.0
    %621 = vmatpush1.msra.mxu0 0.0
    %622 = vmatprep.subr.mxu0 0.0
    %623 = vmatpush1.msra.mxu0 0.0
    %624 = vmatprep.subr.mxu0 0.0
    %625 = vmatpush1.msra.mxu0 0.0
    %626 = vmatprep.subr.mxu0 0.0
    %627 = vmatpush1.msra.mxu0 0.0
    %628 = vmatprep.subr.mxu0 0.0
    %629 = vmatpush1.msra.mxu0 0.0
    %630 = vmatprep.subr.mxu0 0.0
    %631 = vmatpush1.msra.mxu0 0.0
    %632 = vmatprep.subr.mxu0 0.0
    %633 = vmatpush1.msra.mxu0 0.0
    %634 = vmatprep.subr.mxu0 0.0
    %635 = vmatpush1.msra.mxu0 0.0
    %636 = vmatprep.subr.mxu0 0.0
    %637 = vmatpush1.msra.mxu0 0.0
    %638 = vmatprep.subr.mxu0 0.0
    %639 = vmatpush1.msra.mxu0 0.0
    %640 = vmatprep.subr.mxu0 0.0
    %641 = vmatpush1.msra.mxu0 0.0
    %642 = vmatprep.subr.mxu0 0.0
    %643 = vmatpush1.msra.mxu0 0.0
    %644 = vmatprep.subr.mxu0 0.0
    %645 = vmatpush1.msra.mxu0 0.0
    %646 = vmatprep.subr.mxu0 0.0
    %647 = vmatpush1.msra.mxu0 0.0
    %648 = vmatprep.subr.mxu0 0.0
    %649 = vmatpush1.msra.mxu0 0.0
    %650 = vmatprep.subr.mxu0 0.0
    %651 = vmatpush1.msra.mxu0 0.0
    %652 = vmatprep.subr.mxu0 0.0
    %653 = vmatpush1.msra.mxu0 0.0
    %654 = vmatprep.subr.mxu0 0.0
    %655 = vmatpush1.msra.mxu0 0.0
    %656 = vmatprep.subr.mxu0 0.0
    %657 = vmatpush1.msra.mxu0 0.0
    %658 = vmatprep.subr.mxu0 0.0
    %659 = vmatpush1.msra.mxu0 0.0
    %660 = vmatprep.subr.mxu0 0.0
    %661 = vmatpush1.msra.mxu0 0.0
    %662 = vmatprep.subr.mxu0 0.0
    %663 = vmatpush1.msra.mxu0 0.0
    %664 = vmatprep.subr.mxu0 0.0
    %665 = vmatpush1.msra.mxu0 0.0
    %666 = vmatprep.subr.mxu0 0.0
    %667 = vmatpush1.msra.mxu0 0.0
    %668 = vmatprep.subr.mxu0 0.0
    %669 = vmatpush1.msra.mxu0 0.0
    %670 = vmatprep.subr.mxu0 0.0
    %671 = vmatpush1.msra.mxu0 0.0
    %672 = vmatprep.subr.mxu0 0.0
    %673 = vmatpush1.msra.mxu0 0.0
    %674 = vmatprep.subr.mxu0 0.0
    %675 = vmatpush1.msra.mxu0 0.0
    %676 = vmatprep.subr.mxu0 0.0
    %677 = vmatpush1.msra.mxu0 0.0
    %678 = vmatprep.mubr.f32.mxu0 0.0
    %679 = vmatmul.mubr.f32.gmra.mrb[0].mxu0 %v612
    %v680 = vpop.f32.mrb[0].mxu0
    %v681 = vadd.f32 0.0, %v680
    %v682 = vpop.f32.mrb[0].mxu0
    %683 = vdwg.mxu0
    %s684 = scalar_lea.vmem [#allocation2], 14
    %685 = vst.msk [vmem:[%s684] sm:$0x3] %vm110, %v681
    %v686 = vld [vmem:[%s0 + $0x8] sm:$0x1]
    %v687 = vld [vmem:[%s0 + $0x18] sm:$0x1]
    %s688 = scalar_lea.vmem [#allocation3], 64
    %v689 = vld [vmem:[%s688] sm:$0xff]
    %v692 = vrot.slane %v687, 7
    %v693 = vsel %vm35, %v692, %v686
    %v694 = vsel %vm37, %v693, 0
    %696 = vmatprep.subr.mxu0 0.0
    %697 = vmatpush1.msra.mxu0 %v689
    %698 = vmatprep.subr.mxu0 0.0
    %699 = vmatpush1.msra.mxu0 0.0
    %700 = vmatprep.subr.mxu0 0.0
    %701 = vmatpush1.msra.mxu0 0.0
    %702 = vmatprep.subr.mxu0 0.0
    %703 = vmatpush1.msra.mxu0 0.0
    %704 = vmatprep.subr.mxu0 0.0
    %705 = vmatpush1.msra.mxu0 0.0
    %706 = vmatprep.subr.mxu0 0.0
    %707 = vmatpush1.msra.mxu0 0.0
    %708 = vmatprep.subr.mxu0 0.0
    %709 = vmatpush1.msra.mxu0 0.0
    %710 = vmatprep.subr.mxu0 0.0
    %711 = vmatpush1.msra.mxu0 0.0
    %712 = vmatprep.subr.mxu0 0.0
    %713 = vmatpush1.msra.mxu0 0.0
    %714 = vmatprep.subr.mxu0 0.0
    %715 = vmatpush1.msra.mxu0 0.0
    %716 = vmatprep.subr.mxu0 0.0
    %717 = vmatpush1.msra.mxu0 0.0
    %718 = vmatprep.subr.mxu0 0.0
    %719 = vmatpush1.msra.mxu0 0.0
    %720 = vmatprep.subr.mxu0 0.0
    %721 = vmatpush1.msra.mxu0 0.0
    %722 = vmatprep.subr.mxu0 0.0
    %723 = vmatpush1.msra.mxu0 0.0
    %724 = vmatprep.subr.mxu0 0.0
    %725 = vmatpush1.msra.mxu0 0.0
    %726 = vmatprep.subr.mxu0 0.0
    %727 = vmatpush1.msra.mxu0 0.0
    %728 = vmatprep.subr.mxu0 0.0
    %729 = vmatpush1.msra.mxu0 0.0
    %730 = vmatprep.subr.mxu0 0.0
    %731 = vmatpush1.msra.mxu0 0.0
    %732 = vmatprep.subr.mxu0 0.0
    %733 = vmatpush1.msra.mxu0 0.0
    %734 = vmatprep.subr.mxu0 0.0
    %735 = vmatpush1.msra.mxu0 0.0
    %736 = vmatprep.subr.mxu0 0.0
    %737 = vmatpush1.msra.mxu0 0.0
    %738 = vmatprep.subr.mxu0 0.0
    %739 = vmatpush1.msra.mxu0 0.0
    %740 = vmatprep.subr.mxu0 0.0
    %741 = vmatpush1.msra.mxu0 0.0
    %742 = vmatprep.subr.mxu0 0.0
    %743 = vmatpush1.msra.mxu0 0.0
    %744 = vmatprep.subr.mxu0 0.0
    %745 = vmatpush1.msra.mxu0 0.0
    %746 = vmatprep.subr.mxu0 0.0
    %747 = vmatpush1.msra.mxu0 0.0
    %748 = vmatprep.subr.mxu0 0.0
    %749 = vmatpush1.msra.mxu0 0.0
    %750 = vmatprep.subr.mxu0 0.0
    %751 = vmatpush1.msra.mxu0 0.0
    %752 = vmatprep.subr.mxu0 0.0
    %753 = vmatpush1.msra.mxu0 0.0
    %754 = vmatprep.subr.mxu0 0.0
    %755 = vmatpush1.msra.mxu0 0.0
    %756 = vmatprep.subr.mxu0 0.0
    %757 = vmatpush1.msra.mxu0 0.0
    %758 = vmatprep.subr.mxu0 0.0
    %759 = vmatpush1.msra.mxu0 0.0
    %760 = vmatprep.mubr.f32.mxu0 0.0
    %761 = vmatmul.mubr.f32.gmra.mrb[0].mxu0 %v694
    %v762 = vpop.f32.mrb[0].mxu0
    %v763 = vadd.f32 0.0, %v762
    %v764 = vpop.f32.mrb[0].mxu0
    %765 = vdwg.mxu0
    %s766 = scalar_lea.vmem [#allocation2], 16
    %767 = vst.msk [vmem:[%s766] sm:$0x3] %vm110, %v763
    %v768 = vld [vmem:[%s0 + $0x9] sm:$0x1]
    %v769 = vld [vmem:[%s0 + $0x19] sm:$0x1]
    %s770 = scalar_lea.vmem [#allocation3], 72
    %v771 = vld [vmem:[%s770] sm:$0xff]
    %v774 = vrot.slane %v769, 7
    %v775 = vsel %vm35, %v774, %v768
    %v776 = vsel %vm37, %v775, 0
    %778 = vmatprep.subr.mxu0 0.0
    %779 = vmatpush1.msra.mxu0 %v771
    %780 = vmatprep.subr.mxu0 0.0
    %781 = vmatpush1.msra.mxu0 0.0
    %782 = vmatprep.subr.mxu0 0.0
    %783 = vmatpush1.msra.mxu0 0.0
    %784 = vmatprep.subr.mxu0 0.0
    %785 = vmatpush1.msra.mxu0 0.0
    %786 = vmatprep.subr.mxu0 0.0
    %787 = vmatpush1.msra.mxu0 0.0
    %788 = vmatprep.subr.mxu0 0.0
    %789 = vmatpush1.msra.mxu0 0.0
    %790 = vmatprep.subr.mxu0 0.0
    %791 = vmatpush1.msra.mxu0 0.0
    %792 = vmatprep.subr.mxu0 0.0
    %793 = vmatpush1.msra.mxu0 0.0
    %794 = vmatprep.subr.mxu0 0.0
    %795 = vmatpush1.msra.mxu0 0.0
    %796 = vmatprep.subr.mxu0 0.0
    %797 = vmatpush1.msra.mxu0 0.0
    %798 = vmatprep.subr.mxu0 0.0
    %799 = vmatpush1.msra.mxu0 0.0
    %800 = vmatprep.subr.mxu0 0.0
    %801 = vmatpush1.msra.mxu0 0.0
    %802 = vmatprep.subr.mxu0 0.0
    %803 = vmatpush1.msra.mxu0 0.0
    %804 = vmatprep.subr.mxu0 0.0
    %805 = vmatpush1.msra.mxu0 0.0
    %806 = vmatprep.subr.mxu0 0.0
    %807 = vmatpush1.msra.mxu0 0.0
    %808 = vmatprep.subr.mxu0 0.0
    %809 = vmatpush1.msra.mxu0 0.0
    %810 = vmatprep.subr.mxu0 0.0
    %811 = vmatpush1.msra.mxu0 0.0
    %812 = vmatprep.subr.mxu0 0.0
    %813 = vmatpush1.msra.mxu0 0.0
    %814 = vmatprep.subr.mxu0 0.0
    %815 = vmatpush1.msra.mxu0 0.0
    %816 = vmatprep.subr.mxu0 0.0
    %817 = vmatpush1.msra.mxu0 0.0
    %818 = vmatprep.subr.mxu0 0.0
    %819 = vmatpush1.msra.mxu0 0.0
    %820 = vmatprep.subr.mxu0 0.0
    %821 = vmatpush1.msra.mxu0 0.0
    %822 = vmatprep.subr.mxu0 0.0
    %823 = vmatpush1.msra.mxu0 0.0
    %824 = vmatprep.subr.mxu0 0.0
    %825 = vmatpush1.msra.mxu0 0.0
    %826 = vmatprep.subr.mxu0 0.0
    %827 = vmatpush1.msra.mxu0 0.0
    %828 = vmatprep.subr.mxu0 0.0
    %829 = vmatpush1.msra.mxu0 0.0
    %830 = vmatprep.subr.mxu0 0.0
    %831 = vmatpush1.msra.mxu0 0.0
    %832 = vmatprep.subr.mxu0 0.0
    %833 = vmatpush1.msra.mxu0 0.0
    %834 = vmatprep.subr.mxu0 0.0
    %835 = vmatpush1.msra.mxu0 0.0
    %836 = vmatprep.subr.mxu0 0.0
    %837 = vmatpush1.msra.mxu0 0.0
    %838 = vmatprep.subr.mxu0 0.0
    %839 = vmatpush1.msra.mxu0 0.0
    %840 = vmatprep.subr.mxu0 0.0
    %841 = vmatpush1.msra.mxu0 0.0
    %842 = vmatprep.mubr.f32.mxu0 0.0
    %843 = vmatmul.mubr.f32.gmra.mrb[0].mxu0 %v776
    %v844 = vpop.f32.mrb[0].mxu0
    %v845 = vadd.f32 0.0, %v844
    %v846 = vpop.f32.mrb[0].mxu0
    %847 = vdwg.mxu0
    %s848 = scalar_lea.vmem [#allocation2], 18
    %849 = vst.msk [vmem:[%s848] sm:$0x3] %vm110, %v845
    %v850 = vld [vmem:[%s0 + $0xa] sm:$0x1]
    %v851 = vld [vmem:[%s0 + $0x1a] sm:$0x1]
    %s852 = scalar_lea.vmem [#allocation3], 80
    %v853 = vld [vmem:[%s852] sm:$0xff]
    %v856 = vrot.slane %v851, 7
    %v857 = vsel %vm35, %v856, %v850
    %v858 = vsel %vm37, %v857, 0
    %860 = vmatprep.subr.mxu0 0.0
    %861 = vmatpush1.msra.mxu0 %v853
    %862 = vmatprep.subr.mxu0 0.0
    %863 = vmatpush1.msra.mxu0 0.0
    %864 = vmatprep.subr.mxu0 0.0
    %865 = vmatpush1.msra.mxu0 0.0
    %866 = vmatprep.subr.mxu0 0.0
    %867 = vmatpush1.msra.mxu0 0.0
    %868 = vmatprep.subr.mxu0 0.0
    %869 = vmatpush1.msra.mxu0 0.0
    %870 = vmatprep.subr.mxu0 0.0
    %871 = vmatpush1.msra.mxu0 0.0
    %872 = vmatprep.subr.mxu0 0.0
    %873 = vmatpush1.msra.mxu0 0.0
    %874 = vmatprep.subr.mxu0 0.0
    %875 = vmatpush1.msra.mxu0 0.0
    %876 = vmatprep.subr.mxu0 0.0
    %877 = vmatpush1.msra.mxu0 0.0
    %878 = vmatprep.subr.mxu0 0.0
    %879 = vmatpush1.msra.mxu0 0.0
    %880 = vmatprep.subr.mxu0 0.0
    %881 = vmatpush1.msra.mxu0 0.0
    %882 = vmatprep.subr.mxu0 0.0
    %883 = vmatpush1.msra.mxu0 0.0
    %884 = vmatprep.subr.mxu0 0.0
    %885 = vmatpush1.msra.mxu0 0.0
    %886 = vmatprep.subr.mxu0 0.0
    %887 = vmatpush1.msra.mxu0 0.0
    %888 = vmatprep.subr.mxu0 0.0
    %889 = vmatpush1.msra.mxu0 0.0
    %890 = vmatprep.subr.mxu0 0.0
    %891 = vmatpush1.msra.mxu0 0.0
    %892 = vmatprep.subr.mxu0 0.0
    %893 = vmatpush1.msra.mxu0 0.0
    %894 = vmatprep.subr.mxu0 0.0
    %895 = vmatpush1.msra.mxu0 0.0
    %896 = vmatprep.subr.mxu0 0.0
    %897 = vmatpush1.msra.mxu0 0.0
    %898 = vmatprep.subr.mxu0 0.0
    %899 = vmatpush1.msra.mxu0 0.0
    %900 = vmatprep.subr.mxu0 0.0
    %901 = vmatpush1.msra.mxu0 0.0
    %902 = vmatprep.subr.mxu0 0.0
    %903 = vmatpush1.msra.mxu0 0.0
    %904 = vmatprep.subr.mxu0 0.0
    %905 = vmatpush1.msra.mxu0 0.0
    %906 = vmatprep.subr.mxu0 0.0
    %907 = vmatpush1.msra.mxu0 0.0
    %908 = vmatprep.subr.mxu0 0.0
    %909 = vmatpush1.msra.mxu0 0.0
    %910 = vmatprep.subr.mxu0 0.0
    %911 = vmatpush1.msra.mxu0 0.0
    %912 = vmatprep.subr.mxu0 0.0
    %913 = vmatpush1.msra.mxu0 0.0
    %914 = vmatprep.subr.mxu0 0.0
    %915 = vmatpush1.msra.mxu0 0.0
    %916 = vmatprep.subr.mxu0 0.0
    %917 = vmatpush1.msra.mxu0 0.0
    %918 = vmatprep.subr.mxu0 0.0
    %919 = vmatpush1.msra.mxu0 0.0
    %920 = vmatprep.subr.mxu0 0.0
    %921 = vmatpush1.msra.mxu0 0.0
    %922 = vmatprep.subr.mxu0 0.0
    %923 = vmatpush1.msra.mxu0 0.0
    %924 = vmatprep.mubr.f32.mxu0 0.0
    %925 = vmatmul.mubr.f32.gmra.mrb[0].mxu0 %v858
    %v926 = vpop.f32.mrb[0].mxu0
    %v927 = vadd.f32 0.0, %v926
    %v928 = vpop.f32.mrb[0].mxu0
    %929 = vdwg.mxu0
    %s930 = scalar_lea.vmem [#allocation2], 20
    %931 = vst.msk [vmem:[%s930] sm:$0x3] %vm110, %v927
    %v932 = vld [vmem:[%s0 + $0xb] sm:$0x1]
    %v933 = vld [vmem:[%s0 + $0x1b] sm:$0x1]
    %s934 = scalar_lea.vmem [#allocation3], 88
    %v935 = vld [vmem:[%s934] sm:$0xff]
    %v938 = vrot.slane %v933, 7
    %v939 = vsel %vm35, %v938, %v932
    %v940 = vsel %vm37, %v939, 0
    %942 = vmatprep.subr.mxu0 0.0
    %943 = vmatpush1.msra.mxu0 %v935
    %944 = vmatprep.subr.mxu0 0.0
    %945 = vmatpush1.msra.mxu0 0.0
    %946 = vmatprep.subr.mxu0 0.0
    %947 = vmatpush1.msra.mxu0 0.0
    %948 = vmatprep.subr.mxu0 0.0
    %949 = vmatpush1.msra.mxu0 0.0
    %950 = vmatprep.subr.mxu0 0.0
    %951 = vmatpush1.msra.mxu0 0.0
    %952 = vmatprep.subr.mxu0 0.0
    %953 = vmatpush1.msra.mxu0 0.0
    %954 = vmatprep.subr.mxu0 0.0
    %955 = vmatpush1.msra.mxu0 0.0
    %956 = vmatprep.subr.mxu0 0.0
    %957 = vmatpush1.msra.mxu0 0.0
    %958 = vmatprep.subr.mxu0 0.0
    %959 = vmatpush1.msra.mxu0 0.0
    %960 = vmatprep.subr.mxu0 0.0
    %961 = vmatpush1.msra.mxu0 0.0
    %962 = vmatprep.subr.mxu0 0.0
    %963 = vmatpush1.msra.mxu0 0.0
    %964 = vmatprep.subr.mxu0 0.0
    %965 = vmatpush1.msra.mxu0 0.0
    %966 = vmatprep.subr.mxu0 0.0
    %967 = vmatpush1.msra.mxu0 0.0
    %968 = vmatprep.subr.mxu0 0.0
    %969 = vmatpush1.msra.mxu0 0.0
    %970 = vmatprep.subr.mxu0 0.0
    %971 = vmatpush1.msra.mxu0 0.0
    %972 = vmatprep.subr.mxu0 0.0
    %973 = vmatpush1.msra.mxu0 0.0
    %974 = vmatprep.subr.mxu0 0.0
    %975 = vmatpush1.msra.mxu0 0.0
    %976 = vmatprep.subr.mxu0 0.0
    %977 = vmatpush1.msra.mxu0 0.0
    %978 = vmatprep.subr.mxu0 0.0
    %979 = vmatpush1.msra.mxu0 0.0
    %980 = vmatprep.subr.mxu0 0.0
    %981 = vmatpush1.msra.mxu0 0.0
    %982 = vmatprep.subr.mxu0 0.0
    %983 = vmatpush1.msra.mxu0 0.0
    %984 = vmatprep.subr.mxu0 0.0
    %985 = vmatpush1.msra.mxu0 0.0
    %986 = vmatprep.subr.mxu0 0.0
    %987 = vmatpush1.msra.mxu0 0.0
    %988 = vmatprep.subr.mxu0 0.0
    %989 = vmatpush1.msra.mxu0 0.0
    %990 = vmatprep.subr.mxu0 0.0
    %991 = vmatpush1.msra.mxu0 0.0
    %992 = vmatprep.subr.mxu0 0.0
    %993 = vmatpush1.msra.mxu0 0.0
    %994 = vmatprep.subr.mxu0 0.0
    %995 = vmatpush1.msra.mxu0 0.0
    %996 = vmatprep.subr.mxu0 0.0
    %997 = vmatpush1.msra.mxu0 0.0
    %998 = vmatprep.subr.mxu0 0.0
    %999 = vmatpush1.msra.mxu0 0.0
    %1000 = vmatprep.subr.mxu0 0.0
    %1001 = vmatpush1.msra.mxu0 0.0
    %1002 = vmatprep.subr.mxu0 0.0
    %1003 = vmatpush1.msra.mxu0 0.0
    %1004 = vmatprep.subr.mxu0 0.0
    %1005 = vmatpush1.msra.mxu0 0.0
    %1006 = vmatprep.mubr.f32.mxu0 0.0
    %1007 = vmatmul.mubr.f32.gmra.mrb[0].mxu0 %v940
    %v1008 = vpop.f32.mrb[0].mxu0
    %v1009 = vadd.f32 0.0, %v1008
    %v1010 = vpop.f32.mrb[0].mxu0
    %1011 = vdwg.mxu0
    %s1012 = scalar_lea.vmem [#allocation2], 22
    %1013 = vst.msk [vmem:[%s1012] sm:$0x3] %vm110, %v1009
    %v1014 = vld [vmem:[%s0 + $0xc] sm:$0x1]
    %v1015 = vld [vmem:[%s0 + $0x1c] sm:$0x1]
    %s1016 = scalar_lea.vmem [#allocation3], 96
    %v1017 = vld [vmem:[%s1016] sm:$0xff]
    %v1020 = vrot.slane %v1015, 7
    %v1021 = vsel %vm35, %v1020, %v1014
    %v1022 = vsel %vm37, %v1021, 0
    %1024 = vmatprep.subr.mxu0 0.0
    %1025 = vmatpush1.msra.mxu0 %v1017
    %1026 = vmatprep.subr.mxu0 0.0
    %1027 = vmatpush1.msra.mxu0 0.0
    %1028 = vmatprep.subr.mxu0 0.0
    %1029 = vmatpush1.msra.mxu0 0.0
    %1030 = vmatprep.subr.mxu0 0.0
    %1031 = vmatpush1.msra.mxu0 0.0
    %1032 = vmatprep.subr.mxu0 0.0
    %1033 = vmatpush1.msra.mxu0 0.0
    %1034 = vmatprep.subr.mxu0 0.0
    %1035 = vmatpush1.msra.mxu0 0.0
    %1036 = vmatprep.subr.mxu0 0.0
    %1037 = vmatpush1.msra.mxu0 0.0
    %1038 = vmatprep.subr.mxu0 0.0
    %1039 = vmatpush1.msra.mxu0 0.0
    %1040 = vmatprep.subr.mxu0 0.0
    %1041 = vmatpush1.msra.mxu0 0.0
    %1042 = vmatprep.subr.mxu0 0.0
    %1043 = vmatpush1.msra.mxu0 0.0
    %1044 = vmatprep.subr.mxu0 0.0
    %1045 = vmatpush1.msra.mxu0 0.0
    %1046 = vmatprep.subr.mxu0 0.0
    %1047 = vmatpush1.msra.mxu0 0.0
    %1048 = vmatprep.subr.mxu0 0.0
    %1049 = vmatpush1.msra.mxu0 0.0
    %1050 = vmatprep.subr.mxu0 0.0
    %1051 = vmatpush1.msra.mxu0 0.0
    %1052 = vmatprep.subr.mxu0 0.0
    %1053 = vmatpush1.msra.mxu0 0.0
    %1054 = vmatprep.subr.mxu0 0.0
    %1055 = vmatpush1.msra.mxu0 0.0
    %1056 = vmatprep.subr.mxu0 0.0
    %1057 = vmatpush1.msra.mxu0 0.0
    %1058 = vmatprep.subr.mxu0 0.0
    %1059 = vmatpush1.msra.mxu0 0.0
    %1060 = vmatprep.subr.mxu0 0.0
    %1061 = vmatpush1.msra.mxu0 0.0
    %1062 = vmatprep.subr.mxu0 0.0
    %1063 = vmatpush1.msra.mxu0 0.0
    %1064 = vmatprep.subr.mxu0 0.0
    %1065 = vmatpush1.msra.mxu0 0.0
    %1066 = vmatprep.subr.mxu0 0.0
    %1067 = vmatpush1.msra.mxu0 0.0
    %1068 = vmatprep.subr.mxu0 0.0
    %1069 = vmatpush1.msra.mxu0 0.0
    %1070 = vmatprep.subr.mxu0 0.0
    %1071 = vmatpush1.msra.mxu0 0.0
    %1072 = vmatprep.subr.mxu0 0.0
    %1073 = vmatpush1.msra.mxu0 0.0
    %1074 = vmatprep.subr.mxu0 0.0
    %1075 = vmatpush1.msra.mxu0 0.0
    %1076 = vmatprep.subr.mxu0 0.0
    %1077 = vmatpush1.msra.mxu0 0.0
    %1078 = vmatprep.subr.mxu0 0.0
    %1079 = vmatpush1.msra.mxu0 0.0
    %1080 = vmatprep.subr.mxu0 0.0
    %1081 = vmatpush1.msra.mxu0 0.0
    %1082 = vmatprep.subr.mxu0 0.0
    %1083 = vmatpush1.msra.mxu0 0.0
    %1084 = vmatprep.subr.mxu0 0.0
    %1085 = vmatpush1.msra.mxu0 0.0
    %1086 = vmatprep.subr.mxu0 0.0
    %1087 = vmatpush1.msra.mxu0 0.0
    %1088 = vmatprep.mubr.f32.mxu0 0.0
    %1089 = vmatmul.mubr.f32.gmra.mrb[0].mxu0 %v1022
    %v1090 = vpop.f32.mrb[0].mxu0
    %v1091 = vadd.f32 0.0, %v1090
    %v1092 = vpop.f32.mrb[0].mxu0
    %1093 = vdwg.mxu0
    %s1094 = scalar_lea.vmem [#allocation2], 24
    %1095 = vst.msk [vmem:[%s1094] sm:$0x3] %vm110, %v1091
    %v1096 = vld [vmem:[%s0 + $0xd] sm:$0x1]
    %v1097 = vld [vmem:[%s0 + $0x1d] sm:$0x1]
    %s1098 = scalar_lea.vmem [#allocation3], 104
    %v1099 = vld [vmem:[%s1098] sm:$0xff]
    %v1102 = vrot.slane %v1097, 7
    %v1103 = vsel %vm35, %v1102, %v1096
    %v1104 = vsel %vm37, %v1103, 0
    %1106 = vmatprep.subr.mxu0 0.0
    %1107 = vmatpush1.msra.mxu0 %v1099
    %1108 = vmatprep.subr.mxu0 0.0
    %1109 = vmatpush1.msra.mxu0 0.0
    %1110 = vmatprep.subr.mxu0 0.0
    %1111 = vmatpush1.msra.mxu0 0.0
    %1112 = vmatprep.subr.mxu0 0.0
    %1113 = vmatpush1.msra.mxu0 0.0
    %1114 = vmatprep.subr.mxu0 0.0
    %1115 = vmatpush1.msra.mxu0 0.0
    %1116 = vmatprep.subr.mxu0 0.0
    %1117 = vmatpush1.msra.mxu0 0.0
    %1118 = vmatprep.subr.mxu0 0.0
    %1119 = vmatpush1.msra.mxu0 0.0
    %1120 = vmatprep.subr.mxu0 0.0
    %1121 = vmatpush1.msra.mxu0 0.0
    %1122 = vmatprep.subr.mxu0 0.0
    %1123 = vmatpush1.msra.mxu0 0.0
    %1124 = vmatprep.subr.mxu0 0.0
    %1125 = vmatpush1.msra.mxu0 0.0
    %1126 = vmatprep.subr.mxu0 0.0
    %1127 = vmatpush1.msra.mxu0 0.0
    %1128 = vmatprep.subr.mxu0 0.0
    %1129 = vmatpush1.msra.mxu0 0.0
    %1130 = vmatprep.subr.mxu0 0.0
    %1131 = vmatpush1.msra.mxu0 0.0
    %1132 = vmatprep.subr.mxu0 0.0
    %1133 = vmatpush1.msra.mxu0 0.0
    %1134 = vmatprep.subr.mxu0 0.0
    %1135 = vmatpush1.msra.mxu0 0.0
    %1136 = vmatprep.subr.mxu0 0.0
    %1137 = vmatpush1.msra.mxu0 0.0
    %1138 = vmatprep.subr.mxu0 0.0
    %1139 = vmatpush1.msra.mxu0 0.0
    %1140 = vmatprep.subr.mxu0 0.0
    %1141 = vmatpush1.msra.mxu0 0.0
    %1142 = vmatprep.subr.mxu0 0.0
    %1143 = vmatpush1.msra.mxu0 0.0
    %1144 = vmatprep.subr.mxu0 0.0
    %1145 = vmatpush1.msra.mxu0 0.0
    %1146 = vmatprep.subr.mxu0 0.0
    %1147 = vmatpush1.msra.mxu0 0.0
    %1148 = vmatprep.subr.mxu0 0.0
    %1149 = vmatpush1.msra.mxu0 0.0
    %1150 = vmatprep.subr.mxu0 0.0
    %1151 = vmatpush1.msra.mxu0 0.0
    %1152 = vmatprep.subr.mxu0 0.0
    %1153 = vmatpush1.msra.mxu0 0.0
    %1154 = vmatprep.subr.mxu0 0.0
    %1155 = vmatpush1.msra.mxu0 0.0
    %1156 = vmatprep.subr.mxu0 0.0
    %1157 = vmatpush1.msra.mxu0 0.0
    %1158 = vmatprep.subr.mxu0 0.0
    %1159 = vmatpush1.msra.mxu0 0.0
    %1160 = vmatprep.subr.mxu0 0.0
    %1161 = vmatpush1.msra.mxu0 0.0
    %1162 = vmatprep.subr.mxu0 0.0
    %1163 = vmatpush1.msra.mxu0 0.0
    %1164 = vmatprep.subr.mxu0 0.0
    %1165 = vmatpush1.msra.mxu0 0.0
    %1166 = vmatprep.subr.mxu0 0.0
    %1167 = vmatpush1.msra.mxu0 0.0
    %1168 = vmatprep.subr.mxu0 0.0
    %1169 = vmatpush1.msra.mxu0 0.0
    %1170 = vmatprep.mubr.f32.mxu0 0.0
    %1171 = vmatmul.mubr.f32.gmra.mrb[0].mxu0 %v1104
    %v1172 = vpop.f32.mrb[0].mxu0
    %v1173 = vadd.f32 0.0, %v1172
    %v1174 = vpop.f32.mrb[0].mxu0
    %1175 = vdwg.mxu0
    %s1176 = scalar_lea.vmem [#allocation2], 26
    %1177 = vst.msk [vmem:[%s1176] sm:$0x3] %vm110, %v1173
    %v1178 = vld [vmem:[%s0 + $0xe] sm:$0x1]
    %v1179 = vld [vmem:[%s0 + $0x1e] sm:$0x1]
    %s1180 = scalar_lea.vmem [#allocation3], 112
    %v1181 = vld [vmem:[%s1180] sm:$0xff]
    %v1184 = vrot.slane %v1179, 7
    %v1185 = vsel %vm35, %v1184, %v1178
    %v1186 = vsel %vm37, %v1185, 0
    %1188 = vmatprep.subr.mxu0 0.0
    %1189 = vmatpush1.msra.mxu0 %v1181
    %1190 = vmatprep.subr.mxu0 0.0
    %1191 = vmatpush1.msra.mxu0 0.0
    %1192 = vmatprep.subr.mxu0 0.0
    %1193 = vmatpush1.msra.mxu0 0.0
    %1194 = vmatprep.subr.mxu0 0.0
    %1195 = vmatpush1.msra.mxu0 0.0
    %1196 = vmatprep.subr.mxu0 0.0
    %1197 = vmatpush1.msra.mxu0 0.0
    %1198 = vmatprep.subr.mxu0 0.0
    %1199 = vmatpush1.msra.mxu0 0.0
    %1200 = vmatprep.subr.mxu0 0.0
    %1201 = vmatpush1.msra.mxu0 0.0
    %1202 = vmatprep.subr.mxu0 0.0
    %1203 = vmatpush1.msra.mxu0 0.0
    %1204 = vmatprep.subr.mxu0 0.0
    %1205 = vmatpush1.msra.mxu0 0.0
    %1206 = vmatprep.subr.mxu0 0.0
    %1207 = vmatpush1.msra.mxu0 0.0
    %1208 = vmatprep.subr.mxu0 0.0
    %1209 = vmatpush1.msra.mxu0 0.0
    %1210 = vmatprep.subr.mxu0 0.0
    %1211 = vmatpush1.msra.mxu0 0.0
    %1212 = vmatprep.subr.mxu0 0.0
    %1213 = vmatpush1.msra.mxu0 0.0
    %1214 = vmatprep.subr.mxu0 0.0
    %1215 = vmatpush1.msra.mxu0 0.0
    %1216 = vmatprep.subr.mxu0 0.0
    %1217 = vmatpush1.msra.mxu0 0.0
    %1218 = vmatprep.subr.mxu0 0.0
    %1219 = vmatpush1.msra.mxu0 0.0
    %1220 = vmatprep.subr.mxu0 0.0
    %1221 = vmatpush1.msra.mxu0 0.0
    %1222 = vmatprep.subr.mxu0 0.0
    %1223 = vmatpush1.msra.mxu0 0.0
    %1224 = vmatprep.subr.mxu0 0.0
    %1225 = vmatpush1.msra.mxu0 0.0
    %1226 = vmatprep.subr.mxu0 0.0
    %1227 = vmatpush1.msra.mxu0 0.0
    %1228 = vmatprep.subr.mxu0 0.0
    %1229 = vmatpush1.msra.mxu0 0.0
    %1230 = vmatprep.subr.mxu0 0.0
    %1231 = vmatpush1.msra.mxu0 0.0
    %1232 = vmatprep.subr.mxu0 0.0
    %1233 = vmatpush1.msra.mxu0 0.0
    %1234 = vmatprep.subr.mxu0 0.0
    %1235 = vmatpush1.msra.mxu0 0.0
    %1236 = vmatprep.subr.mxu0 0.0
    %1237 = vmatpush1.msra.mxu0 0.0
    %1238 = vmatprep.subr.mxu0 0.0
    %1239 = vmatpush1.msra.mxu0 0.0
    %1240 = vmatprep.subr.mxu0 0.0
    %1241 = vmatpush1.msra.mxu0 0.0
    %1242 = vmatprep.subr.mxu0 0.0
    %1243 = vmatpush1.msra.mxu0 0.0
    %1244 = vmatprep.subr.mxu0 0.0
    %1245 = vmatpush1.msra.mxu0 0.0
    %1246 = vmatprep.subr.mxu0 0.0
    %1247 = vmatpush1.msra.mxu0 0.0
    %1248 = vmatprep.subr.mxu0 0.0
    %1249 = vmatpush1.msra.mxu0 0.0
    %1250 = vmatprep.subr.mxu0 0.0
    %1251 = vmatpush1.msra.mxu0 0.0
    %1252 = vmatprep.mubr.f32.mxu0 0.0
    %1253 = vmatmul.mubr.f32.gmra.mrb[0].mxu0 %v1186
    %v1254 = vpop.f32.mrb[0].mxu0
    %v1255 = vadd.f32 0.0, %v1254
    %v1256 = vpop.f32.mrb[0].mxu0
    %1257 = vdwg.mxu0
    %s1258 = scalar_lea.vmem [#allocation2], 28
    %1259 = vst.msk [vmem:[%s1258] sm:$0x3] %vm110, %v1255
    %v1260 = vld [vmem:[%s0 + $0xf] sm:$0x1]
    %v1261 = vld [vmem:[%s0 + $0x1f] sm:$0x1]
    %s1262 = scalar_lea.vmem [#allocation3], 120
    %v1263 = vld [vmem:[%s1262] sm:$0xff]
    %v1266 = vrot.slane %v1261, 7
    %v1267 = vsel %vm35, %v1266, %v1260
    %v1268 = vsel %vm37, %v1267, 0
    %1270 = vmatprep.subr.mxu0 0.0
    %1271 = vmatpush1.msra.mxu0 %v1263
    %1272 = vmatprep.subr.mxu0 0.0
    %1273 = vmatpush1.msra.mxu0 0.0
    %1274 = vmatprep.subr.mxu0 0.0
    %1275 = vmatpush1.msra.mxu0 0.0
    %1276 = vmatprep.subr.mxu0 0.0
    %1277 = vmatpush1.msra.mxu0 0.0
    %1278 = vmatprep.subr.mxu0 0.0
    %1279 = vmatpush1.msra.mxu0 0.0
    %1280 = vmatprep.subr.mxu0 0.0
    %1281 = vmatpush1.msra.mxu0 0.0
    %1282 = vmatprep.subr.mxu0 0.0
    %1283 = vmatpush1.msra.mxu0 0.0
    %1284 = vmatprep.subr.mxu0 0.0
    %1285 = vmatpush1.msra.mxu0 0.0
    %1286 = vmatprep.subr.mxu0 0.0
    %1287 = vmatpush1.msra.mxu0 0.0
    %1288 = vmatprep.subr.mxu0 0.0
    %1289 = vmatpush1.msra.mxu0 0.0
    %1290 = vmatprep.subr.mxu0 0.0
    %1291 = vmatpush1.msra.mxu0 0.0
    %1292 = vmatprep.subr.mxu0 0.0
    %1293 = vmatpush1.msra.mxu0 0.0
    %1294 = vmatprep.subr.mxu0 0.0
    %1295 = vmatpush1.msra.mxu0 0.0
    %1296 = vmatprep.subr.mxu0 0.0
    %1297 = vmatpush1.msra.mxu0 0.0
    %1298 = vmatprep.subr.mxu0 0.0
    %1299 = vmatpush1.msra.mxu0 0.0
    %1300 = vmatprep.subr.mxu0 0.0
    %1301 = vmatpush1.msra.mxu0 0.0
    %1302 = vmatprep.subr.mxu0 0.0
    %1303 = vmatpush1.msra.mxu0 0.0
    %1304 = vmatprep.subr.mxu0 0.0
    %1305 = vmatpush1.msra.mxu0 0.0
    %1306 = vmatprep.subr.mxu0 0.0
    %1307 = vmatpush1.msra.mxu0 0.0
    %1308 = vmatprep.subr.mxu0 0.0
    %1309 = vmatpush1.msra.mxu0 0.0
    %1310 = vmatprep.subr.mxu0 0.0
    %1311 = vmatpush1.msra.mxu0 0.0
    %1312 = vmatprep.subr.mxu0 0.0
    %1313 = vmatpush1.msra.mxu0 0.0
    %1314 = vmatprep.subr.mxu0 0.0
    %1315 = vmatpush1.msra.mxu0 0.0
    %1316 = vmatprep.subr.mxu0 0.0
    %1317 = vmatpush1.msra.mxu0 0.0
    %1318 = vmatprep.subr.mxu0 0.0
    %1319 = vmatpush1.msra.mxu0 0.0
    %1320 = vmatprep.subr.mxu0 0.0
    %1321 = vmatpush1.msra.mxu0 0.0
    %1322 = vmatprep.subr.mxu0 0.0
    %1323 = vmatpush1.msra.mxu0 0.0
    %1324 = vmatprep.subr.mxu0 0.0
    %1325 = vmatpush1.msra.mxu0 0.0
    %1326 = vmatprep.subr.mxu0 0.0
    %1327 = vmatpush1.msra.mxu0 0.0
    %1328 = vmatprep.subr.mxu0 0.0
    %1329 = vmatpush1.msra.mxu0 0.0
    %1330 = vmatprep.subr.mxu0 0.0
    %1331 = vmatpush1.msra.mxu0 0.0
    %1332 = vmatprep.subr.mxu0 0.0
    %1333 = vmatpush1.msra.mxu0 0.0
    %1334 = vmatprep.mubr.f32.mxu0 0.0
    %1335 = vmatmul.mubr.f32.gmra.mrb[0].mxu0 %v1268
    %v1336 = vpop.f32.mrb[0].mxu0
    %v1337 = vadd.f32 0.0, %v1336
    %v1338 = vpop.f32.mrb[0].mxu0
    %1339 = vdwg.mxu0
    %s1340 = scalar_lea.vmem [#allocation2], 30
    %1341 = vst.msk [vmem:[%s1340] sm:$0x3] %vm110, %v1337
    %v1342 = vld [vmem:[#allocation2] sm:$0x3]
    %v1343 = vld [vmem:[#allocation2 + $0x2] sm:$0x3]
    %v1344 = vld [vmem:[#allocation2 + $0x4] sm:$0x3]
    %v1345 = vld [vmem:[#allocation2 + $0x6] sm:$0x3]
    %v1346 = vld [vmem:[#allocation2 + $0x8] sm:$0x3]
    %v1347 = vld [vmem:[#allocation2 + $0xa] sm:$0x3]
    %v1348 = vld [vmem:[#allocation2 + $0xc] sm:$0x3]
    %v1349 = vld [vmem:[#allocation2 + $0xe] sm:$0x3]
    %v1350 = vld [vmem:[#allocation2 + $0x10] sm:$0x3]
    %v1351 = vld [vmem:[#allocation2 + $0x12] sm:$0x3]
    %v1352 = vld [vmem:[#allocation2 + $0x14] sm:$0x3]
    %v1353 = vld [vmem:[#allocation2 + $0x16] sm:$0x3]
    %v1354 = vld [vmem:[#allocation2 + $0x18] sm:$0x3]
    %v1355 = vld [vmem:[#allocation2 + $0x1a] sm:$0x3]
    %v1356 = vld [vmem:[#allocation2 + $0x1c] sm:$0x3]
    %v1357 = vld [vmem:[#allocation2 + $0x1e] sm:$0x3]
    %v1358 = vld [vmem:[%s2] sm:$0xff]
    %v1359 = vld [vmem:[%s2 + $0x8] sm:$0xff]
    %vm1360 = vcmask 31744
    %v1361 = vsel %vm1360, %v1358, -inf
    %1362 = vmax.xlane.f32.xlu0 %v1361
    %v1363 = vpop.xlane.xlu0 %1362
    %v1364 = vsel %vm1360, %v1359, -inf
    %1365 = vmax.xlane.f32.xlu0 %v1364
    %v1366 = vpop.xlane.xlu0 %1365
    %v1367 = vsub.f32 %v1358, %v1363
    %v1368 = vsub.f32 %v1359, %v1366
    %v1369 = vmul.f32 %v1367, 1.442695
    %v1370 = vpow.pop %v1369
    %v1371 = vmul.f32 %v1368, 1.442695
    %v1372 = vpow.pop %v1371
    %v1373 = vsel %vm1360, %v1370, 0.0
    %1374 = vadd.xlane.f32.xlu0 %v1373
    %v1375 = vpop.xlane.xlu0 %1374
    %v1376 = vsel %vm1360, %v1372, 0.0
    %1377 = vadd.xlane.f32.xlu0 %v1376
    %v1378 = vpop.xlane.xlu0 %1377
    %v1379 = vrcp.pop %v1375
    %v1380 = vmul.f32 %v1370, %v1379
    %v1381 = vrcp.pop %v1378
    %v1382 = vmul.f32 %v1372, %v1381
    %1384 = vset.pattern.permute.xlu0 0
    %1385 = vperm.xlu0 %1384, %v1380
    %v1386 = vpop.permute.xlu0 %1385
    %1389 = vset.pattern.permute.xlu0 0
    %1390 = vperm.xlu0 %1389, %v1382
    %v1391 = vpop.permute.xlu0 %1390
    %1393 = vset.pattern.permute.xlu0 1
    %1394 = vperm.xlu0 %1393, %v1380
    %v1395 = vpop.permute.xlu0 %1394
    %1397 = vset.pattern.permute.xlu0 1
    %1398 = vperm.xlu0 %1397, %v1382
    %v1399 = vpop.permute.xlu0 %1398
    %1401 = vset.pattern.permute.xlu0 2
    %1402 = vperm.xlu0 %1401, %v1380
    %v1403 = vpop.permute.xlu0 %1402
    %1405 = vset.pattern.permute.xlu0 2
    %1406 = vperm.xlu0 %1405, %v1382
    %v1407 = vpop.permute.xlu0 %1406
    %1409 = vset.pattern.permute.xlu0 3
    %1410 = vperm.xlu0 %1409, %v1380
    %v1411 = vpop.permute.xlu0 %1410
    %1413 = vset.pattern.permute.xlu0 3
    %1414 = vperm.xlu0 %1413, %v1382
    %v1415 = vpop.permute.xlu0 %1414
    %vm1417 = vcmask 130048
    %v1418 = vsel %vm1417, %v1386, %v1395
    %v1419 = vsel %vm1417, %v1391, %v1399
    %vm1420 = vcmask 261120
    %v1421 = vsel %vm1420, %v1418, %v1403
    %v1422 = vsel %vm1420, %v1419, %v1407
    %vm1423 = vcmask 392192
    %v1424 = vsel %vm1423, %v1421, %v1411
    %v1425 = vsel %vm1423, %v1422, %v1415
    %v1428 = vcombine.high %v1424, %v1424
    %v1430 = vunpack.c.l.s4 1966171168
    %v1431 = vunpack.c.0.s8 %v1430
    %v1432 = vlaneseq
    %v1433 = vshrl.u32 %v1432, 7
    %v1434 = vsub.s32 %v1431, %v1433
    %v1435 = vrot.slane %v1424, %v1434
    %v1437 = vunpack.c.l.s4 1966171168
    %v1438 = vunpack.c.0.s8 %v1437
    %v1439 = vlaneseq
    %v1440 = vshrl.u32 %v1439, 7
    %v1441 = vsub.s32 %v1438, %v1440
    %v1442 = vrot.slane %v1428, %v1441
    %v1443 = vcombine.high %v1435, %v1435
    %v1444 = vcombine.high %v1442, %v1442
    %v1446 = vunpack.c.l.s4 1966171168
    %v1447 = vunpack.c.0.s8 %v1446
    %v1448 = vlaneseq
    %v1449 = vshrl.u32 %v1448, 7
    %v1450 = vsub.s32 %v1447, %v1449
    %v1451 = vrot.slane %v1435, %v1450
    %v1453 = vunpack.c.l.s4 1966171168
    %v1454 = vunpack.c.0.s8 %v1453
    %v1455 = vlaneseq
    %v1456 = vshrl.u32 %v1455, 7
    %v1457 = vsub.s32 %v1454, %v1456
    %v1458 = vrot.slane %v1442, %v1457
    %v1460 = vunpack.c.l.s4 1966171168
    %v1461 = vunpack.c.0.s8 %v1460
    %v1462 = vlaneseq
    %v1463 = vshrl.u32 %v1462, 7
    %v1464 = vsub.s32 %v1461, %v1463
    %v1465 = vrot.slane %v1443, %v1464
    %v1467 = vunpack.c.l.s4 1966171168
    %v1468 = vunpack.c.0.s8 %v1467
    %v1469 = vlaneseq
    %v1470 = vshrl.u32 %v1469, 7
    %v1471 = vsub.s32 %v1468, %v1470
    %v1472 = vrot.slane %v1444, %v1471
    %v1473 = vcombine.high %v1451, %v1451
    %v1474 = vcombine.high %v1458, %v1458
    %v1475 = vcombine.high %v1465, %v1465
    %v1476 = vcombine.high %v1472, %v1472
    %v1477 = vcombine.high %v1425, %v1425
    %v1479 = vunpack.c.l.s4 1966171168
    %v1480 = vunpack.c.0.s8 %v1479
    %v1481 = vlaneseq
    %v1482 = vshrl.u32 %v1481, 7
    %v1483 = vsub.s32 %v1480, %v1482
    %v1484 = vrot.slane %v1425, %v1483
    %v1486 = vunpack.c.l.s4 1966171168
    %v1487 = vunpack.c.0.s8 %v1486
    %v1488 = vlaneseq
    %v1489 = vshrl.u32 %v1488, 7
    %v1490 = vsub.s32 %v1487, %v1489
    %v1491 = vrot.slane %v1477, %v1490
    %v1492 = vcombine.high %v1484, %v1484
    %v1493 = vcombine.high %v1491, %v1491
    %v1495 = vunpack.c.l.s4 1966171168
    %v1496 = vunpack.c.0.s8 %v1495
    %v1497 = vlaneseq
    %v1498 = vshrl.u32 %v1497, 7
    %v1499 = vsub.s32 %v1496, %v1498
    %v1500 = vrot.slane %v1484, %v1499
    %v1502 = vunpack.c.l.s4 1966171168
    %v1503 = vunpack.c.0.s8 %v1502
    %v1504 = vlaneseq
    %v1505 = vshrl.u32 %v1504, 7
    %v1506 = vsub.s32 %v1503, %v1505
    %v1507 = vrot.slane %v1491, %v1506
    %v1509 = vunpack.c.l.s4 1966171168
    %v1510 = vunpack.c.0.s8 %v1509
    %v1511 = vlaneseq
    %v1512 = vshrl.u32 %v1511, 7
    %v1513 = vsub.s32 %v1510, %v1512
    %v1514 = vrot.slane %v1492, %v1513
    %v1516 = vunpack.c.l.s4 1966171168
    %v1517 = vunpack.c.0.s8 %v1516
    %v1518 = vlaneseq
    %v1519 = vshrl.u32 %v1518, 7
    %v1520 = vsub.s32 %v1517, %v1519
    %v1521 = vrot.slane %v1493, %v1520
    %v1522 = vcombine.high %v1500, %v1500
    %v1523 = vcombine.high %v1507, %v1507
    %v1524 = vcombine.high %v1514, %v1514
    %v1525 = vcombine.high %v1521, %v1521
    %v1526 = vlaneseq
    %v1527 = vshrl.u32 %v1526, 7
    %v1528 = vsub.s32 0, %v1527
    %v1529 = vrot.slane %v1451, %v1528
    %v1530 = vlaneseq
    %v1531 = vshrl.u32 %v1530, 7
    %v1532 = vsub.s32 0, %v1531
    %v1533 = vrot.slane %v1465, %v1532
    %v1534 = vlaneseq
    %v1535 = vshrl.u32 %v1534, 7
    %v1536 = vsub.s32 0, %v1535
    %v1537 = vrot.slane %v1473, %v1536
    %v1538 = vlaneseq
    %v1539 = vshrl.u32 %v1538, 7
    %v1540 = vsub.s32 0, %v1539
    %v1541 = vrot.slane %v1475, %v1540
    %v1542 = vlaneseq
    %v1543 = vshrl.u32 %v1542, 7
    %v1544 = vsub.s32 0, %v1543
    %v1545 = vrot.slane %v1458, %v1544
    %v1546 = vlaneseq
    %v1547 = vshrl.u32 %v1546, 7
    %v1548 = vsub.s32 0, %v1547
    %v1549 = vrot.slane %v1472, %v1548
    %v1550 = vlaneseq
    %v1551 = vshrl.u32 %v1550, 7
    %v1552 = vsub.s32 0, %v1551
    %v1553 = vrot.slane %v1474, %v1552
    %v1554 = vlaneseq
    %v1555 = vshrl.u32 %v1554, 7
    %v1556 = vsub.s32 0, %v1555
    %v1557 = vrot.slane %v1476, %v1556
    %v1558 = vlaneseq
    %v1559 = vshrl.u32 %v1558, 7
    %v1560 = vsub.s32 0, %v1559
    %v1561 = vrot.slane %v1500, %v1560
    %v1562 = vlaneseq
    %v1563 = vshrl.u32 %v1562, 7
    %v1564 = vsub.s32 0, %v1563
    %v1565 = vrot.slane %v1514, %v1564
    %v1566 = vlaneseq
    %v1567 = vshrl.u32 %v1566, 7
    %v1568 = vsub.s32 0, %v1567
    %v1569 = vrot.slane %v1522, %v1568
    %v1570 = vlaneseq
    %v1571 = vshrl.u32 %v1570, 7
    %v1572 = vsub.s32 0, %v1571
    %v1573 = vrot.slane %v1524, %v1572
    %v1574 = vlaneseq
    %v1575 = vshrl.u32 %v1574, 7
    %v1576 = vsub.s32 0, %v1575
    %v1577 = vrot.slane %v1507, %v1576
    %v1578 = vlaneseq
    %v1579 = vshrl.u32 %v1578, 7
    %v1580 = vsub.s32 0, %v1579
    %v1581 = vrot.slane %v1521, %v1580
    %v1582 = vlaneseq
    %v1583 = vshrl.u32 %v1582, 7
    %v1584 = vsub.s32 0, %v1583
    %v1585 = vrot.slane %v1523, %v1584
    %v1586 = vlaneseq
    %v1587 = vshrl.u32 %v1586, 7
    %v1588 = vsub.s32 0, %v1587
    %v1589 = vrot.slane %v1525, %v1588
    %v1606 = vmul.f32 %v1529, %v1342
    %v1607 = vmul.f32 %v1533, %v1343
    %v1608 = vmul.f32 %v1537, %v1344
    %v1609 = vmul.f32 %v1541, %v1345
    %v1610 = vmul.f32 %v1545, %v1346
    %v1611 = vmul.f32 %v1549, %v1347
    %v1612 = vmul.f32 %v1553, %v1348
    %v1613 = vmul.f32 %v1557, %v1349
    %v1614 = vmul.f32 %v1561, %v1350
    %v1615 = vmul.f32 %v1565, %v1351
    %v1616 = vmul.f32 %v1569, %v1352
    %v1617 = vmul.f32 %v1573, %v1353
    %v1618 = vmul.f32 %v1577, %v1354
    %v1619 = vmul.f32 %v1581, %v1355
    %v1620 = vmul.f32 %v1585, %v1356
    %v1621 = vmul.f32 %v1589, %v1357
    %v1622 = vsel %vm110, %v1606, 0.0
    %v1623 = vsel %vm110, %v1607, 0.0
    %v1624 = vadd.f32 %v1622, %v1623
    %v1625 = vsel %vm110, %v1608, 0.0
    %v1626 = vadd.f32 %v1624, %v1625
    %v1627 = vsel %vm110, %v1609, 0.0
    %v1628 = vadd.f32 %v1626, %v1627
    %v1629 = vsel %vm110, %v1610, 0.0
    %v1630 = vadd.f32 %v1628, %v1629
    %v1631 = vsel %vm110, %v1611, 0.0
    %v1632 = vadd.f32 %v1630, %v1631
    %v1633 = vsel %vm110, %v1612, 0.0
    %v1634 = vadd.f32 %v1632, %v1633
    %v1635 = vsel %vm110, %v1613, 0.0
    %v1636 = vadd.f32 %v1634, %v1635
    %v1637 = vsel %vm110, %v1614, 0.0
    %v1638 = vadd.f32 %v1636, %v1637
    %v1639 = vsel %vm110, %v1615, 0.0
    %v1640 = vadd.f32 %v1638, %v1639
    %v1641 = vsel %vm110, %v1616, 0.0
    %v1642 = vadd.f32 %v1640, %v1641
    %v1643 = vsel %vm110, %v1617, 0.0
    %v1644 = vadd.f32 %v1642, %v1643
    %v1645 = vsel %vm110, %v1618, 0.0
    %v1646 = vadd.f32 %v1644, %v1645
    %v1647 = vsel %vm110, %v1619, 0.0
    %v1648 = vadd.f32 %v1646, %v1647
    %v1649 = vsel %vm110, %v1620, 0.0
    %v1650 = vadd.f32 %v1648, %v1649
    %v1651 = vsel %vm110, %v1621, 0.0
    %v1652 = vadd.f32 %v1650, %v1651
    %v1653 = vmul.f32 %v1652, %v1652
    %vm1654 = vcmask 123904
    %v1655 = vsel %vm1654, %v1653, 0.0
    %1656 = vadd.xlane.f32.xlu0 %v1655
    %v1657 = vpop.xlane.xlu0 %1656
    %1659 = vrot.lane.b32.xlu0 %v1653, 112
    %v1660 = vpop.permute.xlu0 %1659
    %v1662 = vsel %vm1654, %v1660, 0.0
    %1663 = vadd.xlane.f32.xlu0 %v1662
    %v1664 = vpop.xlane.xlu0 %1663
    %1665 = vrot.lane.b32.xlu0 %v1653, 96
    %v1666 = vpop.permute.xlu0 %1665
    %v1668 = vsel %vm1654, %v1666, 0.0
    %1669 = vadd.xlane.f32.xlu0 %v1668
    %v1670 = vpop.xlane.xlu0 %1669
    %1671 = vrot.lane.b32.xlu0 %v1653, 80
    %v1672 = vpop.permute.xlu0 %1671
    %v1674 = vsel %vm1654, %v1672, 0.0
    %1675 = vadd.xlane.f32.xlu0 %v1674
    %v1676 = vpop.xlane.xlu0 %1675
    %vm1677 = vcmask 7168
    %v1678 = vsel %vm1677, %v1657, %v1664
    %vm1679 = vcmask 15360
    %v1680 = vsel %vm1679, %v1678, %v1670
    %vm1681 = vcmask 23552
    %v1682 = vsel %vm1681, %v1680, %v1676
    %v1683 = vadd.f32 %v1682, 1e-09
    %v1684 = vrsqrt.pop %v1683
    %v1685 = vmul.f32 %v1682, %v1684
    %v1686 = vadd.f32 %v1682, 1.0
    %v1687 = vrcp.pop %v1686
    %v1688 = vmul.f32 %v1685, %v1687
    %1690 = vset.pattern.permute.xlu0 0
    %1691 = vperm.xlu0 %1690, %v1688
    %v1692 = vpop.permute.xlu0 %1691
    %1694 = vset.pattern.permute.xlu0 1
    %1695 = vperm.xlu0 %1694, %v1688
    %v1696 = vpop.permute.xlu0 %1695
    %1698 = vset.pattern.permute.xlu0 2
    %1699 = vperm.xlu0 %1698, %v1688
    %v1700 = vpop.permute.xlu0 %1699
    %1702 = vset.pattern.permute.xlu0 3
    %1703 = vperm.xlu0 %1702, %v1688
    %v1704 = vpop.permute.xlu0 %1703
    %v1706 = vsel %vm1417, %v1692, %v1696
    %v1707 = vsel %vm1420, %v1706, %v1700
    %v1708 = vsel %vm1423, %v1707, %v1704
    %v1709 = vmul.f32 %v1652, %v1708
    %v1712 = vcombine.high %v1358, %v1358
    %v1714 = vunpack.c.l.s4 1966171168
    %v1715 = vunpack.c.0.s8 %v1714
    %v1716 = vlaneseq
    %v1717 = vshrl.u32 %v1716, 7
    %v1718 = vsub.s32 %v1715, %v1717
    %v1719 = vrot.slane %v1358, %v1718
    %v1721 = vunpack.c.l.s4 1966171168
    %v1722 = vunpack.c.0.s8 %v1721
    %v1723 = vlaneseq
    %v1724 = vshrl.u32 %v1723, 7
    %v1725 = vsub.s32 %v1722, %v1724
    %v1726 = vrot.slane %v1712, %v1725
    %v1727 = vcombine.high %v1719, %v1719
    %v1728 = vcombine.high %v1726, %v1726
    %v1730 = vunpack.c.l.s4 1966171168
    %v1731 = vunpack.c.0.s8 %v1730
    %v1732 = vlaneseq
    %v1733 = vshrl.u32 %v1732, 7
    %v1734 = vsub.s32 %v1731, %v1733
    %v1735 = vrot.slane %v1719, %v1734
    %v1737 = vunpack.c.l.s4 1966171168
    %v1738 = vunpack.c.0.s8 %v1737
    %v1739 = vlaneseq
    %v1740 = vshrl.u32 %v1739, 7
    %v1741 = vsub.s32 %v1738, %v1740
    %v1742 = vrot.slane %v1726, %v1741
    %v1744 = vunpack.c.l.s4 1966171168
    %v1745 = vunpack.c.0.s8 %v1744
    %v1746 = vlaneseq
    %v1747 = vshrl.u32 %v1746, 7
    %v1748 = vsub.s32 %v1745, %v1747
    %v1749 = vrot.slane %v1727, %v1748
    %v1751 = vunpack.c.l.s4 1966171168
    %v1752 = vunpack.c.0.s8 %v1751
    %v1753 = vlaneseq
    %v1754 = vshrl.u32 %v1753, 7
    %v1755 = vsub.s32 %v1752, %v1754
    %v1756 = vrot.slane %v1728, %v1755
    %v1757 = vcombine.high %v1735, %v1735
    %v1758 = vcombine.high %v1742, %v1742
    %v1759 = vcombine.high %v1749, %v1749
    %v1760 = vcombine.high %v1756, %v1756
    %v1761 = vcombine.high %v1359, %v1359
    %v1763 = vunpack.c.l.s4 1966171168
    %v1764 = vunpack.c.0.s8 %v1763
    %v1765 = vlaneseq
    %v1766 = vshrl.u32 %v1765, 7
    %v1767 = vsub.s32 %v1764, %v1766
    %v1768 = vrot.slane %v1359, %v1767
    %v1770 = vunpack.c.l.s4 1966171168
    %v1771 = vunpack.c.0.s8 %v1770
    %v1772 = vlaneseq
    %v1773 = vshrl.u32 %v1772, 7
    %v1774 = vsub.s32 %v1771, %v1773
    %v1775 = vrot.slane %v1761, %v1774
    %v1776 = vcombine.high %v1768, %v1768
    %v1777 = vcombine.high %v1775, %v1775
    %v1779 = vunpack.c.l.s4 1966171168
    %v1780 = vunpack.c.0.s8 %v1779
    %v1781 = vlaneseq
    %v1782 = vshrl.u32 %v1781, 7
    %v1783 = vsub.s32 %v1780, %v1782
    %v1784 = vrot.slane %v1768, %v1783
    %v1786 = vunpack.c.l.s4 1966171168
    %v1787 = vunpack.c.0.s8 %v1786
    %v1788 = vlaneseq
    %v1789 = vshrl.u32 %v1788, 7
    %v1790 = vsub.s32 %v1787, %v1789
    %v1791 = vrot.slane %v1775, %v1790
    %v1793 = vunpack.c.l.s4 1966171168
    %v1794 = vunpack.c.0.s8 %v1793
    %v1795 = vlaneseq
    %v1796 = vshrl.u32 %v1795, 7
    %v1797 = vsub.s32 %v1794, %v1796
    %v1798 = vrot.slane %v1776, %v1797
    %v1800 = vunpack.c.l.s4 1966171168
    %v1801 = vunpack.c.0.s8 %v1800
    %v1802 = vlaneseq
    %v1803 = vshrl.u32 %v1802, 7
    %v1804 = vsub.s32 %v1801, %v1803
    %v1805 = vrot.slane %v1777, %v1804
    %v1806 = vcombine.high %v1784, %v1784
    %v1807 = vcombine.high %v1791, %v1791
    %v1808 = vcombine.high %v1798, %v1798
    %v1809 = vcombine.high %v1805, %v1805
    %v1810 = vlaneseq
    %v1811 = vshrl.u32 %v1810, 7
    %v1812 = vsub.s32 0, %v1811
    %v1813 = vrot.slane %v1735, %v1812
    %v1814 = vlaneseq
    %v1815 = vshrl.u32 %v1814, 7
    %v1816 = vsub.s32 0, %v1815
    %v1817 = vrot.slane %v1749, %v1816
    %v1818 = vlaneseq
    %v1819 = vshrl.u32 %v1818, 7
    %v1820 = vsub.s32 0, %v1819
    %v1821 = vrot.slane %v1757, %v1820
    %v1822 = vlaneseq
    %v1823 = vshrl.u32 %v1822, 7
    %v1824 = vsub.s32 0, %v1823
    %v1825 = vrot.slane %v1759, %v1824
    %v1826 = vlaneseq
    %v1827 = vshrl.u32 %v1826, 7
    %v1828 = vsub.s32 0, %v1827
    %v1829 = vrot.slane %v1742, %v1828
    %v1830 = vlaneseq
    %v1831 = vshrl.u32 %v1830, 7
    %v1832 = vsub.s32 0, %v1831
    %v1833 = vrot.slane %v1756, %v1832
    %v1834 = vlaneseq
    %v1835 = vshrl.u32 %v1834, 7
    %v1836 = vsub.s32 0, %v1835
    %v1837 = vrot.slane %v1758, %v1836
    %v1838 = vlaneseq
    %v1839 = vshrl.u32 %v1838, 7
    %v1840 = vsub.s32 0, %v1839
    %v1841 = vrot.slane %v1760, %v1840
    %v1842 = vlaneseq
    %v1843 = vshrl.u32 %v1842, 7
    %v1844 = vsub.s32 0, %v1843
    %v1845 = vrot.slane %v1784, %v1844
    %v1846 = vlaneseq
    %v1847 = vshrl.u32 %v1846, 7
    %v1848 = vsub.s32 0, %v1847
    %v1849 = vrot.slane %v1798, %v1848
    %v1850 = vlaneseq
    %v1851 = vshrl.u32 %v1850, 7
    %v1852 = vsub.s32 0, %v1851
    %v1853 = vrot.slane %v1806, %v1852
    %v1854 = vlaneseq
    %v1855 = vshrl.u32 %v1854, 7
    %v1856 = vsub.s32 0, %v1855
    %v1857 = vrot.slane %v1808, %v1856
    %v1858 = vlaneseq
    %v1859 = vshrl.u32 %v1858, 7
    %v1860 = vsub.s32 0, %v1859
    %v1861 = vrot.slane %v1791, %v1860
    %v1862 = vlaneseq
    %v1863 = vshrl.u32 %v1862, 7
    %v1864 = vsub.s32 0, %v1863
    %v1865 = vrot.slane %v1805, %v1864
    %v1866 = vlaneseq
    %v1867 = vshrl.u32 %v1866, 7
    %v1868 = vsub.s32 0, %v1867
    %v1869 = vrot.slane %v1807, %v1868
    %v1870 = vlaneseq
    %v1871 = vshrl.u32 %v1870, 7
    %v1872 = vsub.s32 0, %v1871
    %v1873 = vrot.slane %v1809, %v1872
    %v1890 = vmul.f32 %v1342, %v1709
    %v1891 = vmul.f32 %v1343, %v1709
    %v1892 = vmul.f32 %v1344, %v1709
    %v1893 = vmul.f32 %v1345, %v1709
    %v1894 = vmul.f32 %v1346, %v1709
    %v1895 = vmul.f32 %v1347, %v1709
    %v1896 = vmul.f32 %v1348, %v1709
    %v1897 = vmul.f32 %v1349, %v1709
    %v1898 = vmul.f32 %v1350, %v1709
    %v1899 = vmul.f32 %v1351, %v1709
    %v1900 = vmul.f32 %v1352, %v1709
    %v1901 = vmul.f32 %v1353, %v1709
    %v1902 = vmul.f32 %v1354, %v1709
    %v1903 = vmul.f32 %v1355, %v1709
    %v1904 = vmul.f32 %v1356, %v1709
    %v1905 = vmul.f32 %v1357, %v1709
    %v1906 = vsel %vm1654, %v1890, 0.0
    %1907 = vadd.xlane.f32.xlu0 %v1906
    %v1908 = vpop.xlane.xlu0 %1907
    %v1909 = vsel %vm1654, %v1891, 0.0
    %1910 = vadd.xlane.f32.xlu0 %v1909
    %v1911 = vpop.xlane.xlu0 %1910
    %v1912 = vsel %vm1654, %v1892, 0.0
    %1913 = vadd.xlane.f32.xlu0 %v1912
    %v1914 = vpop.xlane.xlu0 %1913
    %v1915 = vsel %vm1654, %v1893, 0.0
    %1916 = vadd.xlane.f32.xlu0 %v1915
    %v1917 = vpop.xlane.xlu0 %1916
    %v1918 = vsel %vm1654, %v1894, 0.0
    %1919 = vadd.xlane.f32.xlu0 %v1918
    %v1920 = vpop.xlane.xlu0 %1919
    %v1921 = vsel %vm1654, %v1895, 0.0
    %1922 = vadd.xlane.f32.xlu0 %v1921
    %v1923 = vpop.xlane.xlu0 %1922
    %v1924 = vsel %vm1654, %v1896, 0.0
    %1925 = vadd.xlane.f32.xlu0 %v1924
    %v1926 = vpop.xlane.xlu0 %1925
    %v1927 = vsel %vm1654, %v1897, 0.0
    %1928 = vadd.xlane.f32.xlu0 %v1927
    %v1929 = vpop.xlane.xlu0 %1928
    %v1930 = vsel %vm1654, %v1898, 0.0
    %1931 = vadd.xlane.f32.xlu0 %v1930
    %v1932 = vpop.xlane.xlu0 %1931
    %v1933 = vsel %vm1654, %v1899, 0.0
    %1934 = vadd.xlane.f32.xlu0 %v1933
    %v1935 = vpop.xlane.xlu0 %1934
    %v1936 = vsel %vm1654, %v1900, 0.0
    %1937 = vadd.xlane.f32.xlu0 %v1936
    %v1938 = vpop.xlane.xlu0 %1937
    %v1939 = vsel %vm1654, %v1901, 0.0
    %1940 = vadd.xlane.f32.xlu0 %v1939
    %v1941 = vpop.xlane.xlu0 %1940
    %v1942 = vsel %vm1654, %v1902, 0.0
    %1943 = vadd.xlane.f32.xlu0 %v1942
    %v1944 = vpop.xlane.xlu0 %1943
    %v1945 = vsel %vm1654, %v1903, 0.0
    %1946 = vadd.xlane.f32.xlu0 %v1945
    %v1947 = vpop.xlane.xlu0 %1946
    %v1948 = vsel %vm1654, %v1904, 0.0
    %1949 = vadd.xlane.f32.xlu0 %v1948
    %v1950 = vpop.xlane.xlu0 %1949
    %v1951 = vsel %vm1654, %v1905, 0.0
    %1952 = vadd.xlane.f32.xlu0 %v1951
    %v1953 = vpop.xlane.xlu0 %1952
    %1970 = vrot.lane.b32.xlu0 %v1890, 112
    %v1971 = vpop.permute.xlu0 %1970
    %1972 = vrot.lane.b32.xlu0 %v1891, 112
    %v1973 = vpop.permute.xlu0 %1972
    %1974 = vrot.lane.b32.xlu0 %v1892, 112
    %v1975 = vpop.permute.xlu0 %1974
    %1976 = vrot.lane.b32.xlu0 %v1893, 112
    %v1977 = vpop.permute.xlu0 %1976
    %1978 = vrot.lane.b32.xlu0 %v1894, 112
    %v1979 = vpop.permute.xlu0 %1978
    %1980 = vrot.lane.b32.xlu0 %v1895, 112
    %v1981 = vpop.permute.xlu0 %1980
    %1982 = vrot.lane.b32.xlu0 %v1896, 112
    %v1983 = vpop.permute.xlu0 %1982
    %1984 = vrot.lane.b32.xlu0 %v1897, 112
    %v1985 = vpop.permute.xlu0 %1984
    %1986 = vrot.lane.b32.xlu0 %v1898, 112
    %v1987 = vpop.permute.xlu0 %1986
    %1988 = vrot.lane.b32.xlu0 %v1899, 112
    %v1989 = vpop.permute.xlu0 %1988
    %1990 = vrot.lane.b32.xlu0 %v1900, 112
    %v1991 = vpop.permute.xlu0 %1990
    %1992 = vrot.lane.b32.xlu0 %v1901, 112
    %v1993 = vpop.permute.xlu0 %1992
    %1994 = vrot.lane.b32.xlu0 %v1902, 112
    %v1995 = vpop.permute.xlu0 %1994
    %1996 = vrot.lane.b32.xlu0 %v1903, 112
    %v1997 = vpop.permute.xlu0 %1996
    %1998 = vrot.lane.b32.xlu0 %v1904, 112
    %v1999 = vpop.permute.xlu0 %1998
    %2000 = vrot.lane.b32.xlu0 %v1905, 112
    %v2001 = vpop.permute.xlu0 %2000
    %v2018 = vsel %vm1654, %v1971, 0.0
    %2019 = vadd.xlane.f32.xlu0 %v2018
    %v2020 = vpop.xlane.xlu0 %2019
    %v2021 = vsel %vm1654, %v1973, 0.0
    %2022 = vadd.xlane.f32.xlu0 %v2021
    %v2023 = vpop.xlane.xlu0 %2022
    %v2024 = vsel %vm1654, %v1975, 0.0
    %2025 = vadd.xlane.f32.xlu0 %v2024
    %v2026 = vpop.xlane.xlu0 %2025
    %v2027 = vsel %vm1654, %v1977, 0.0
    %2028 = vadd.xlane.f32.xlu0 %v2027
    %v2029 = vpop.xlane.xlu0 %2028
    %v2030 = vsel %vm1654, %v1979, 0.0
    %2031 = vadd.xlane.f32.xlu0 %v2030
    %v2032 = vpop.xlane.xlu0 %2031
    %v2033 = vsel %vm1654, %v1981, 0.0
    %2034 = vadd.xlane.f32.xlu0 %v2033
    %v2035 = vpop.xlane.xlu0 %2034
    %v2036 = vsel %vm1654, %v1983, 0.0
    %2037 = vadd.xlane.f32.xlu0 %v2036
    %v2038 = vpop.xlane.xlu0 %2037
    %v2039 = vsel %vm1654, %v1985, 0.0
    %2040 = vadd.xlane.f32.xlu0 %v2039
    %v2041 = vpop.xlane.xlu0 %2040
    %v2042 = vsel %vm1654, %v1987, 0.0
    %2043 = vadd.xlane.f32.xlu0 %v2042
    %v2044 = vpop.xlane.xlu0 %2043
    %v2045 = vsel %vm1654, %v1989, 0.0
    %2046 = vadd.xlane.f32.xlu0 %v2045
    %v2047 = vpop.xlane.xlu0 %2046
    %v2048 = vsel %vm1654, %v1991, 0.0
    %2049 = vadd.xlane.f32.xlu0 %v2048
    %v2050 = vpop.xlane.xlu0 %2049
    %v2051 = vsel %vm1654, %v1993, 0.0
    %2052 = vadd.xlane.f32.xlu0 %v2051
    %v2053 = vpop.xlane.xlu0 %2052
    %v2054 = vsel %vm1654, %v1995, 0.0
    %2055 = vadd.xlane.f32.xlu0 %v2054
    %v2056 = vpop.xlane.xlu0 %2055
    %v2057 = vsel %vm1654, %v1997, 0.0
    %2058 = vadd.xlane.f32.xlu0 %v2057
    %v2059 = vpop.xlane.xlu0 %2058
    %v2060 = vsel %vm1654, %v1999, 0.0
    %2061 = vadd.xlane.f32.xlu0 %v2060
    %v2062 = vpop.xlane.xlu0 %2061
    %v2063 = vsel %vm1654, %v2001, 0.0
    %2064 = vadd.xlane.f32.xlu0 %v2063
    %v2065 = vpop.xlane.xlu0 %2064
    %2066 = vrot.lane.b32.xlu0 %v1890, 96
    %v2067 = vpop.permute.xlu0 %2066
    %2068 = vrot.lane.b32.xlu0 %v1891, 96
    %v2069 = vpop.permute.xlu0 %2068
    %2070 = vrot.lane.b32.xlu0 %v1892, 96
    %v2071 = vpop.permute.xlu0 %2070
    %2072 = vrot.lane.b32.xlu0 %v1893, 96
    %v2073 = vpop.permute.xlu0 %2072
    %2074 = vrot.lane.b32.xlu0 %v1894, 96
    %v2075 = vpop.permute.xlu0 %2074
    %2076 = vrot.lane.b32.xlu0 %v1895, 96
    %v2077 = vpop.permute.xlu0 %2076
    %2078 = vrot.lane.b32.xlu0 %v1896, 96
    %v2079 = vpop.permute.xlu0 %2078
    %2080 = vrot.lane.b32.xlu0 %v1897, 96
    %v2081 = vpop.permute.xlu0 %2080
    %2082 = vrot.lane.b32.xlu0 %v1898, 96
    %v2083 = vpop.permute.xlu0 %2082
    %2084 = vrot.lane.b32.xlu0 %v1899, 96
    %v2085 = vpop.permute.xlu0 %2084
    %2086 = vrot.lane.b32.xlu0 %v1900, 96
    %v2087 = vpop.permute.xlu0 %2086
    %2088 = vrot.lane.b32.xlu0 %v1901, 96
    %v2089 = vpop.permute.xlu0 %2088
    %2090 = vrot.lane.b32.xlu0 %v1902, 96
    %v2091 = vpop.permute.xlu0 %2090
    %2092 = vrot.lane.b32.xlu0 %v1903, 96
    %v2093 = vpop.permute.xlu0 %2092
    %2094 = vrot.lane.b32.xlu0 %v1904, 96
    %v2095 = vpop.permute.xlu0 %2094
    %2096 = vrot.lane.b32.xlu0 %v1905, 96
    %v2097 = vpop.permute.xlu0 %2096
    %v2114 = vsel %vm1654, %v2067, 0.0
    %2115 = vadd.xlane.f32.xlu0 %v2114
    %v2116 = vpop.xlane.xlu0 %2115
    %v2117 = vsel %vm1654, %v2069, 0.0
    %2118 = vadd.xlane.f32.xlu0 %v2117
    %v2119 = vpop.xlane.xlu0 %2118
    %v2120 = vsel %vm1654, %v2071, 0.0
    %2121 = vadd.xlane.f32.xlu0 %v2120
    %v2122 = vpop.xlane.xlu0 %2121
    %v2123 = vsel %vm1654, %v2073, 0.0
    %2124 = vadd.xlane.f32.xlu0 %v2123
    %v2125 = vpop.xlane.xlu0 %2124
    %v2126 = vsel %vm1654, %v2075, 0.0
    %2127 = vadd.xlane.f32.xlu0 %v2126
    %v2128 = vpop.xlane.xlu0 %2127
    %v2129 = vsel %vm1654, %v2077, 0.0
    %2130 = vadd.xlane.f32.xlu0 %v2129
    %v2131 = vpop.xlane.xlu0 %2130
    %v2132 = vsel %vm1654, %v2079, 0.0
    %2133 = vadd.xlane.f32.xlu0 %v2132
    %v2134 = vpop.xlane.xlu0 %2133
    %v2135 = vsel %vm1654, %v2081, 0.0
    %2136 = vadd.xlane.f32.xlu0 %v2135
    %v2137 = vpop.xlane.xlu0 %2136
    %v2138 = vsel %vm1654, %v2083, 0.0
    %2139 = vadd.xlane.f32.xlu0 %v2138
    %v2140 = vpop.xlane.xlu0 %2139
    %v2141 = vsel %vm1654, %v2085, 0.0
    %2142 = vadd.xlane.f32.xlu0 %v2141
    %v2143 = vpop.xlane.xlu0 %2142
    %v2144 = vsel %vm1654, %v2087, 0.0
    %2145 = vadd.xlane.f32.xlu0 %v2144
    %v2146 = vpop.xlane.xlu0 %2145
    %v2147 = vsel %vm1654, %v2089, 0.0
    %2148 = vadd.xlane.f32.xlu0 %v2147
    %v2149 = vpop.xlane.xlu0 %2148
    %v2150 = vsel %vm1654, %v2091, 0.0
    %2151 = vadd.xlane.f32.xlu0 %v2150
    %v2152 = vpop.xlane.xlu0 %2151
    %v2153 = vsel %vm1654, %v2093, 0.0
    %2154 = vadd.xlane.f32.xlu0 %v2153
    %v2155 = vpop.xlane.xlu0 %2154
    %v2156 = vsel %vm1654, %v2095, 0.0
    %2157 = vadd.xlane.f32.xlu0 %v2156
    %v2158 = vpop.xlane.xlu0 %2157
    %v2159 = vsel %vm1654, %v2097, 0.0
    %2160 = vadd.xlane.f32.xlu0 %v2159
    %v2161 = vpop.xlane.xlu0 %2160
    %2162 = vrot.lane.b32.xlu0 %v1890, 80
    %v2163 = vpop.permute.xlu0 %2162
    %2164 = vrot.lane.b32.xlu0 %v1891, 80
    %v2165 = vpop.permute.xlu0 %2164
    %2166 = vrot.lane.b32.xlu0 %v1892, 80
    %v2167 = vpop.permute.xlu0 %2166
    %2168 = vrot.lane.b32.xlu0 %v1893, 80
    %v2169 = vpop.permute.xlu0 %2168
    %2170 = vrot.lane.b32.xlu0 %v1894, 80
    %v2171 = vpop.permute.xlu0 %2170
    %2172 = vrot.lane.b32.xlu0 %v1895, 80
    %v2173 = vpop.permute.xlu0 %2172
    %2174 = vrot.lane.b32.xlu0 %v1896, 80
    %v2175 = vpop.permute.xlu0 %2174
    %2176 = vrot.lane.b32.xlu0 %v1897, 80
    %v2177 = vpop.permute.xlu0 %2176
    %2178 = vrot.lane.b32.xlu0 %v1898, 80
    %v2179 = vpop.permute.xlu0 %2178
    %2180 = vrot.lane.b32.xlu0 %v1899, 80
    %v2181 = vpop.permute.xlu0 %2180
    %2182 = vrot.lane.b32.xlu0 %v1900, 80
    %v2183 = vpop.permute.xlu0 %2182
    %2184 = vrot.lane.b32.xlu0 %v1901, 80
    %v2185 = vpop.permute.xlu0 %2184
    %2186 = vrot.lane.b32.xlu0 %v1902, 80
    %v2187 = vpop.permute.xlu0 %2186
    %2188 = vrot.lane.b32.xlu0 %v1903, 80
    %v2189 = vpop.permute.xlu0 %2188
    %2190 = vrot.lane.b32.xlu0 %v1904, 80
    %v2191 = vpop.permute.xlu0 %2190
    %2192 = vrot.lane.b32.xlu0 %v1905, 80
    %v2193 = vpop.permute.xlu0 %2192
    %v2210 = vsel %vm1654, %v2163, 0.0
    %2211 = vadd.xlane.f32.xlu0 %v2210
    %v2212 = vpop.xlane.xlu0 %2211
    %v2213 = vsel %vm1654, %v2165, 0.0
    %2214 = vadd.xlane.f32.xlu0 %v2213
    %v2215 = vpop.xlane.xlu0 %2214
    %v2216 = vsel %vm1654, %v2167, 0.0
    %2217 = vadd.xlane.f32.xlu0 %v2216
    %v2218 = vpop.xlane.xlu0 %2217
    %v2219 = vsel %vm1654, %v2169, 0.0
    %2220 = vadd.xlane.f32.xlu0 %v2219
    %v2221 = vpop.xlane.xlu0 %2220
    %v2222 = vsel %vm1654, %v2171, 0.0
    %2223 = vadd.xlane.f32.xlu0 %v2222
    %v2224 = vpop.xlane.xlu0 %2223
    %v2225 = vsel %vm1654, %v2173, 0.0
    %2226 = vadd.xlane.f32.xlu0 %v2225
    %v2227 = vpop.xlane.xlu0 %2226
    %v2228 = vsel %vm1654, %v2175, 0.0
    %2229 = vadd.xlane.f32.xlu0 %v2228
    %v2230 = vpop.xlane.xlu0 %2229
    %v2231 = vsel %vm1654, %v2177, 0.0
    %2232 = vadd.xlane.f32.xlu0 %v2231
    %v2233 = vpop.xlane.xlu0 %2232
    %v2234 = vsel %vm1654, %v2179, 0.0
    %2235 = vadd.xlane.f32.xlu0 %v2234
    %v2236 = vpop.xlane.xlu0 %2235
    %v2237 = vsel %vm1654, %v2181, 0.0
    %2238 = vadd.xlane.f32.xlu0 %v2237
    %v2239 = vpop.xlane.xlu0 %2238
    %v2240 = vsel %vm1654, %v2183, 0.0
    %2241 = vadd.xlane.f32.xlu0 %v2240
    %v2242 = vpop.xlane.xlu0 %2241
    %v2243 = vsel %vm1654, %v2185, 0.0
    %2244 = vadd.xlane.f32.xlu0 %v2243
    %v2245 = vpop.xlane.xlu0 %2244
    %v2246 = vsel %vm1654, %v2187, 0.0
    %2247 = vadd.xlane.f32.xlu0 %v2246
    %v2248 = vpop.xlane.xlu0 %2247
    %v2249 = vsel %vm1654, %v2189, 0.0
    %2250 = vadd.xlane.f32.xlu0 %v2249
    %v2251 = vpop.xlane.xlu0 %2250
    %v2252 = vsel %vm1654, %v2191, 0.0
    %2253 = vadd.xlane.f32.xlu0 %v2252
    %v2254 = vpop.xlane.xlu0 %2253
    %v2255 = vsel %vm1654, %v2193, 0.0
    %2256 = vadd.xlane.f32.xlu0 %v2255
    %v2257 = vpop.xlane.xlu0 %2256
    %v2258 = vsel %vm1677, %v1908, %v2020
    %v2259 = vsel %vm1677, %v1911, %v2023
    %v2260 = vsel %vm1677, %v1914, %v2026
    %v2261 = vsel %vm1677, %v1917, %v2029
    %v2262 = vsel %vm1677, %v1920, %v2032
    %v2263 = vsel %vm1677, %v1923, %v2035
    %v2264 = vsel %vm1677, %v1926, %v2038
    %v2265 = vsel %vm1677, %v1929, %v2041
    %v2266 = vsel %vm1677, %v1932, %v2044
    %v2267 = vsel %vm1677, %v1935, %v2047
    %v2268 = vsel %vm1677, %v1938, %v2050
    %v2269 = vsel %vm1677, %v1941, %v2053
    %v2270 = vsel %vm1677, %v1944, %v2056
    %v2271 = vsel %vm1677, %v1947, %v2059
    %v2272 = vsel %vm1677, %v1950, %v2062
    %v2273 = vsel %vm1677, %v1953, %v2065
    %v2274 = vsel %vm1679, %v2258, %v2116
    %v2275 = vsel %vm1679, %v2259, %v2119
    %v2276 = vsel %vm1679, %v2260, %v2122
    %v2277 = vsel %vm1679, %v2261, %v2125
    %v2278 = vsel %vm1679, %v2262, %v2128
    %v2279 = vsel %vm1679, %v2263, %v2131
    %v2280 = vsel %vm1679, %v2264, %v2134
    %v2281 = vsel %vm1679, %v2265, %v2137
    %v2282 = vsel %vm1679, %v2266, %v2140
    %v2283 = vsel %vm1679, %v2267, %v2143
    %v2284 = vsel %vm1679, %v2268, %v2146
    %v2285 = vsel %vm1679, %v2269, %v2149
    %v2286 = vsel %vm1679, %v2270, %v2152
    %v2287 = vsel %vm1679, %v2271, %v2155
    %v2288 = vsel %vm1679, %v2272, %v2158
    %v2289 = vsel %vm1679, %v2273, %v2161
    %v2290 = vsel %vm1681, %v2274, %v2212
    %v2291 = vsel %vm1681, %v2275, %v2215
    %v2292 = vsel %vm1681, %v2276, %v2218
    %v2293 = vsel %vm1681, %v2277, %v2221
    %v2294 = vsel %vm1681, %v2278, %v2224
    %v2295 = vsel %vm1681, %v2279, %v2227
    %v2296 = vsel %vm1681, %v2280, %v2230
    %v2297 = vsel %vm1681, %v2281, %v2233
    %v2298 = vsel %vm1681, %v2282, %v2236
    %v2299 = vsel %vm1681, %v2283, %v2239
    %v2300 = vsel %vm1681, %v2284, %v2242
    %v2301 = vsel %vm1681, %v2285, %v2245
    %v2302 = vsel %vm1681, %v2286, %v2248
    %v2303 = vsel %vm1681, %v2287, %v2251
    %v2304 = vsel %vm1681, %v2288, %v2254
    %v2305 = vsel %vm1681, %v2289, %v2257
    %v2306 = vadd.f32 %v1813, %v2290
    %v2307 = vadd.f32 %v1817, %v2291
    %v2308 = vadd.f32 %v1821, %v2292
    %v2309 = vadd.f32 %v1825, %v2293
    %v2310 = vadd.f32 %v1829, %v2294
    %v2311 = vadd.f32 %v1833, %v2295
    %v2312 = vadd.f32 %v1837, %v2296
    %v2313 = vadd.f32 %v1841, %v2297
    %v2314 = vadd.f32 %v1845, %v2298
    %v2315 = vadd.f32 %v1849, %v2299
    %v2316 = vadd.f32 %v1853, %v2300
    %v2317 = vadd.f32 %v1857, %v2301
    %v2318 = vadd.f32 %v1861, %v2302
    %v2319 = vadd.f32 %v1865, %v2303
    %v2320 = vadd.f32 %v1869, %v2304
    %v2321 = vadd.f32 %v1873, %v2305
    %vm2322 = vcmask 25600
    %v2323 = vsel %vm2322, %v2306, -inf
    %2324 = vmax.xlane.f32.xlu0 %v2323
    %v2325 = vpop.xlane.xlu0 %2324
    %v2326 = vsel %vm2322, %v2307, -inf
    %2327 = vmax.xlane.f32.xlu0 %v2326
    %v2328 = vpop.xlane.xlu0 %2327
    %v2329 = vsel %vm2322, %v2308, -inf
    %2330 = vmax.xlane.f32.xlu0 %v2329
    %v2331 = vpop.xlane.xlu0 %2330
    %v2332 = vsel %vm2322, %v2309, -inf
    %2333 = vmax.xlane.f32.xlu0 %v2332
    %v2334 = vpop.xlane.xlu0 %2333
    %v2335 = vsel %vm2322, %v2310, -inf
    %2336 = vmax.xlane.f32.xlu0 %v2335
    %v2337 = vpop.xlane.xlu0 %2336
    %v2338 = vsel %vm2322, %v2311, -inf
    %2339 = vmax.xlane.f32.xlu0 %v2338
    %v2340 = vpop.xlane.xlu0 %2339
    %v2341 = vsel %vm2322, %v2312, -inf
    %2342 = vmax.xlane.f32.xlu0 %v2341
    %v2343 = vpop.xlane.xlu0 %2342
    %v2344 = vsel %vm2322, %v2313, -inf
    %2345 = vmax.xlane.f32.xlu0 %v2344
    %v2346 = vpop.xlane.xlu0 %2345
    %v2347 = vsel %vm2322, %v2314, -inf
    %2348 = vmax.xlane.f32.xlu0 %v2347
    %v2349 = vpop.xlane.xlu0 %2348
    %v2350 = vsel %vm2322, %v2315, -inf
    %2351 = vmax.xlane.f32.xlu0 %v2350
    %v2352 = vpop.xlane.xlu0 %2351
    %v2353 = vsel %vm2322, %v2316, -inf
    %2354 = vmax.xlane.f32.xlu0 %v2353
    %v2355 = vpop.xlane.xlu0 %2354
    %v2356 = vsel %vm2322, %v2317, -inf
    %2357 = vmax.xlane.f32.xlu0 %v2356
    %v2358 = vpop.xlane.xlu0 %2357
    %v2359 = vsel %vm2322, %v2318, -inf
    %2360 = vmax.xlane.f32.xlu0 %v2359
    %v2361 = vpop.xlane.xlu0 %2360
    %v2362 = vsel %vm2322, %v2319, -inf
    %2363 = vmax.xlane.f32.xlu0 %v2362
    %v2364 = vpop.xlane.xlu0 %2363
    %v2365 = vsel %vm2322, %v2320, -inf
    %2366 = vmax.xlane.f32.xlu0 %v2365
    %v2367 = vpop.xlane.xlu0 %2366
    %v2368 = vsel %vm2322, %v2321, -inf
    %2369 = vmax.xlane.f32.xlu0 %v2368
    %v2370 = vpop.xlane.xlu0 %2369
    %v2371 = vsub.f32 %v2306, %v2325
    %v2372 = vsub.f32 %v2307, %v2328
    %v2373 = vsub.f32 %v2308, %v2331
    %v2374 = vsub.f32 %v2309, %v2334
    %v2375 = vsub.f32 %v2310, %v2337
    %v2376 = vsub.f32 %v2311, %v2340
    %v2377 = vsub.f32 %v2312, %v2343
    %v2378 = vsub.f32 %v2313, %v2346
    %v2379 = vsub.f32 %v2314, %v2349
    %v2380 = vsub.f32 %v2315, %v2352
    %v2381 = vsub.f32 %v2316, %v2355
    %v2382 = vsub.f32 %v2317, %v2358
    %v2383 = vsub.f32 %v2318, %v2361
    %v2384 = vsub.f32 %v2319, %v2364
    %v2385 = vsub.f32 %v2320, %v2367
    %v2386 = vsub.f32 %v2321, %v2370
    %v2387 = vmul.f32 %v2371, 1.442695
    %v2388 = vpow.pop %v2387
    %v2389 = vmul.f32 %v2372, 1.442695
    %v2390 = vpow.pop %v2389
    %v2391 = vmul.f32 %v2373, 1.442695
    %v2392 = vpow.pop %v2391
    %v2393 = vmul.f32 %v2374, 1.442695
    %v2394 = vpow.pop %v2393
    %v2395 = vmul.f32 %v2375, 1.442695
    %v2396 = vpow.pop %v2395
    %v2397 = vmul.f32 %v2376, 1.442695
    %v2398 = vpow.pop %v2397
    %v2399 = vmul.f32 %v2377, 1.442695
    %v2400 = vpow.pop %v2399
    %v2401 = vmul.f32 %v2378, 1.442695
    %v2402 = vpow.pop %v2401
    %v2403 = vmul.f32 %v2379, 1.442695
    %v2404 = vpow.pop %v2403
    %v2405 = vmul.f32 %v2380, 1.442695
    %v2406 = vpow.pop %v2405
    %v2407 = vmul.f32 %v2381, 1.442695
    %v2408 = vpow.pop %v2407
    %v2409 = vmul.f32 %v2382, 1.442695
    %v2410 = vpow.pop %v2409
    %v2411 = vmul.f32 %v2383, 1.442695
    %v2412 = vpow.pop %v2411
    %v2413 = vmul.f32 %v2384, 1.442695
    %v2414 = vpow.pop %v2413
    %v2415 = vmul.f32 %v2385, 1.442695
    %v2416 = vpow.pop %v2415
    %v2417 = vmul.f32 %v2386, 1.442695
    %v2418 = vpow.pop %v2417
    %v2419 = vsel %vm2322, %v2388, 0.0
    %2420 = vadd.xlane.f32.xlu0 %v2419
    %v2421 = vpop.xlane.xlu0 %2420
    %v2422 = vsel %vm2322, %v2390, 0.0
    %2423 = vadd.xlane.f32.xlu0 %v2422
    %v2424 = vpop.xlane.xlu0 %2423
    %v2425 = vsel %vm2322, %v2392, 0.0
    %2426 = vadd.xlane.f32.xlu0 %v2425
    %v2427 = vpop.xlane.xlu0 %2426
    %v2428 = vsel %vm2322, %v2394, 0.0
    %2429 = vadd.xlane.f32.xlu0 %v2428
    %v2430 = vpop.xlane.xlu0 %2429
    %v2431 = vsel %vm2322, %v2396, 0.0
    %2432 = vadd.xlane.f32.xlu0 %v2431
    %v2433 = vpop.xlane.xlu0 %2432
    %v2434 = vsel %vm2322, %v2398, 0.0
    %2435 = vadd.xlane.f32.xlu0 %v2434
    %v2436 = vpop.xlane.xlu0 %2435
    %v2437 = vsel %vm2322, %v2400, 0.0
    %2438 = vadd.xlane.f32.xlu0 %v2437
    %v2439 = vpop.xlane.xlu0 %2438
    %v2440 = vsel %vm2322, %v2402, 0.0
    %2441 = vadd.xlane.f32.xlu0 %v2440
    %v2442 = vpop.xlane.xlu0 %2441
    %v2443 = vsel %vm2322, %v2404, 0.0
    %2444 = vadd.xlane.f32.xlu0 %v2443
    %v2445 = vpop.xlane.xlu0 %2444
    %v2446 = vsel %vm2322, %v2406, 0.0
    %2447 = vadd.xlane.f32.xlu0 %v2446
    %v2448 = vpop.xlane.xlu0 %2447
    %v2449 = vsel %vm2322, %v2408, 0.0
    %2450 = vadd.xlane.f32.xlu0 %v2449
    %v2451 = vpop.xlane.xlu0 %2450
    %v2452 = vsel %vm2322, %v2410, 0.0
    %2453 = vadd.xlane.f32.xlu0 %v2452
    %v2454 = vpop.xlane.xlu0 %2453
    %v2455 = vsel %vm2322, %v2412, 0.0
    %2456 = vadd.xlane.f32.xlu0 %v2455
    %v2457 = vpop.xlane.xlu0 %2456
    %v2458 = vsel %vm2322, %v2414, 0.0
    %2459 = vadd.xlane.f32.xlu0 %v2458
    %v2460 = vpop.xlane.xlu0 %2459
    %v2461 = vsel %vm2322, %v2416, 0.0
    %2462 = vadd.xlane.f32.xlu0 %v2461
    %v2463 = vpop.xlane.xlu0 %2462
    %v2464 = vsel %vm2322, %v2418, 0.0
    %2465 = vadd.xlane.f32.xlu0 %v2464
    %v2466 = vpop.xlane.xlu0 %2465
    %v2467 = vrcp.pop %v2421
    %v2468 = vmul.f32 %v2388, %v2467
    %v2469 = vrcp.pop %v2424
    %v2470 = vmul.f32 %v2390, %v2469
    %v2471 = vrcp.pop %v2427
    %v2472 = vmul.f32 %v2392, %v2471
    %v2473 = vrcp.pop %v2430
    %v2474 = vmul.f32 %v2394, %v2473
    %v2475 = vrcp.pop %v2433
    %v2476 = vmul.f32 %v2396, %v2475
    %v2477 = vrcp.pop %v2436
    %v2478 = vmul.f32 %v2398, %v2477
    %v2479 = vrcp.pop %v2439
    %v2480 = vmul.f32 %v2400, %v2479
    %v2481 = vrcp.pop %v2442
    %v2482 = vmul.f32 %v2402, %v2481
    %v2483 = vrcp.pop %v2445
    %v2484 = vmul.f32 %v2404, %v2483
    %v2485 = vrcp.pop %v2448
    %v2486 = vmul.f32 %v2406, %v2485
    %v2487 = vrcp.pop %v2451
    %v2488 = vmul.f32 %v2408, %v2487
    %v2489 = vrcp.pop %v2454
    %v2490 = vmul.f32 %v2410, %v2489
    %v2491 = vrcp.pop %v2457
    %v2492 = vmul.f32 %v2412, %v2491
    %v2493 = vrcp.pop %v2460
    %v2494 = vmul.f32 %v2414, %v2493
    %v2495 = vrcp.pop %v2463
    %v2496 = vmul.f32 %v2416, %v2495
    %v2497 = vrcp.pop %v2466
    %v2498 = vmul.f32 %v2418, %v2497
    %2500 = vset.pattern.permute.xlu0 0
    %2501 = vperm.xlu0 %2500, %v2468
    %v2502 = vpop.permute.xlu0 %2501
    %2505 = vset.pattern.permute.xlu0 0
    %2506 = vperm.xlu0 %2505, %v2470
    %v2507 = vpop.permute.xlu0 %2506
    %2510 = vset.pattern.permute.xlu0 0
    %2511 = vperm.xlu0 %2510, %v2472
    %v2512 = vpop.permute.xlu0 %2511
    %2515 = vset.pattern.permute.xlu0 0
    %2516 = vperm.xlu0 %2515, %v2474
    %v2517 = vpop.permute.xlu0 %2516
    %2520 = vset.pattern.permute.xlu0 0
    %2521 = vperm.xlu0 %2520, %v2476
    %v2522 = vpop.permute.xlu0 %2521
    %2525 = vset.pattern.permute.xlu0 0
    %2526 = vperm.xlu0 %2525, %v2478
    %v2527 = vpop.permute.xlu0 %2526
    %2530 = vset.pattern.permute.xlu0 0
    %2531 = vperm.xlu0 %2530, %v2480
    %v2532 = vpop.permute.xlu0 %2531
    %2535 = vset.pattern.permute.xlu0 0
    %2536 = vperm.xlu0 %2535, %v2482
    %v2537 = vpop.permute.xlu0 %2536
    %2540 = vset.pattern.permute.xlu0 0
    %2541 = vperm.xlu0 %2540, %v2484
    %v2542 = vpop.permute.xlu0 %2541
    %2545 = vset.pattern.permute.xlu0 0
    %2546 = vperm.xlu0 %2545, %v2486
    %v2547 = vpop.permute.xlu0 %2546
    %2550 = vset.pattern.permute.xlu0 0
    %2551 = vperm.xlu0 %2550, %v2488
    %v2552 = vpop.permute.xlu0 %2551
    %2555 = vset.pattern.permute.xlu0 0
    %2556 = vperm.xlu0 %2555, %v2490
    %v2557 = vpop.permute.xlu0 %2556
    %2560 = vset.pattern.permute.xlu0 0
    %2561 = vperm.xlu0 %2560, %v2492
    %v2562 = vpop.permute.xlu0 %2561
    %2565 = vset.pattern.permute.xlu0 0
    %2566 = vperm.xlu0 %2565, %v2494
    %v2567 = vpop.permute.xlu0 %2566
    %2570 = vset.pattern.permute.xlu0 0
    %2571 = vperm.xlu0 %2570, %v2496
    %v2572 = vpop.permute.xlu0 %2571
    %2575 = vset.pattern.permute.xlu0 0
    %2576 = vperm.xlu0 %2575, %v2498
    %v2577 = vpop.permute.xlu0 %2576
    %2579 = vset.pattern.permute.xlu0 1
    %2580 = vperm.xlu0 %2579, %v2468
    %v2581 = vpop.permute.xlu0 %2580
    %2583 = vset.pattern.permute.xlu0 1
    %2584 = vperm.xlu0 %2583, %v2470
    %v2585 = vpop.permute.xlu0 %2584
    %2587 = vset.pattern.permute.xlu0 1
    %2588 = vperm.xlu0 %2587, %v2472
    %v2589 = vpop.permute.xlu0 %2588
    %2591 = vset.pattern.permute.xlu0 1
    %2592 = vperm.xlu0 %2591, %v2474
    %v2593 = vpop.permute.xlu0 %2592
    %2595 = vset.pattern.permute.xlu0 1
    %2596 = vperm.xlu0 %2595, %v2476
    %v2597 = vpop.permute.xlu0 %2596
    %2599 = vset.pattern.permute.xlu0 1
    %2600 = vperm.xlu0 %2599, %v2478
    %v2601 = vpop.permute.xlu0 %2600
    %2603 = vset.pattern.permute.xlu0 1
    %2604 = vperm.xlu0 %2603, %v2480
    %v2605 = vpop.permute.xlu0 %2604
    %2607 = vset.pattern.permute.xlu0 1
    %2608 = vperm.xlu0 %2607, %v2482
    %v2609 = vpop.permute.xlu0 %2608
    %2611 = vset.pattern.permute.xlu0 1
    %2612 = vperm.xlu0 %2611, %v2484
    %v2613 = vpop.permute.xlu0 %2612
    %2615 = vset.pattern.permute.xlu0 1
    %2616 = vperm.xlu0 %2615, %v2486
    %v2617 = vpop.permute.xlu0 %2616
    %2619 = vset.pattern.permute.xlu0 1
    %2620 = vperm.xlu0 %2619, %v2488
    %v2621 = vpop.permute.xlu0 %2620
    %2623 = vset.pattern.permute.xlu0 1
    %2624 = vperm.xlu0 %2623, %v2490
    %v2625 = vpop.permute.xlu0 %2624
    %2627 = vset.pattern.permute.xlu0 1
    %2628 = vperm.xlu0 %2627, %v2492
    %v2629 = vpop.permute.xlu0 %2628
    %2631 = vset.pattern.permute.xlu0 1
    %2632 = vperm.xlu0 %2631, %v2494
    %v2633 = vpop.permute.xlu0 %2632
    %2635 = vset.pattern.permute.xlu0 1
    %2636 = vperm.xlu0 %2635, %v2496
    %v2637 = vpop.permute.xlu0 %2636
    %2639 = vset.pattern.permute.xlu0 1
    %2640 = vperm.xlu0 %2639, %v2498
    %v2641 = vpop.permute.xlu0 %2640
    %2643 = vset.pattern.permute.xlu0 2
    %2644 = vperm.xlu0 %2643, %v2468
    %v2645 = vpop.permute.xlu0 %2644
    %2647 = vset.pattern.permute.xlu0 2
    %2648 = vperm.xlu0 %2647, %v2470
    %v2649 = vpop.permute.xlu0 %2648
    %2651 = vset.pattern.permute.xlu0 2
    %2652 = vperm.xlu0 %2651, %v2472
    %v2653 = vpop.permute.xlu0 %2652
    %2655 = vset.pattern.permute.xlu0 2
    %2656 = vperm.xlu0 %2655, %v2474
    %v2657 = vpop.permute.xlu0 %2656
    %2659 = vset.pattern.permute.xlu0 2
    %2660 = vperm.xlu0 %2659, %v2476
    %v2661 = vpop.permute.xlu0 %2660
    %2663 = vset.pattern.permute.xlu0 2
    %2664 = vperm.xlu0 %2663, %v2478
    %v2665 = vpop.permute.xlu0 %2664
    %2667 = vset.pattern.permute.xlu0 2
    %2668 = vperm.xlu0 %2667, %v2480
    %v2669 = vpop.permute.xlu0 %2668
    %2671 = vset.pattern.permute.xlu0 2
    %2672 = vperm.xlu0 %2671, %v2482
    %v2673 = vpop.permute.xlu0 %2672
    %2675 = vset.pattern.permute.xlu0 2
    %2676 = vperm.xlu0 %2675, %v2484
    %v2677 = vpop.permute.xlu0 %2676
    %2679 = vset.pattern.permute.xlu0 2
    %2680 = vperm.xlu0 %2679, %v2486
    %v2681 = vpop.permute.xlu0 %2680
    %2683 = vset.pattern.permute.xlu0 2
    %2684 = vperm.xlu0 %2683, %v2488
    %v2685 = vpop.permute.xlu0 %2684
    %2687 = vset.pattern.permute.xlu0 2
    %2688 = vperm.xlu0 %2687, %v2490
    %v2689 = vpop.permute.xlu0 %2688
    %2691 = vset.pattern.permute.xlu0 2
    %2692 = vperm.xlu0 %2691, %v2492
    %v2693 = vpop.permute.xlu0 %2692
    %2695 = vset.pattern.permute.xlu0 2
    %2696 = vperm.xlu0 %2695, %v2494
    %v2697 = vpop.permute.xlu0 %2696
    %2699 = vset.pattern.permute.xlu0 2
    %2700 = vperm.xlu0 %2699, %v2496
    %v2701 = vpop.permute.xlu0 %2700
    %2703 = vset.pattern.permute.xlu0 2
    %2704 = vperm.xlu0 %2703, %v2498
    %v2705 = vpop.permute.xlu0 %2704
    %2707 = vset.pattern.permute.xlu0 3
    %2708 = vperm.xlu0 %2707, %v2468
    %v2709 = vpop.permute.xlu0 %2708
    %2711 = vset.pattern.permute.xlu0 3
    %2712 = vperm.xlu0 %2711, %v2470
    %v2713 = vpop.permute.xlu0 %2712
    %2715 = vset.pattern.permute.xlu0 3
    %2716 = vperm.xlu0 %2715, %v2472
    %v2717 = vpop.permute.xlu0 %2716
    %2719 = vset.pattern.permute.xlu0 3
    %2720 = vperm.xlu0 %2719, %v2474
    %v2721 = vpop.permute.xlu0 %2720
    %2723 = vset.pattern.permute.xlu0 3
    %2724 = vperm.xlu0 %2723, %v2476
    %v2725 = vpop.permute.xlu0 %2724
    %2727 = vset.pattern.permute.xlu0 3
    %2728 = vperm.xlu0 %2727, %v2478
    %v2729 = vpop.permute.xlu0 %2728
    %2731 = vset.pattern.permute.xlu0 3
    %2732 = vperm.xlu0 %2731, %v2480
    %v2733 = vpop.permute.xlu0 %2732
    %2735 = vset.pattern.permute.xlu0 3
    %2736 = vperm.xlu0 %2735, %v2482
    %v2737 = vpop.permute.xlu0 %2736
    %2739 = vset.pattern.permute.xlu0 3
    %2740 = vperm.xlu0 %2739, %v2484
    %v2741 = vpop.permute.xlu0 %2740
    %2743 = vset.pattern.permute.xlu0 3
    %2744 = vperm.xlu0 %2743, %v2486
    %v2745 = vpop.permute.xlu0 %2744
    %2747 = vset.pattern.permute.xlu0 3
    %2748 = vperm.xlu0 %2747, %v2488
    %v2749 = vpop.permute.xlu0 %2748
    %2751 = vset.pattern.permute.xlu0 3
    %2752 = vperm.xlu0 %2751, %v2490
    %v2753 = vpop.permute.xlu0 %2752
    %2755 = vset.pattern.permute.xlu0 3
    %2756 = vperm.xlu0 %2755, %v2492
    %v2757 = vpop.permute.xlu0 %2756
    %2759 = vset.pattern.permute.xlu0 3
    %2760 = vperm.xlu0 %2759, %v2494
    %v2761 = vpop.permute.xlu0 %2760
    %2763 = vset.pattern.permute.xlu0 3
    %2764 = vperm.xlu0 %2763, %v2496
    %v2765 = vpop.permute.xlu0 %2764
    %2767 = vset.pattern.permute.xlu0 3
    %2768 = vperm.xlu0 %2767, %v2498
    %v2769 = vpop.permute.xlu0 %2768
    %v2771 = vsel %vm1417, %v2502, %v2581
    %v2772 = vsel %vm1417, %v2507, %v2585
    %v2773 = vsel %vm1417, %v2512, %v2589
    %v2774 = vsel %vm1417, %v2517, %v2593
    %v2775 = vsel %vm1417, %v2522, %v2597
    %v2776 = vsel %vm1417, %v2527, %v2601
    %v2777 = vsel %vm1417, %v2532, %v2605
    %v2778 = vsel %vm1417, %v2537, %v2609
    %v2779 = vsel %vm1417, %v2542, %v2613
    %v2780 = vsel %vm1417, %v2547, %v2617
    %v2781 = vsel %vm1417, %v2552, %v2621
    %v2782 = vsel %vm1417, %v2557, %v2625
    %v2783 = vsel %vm1417, %v2562, %v2629
    %v2784 = vsel %vm1417, %v2567, %v2633
    %v2785 = vsel %vm1417, %v2572, %v2637
    %v2786 = vsel %vm1417, %v2577, %v2641
    %v2787 = vsel %vm1420, %v2771, %v2645
    %v2788 = vsel %vm1420, %v2772, %v2649
    %v2789 = vsel %vm1420, %v2773, %v2653
    %v2790 = vsel %vm1420, %v2774, %v2657
    %v2791 = vsel %vm1420, %v2775, %v2661
    %v2792 = vsel %vm1420, %v2776, %v2665
    %v2793 = vsel %vm1420, %v2777, %v2669
    %v2794 = vsel %vm1420, %v2778, %v2673
    %v2795 = vsel %vm1420, %v2779, %v2677
    %v2796 = vsel %vm1420, %v2780, %v2681
    %v2797 = vsel %vm1420, %v2781, %v2685
    %v2798 = vsel %vm1420, %v2782, %v2689
    %v2799 = vsel %vm1420, %v2783, %v2693
    %v2800 = vsel %vm1420, %v2784, %v2697
    %v2801 = vsel %vm1420, %v2785, %v2701
    %v2802 = vsel %vm1420, %v2786, %v2705
    %v2803 = vsel %vm1423, %v2787, %v2709
    %v2804 = vsel %vm1423, %v2788, %v2713
    %v2805 = vsel %vm1423, %v2789, %v2717
    %v2806 = vsel %vm1423, %v2790, %v2721
    %v2807 = vsel %vm1423, %v2791, %v2725
    %v2808 = vsel %vm1423, %v2792, %v2729
    %v2809 = vsel %vm1423, %v2793, %v2733
    %v2810 = vsel %vm1423, %v2794, %v2737
    %v2811 = vsel %vm1423, %v2795, %v2741
    %v2812 = vsel %vm1423, %v2796, %v2745
    %v2813 = vsel %vm1423, %v2797, %v2749
    %v2814 = vsel %vm1423, %v2798, %v2753
    %v2815 = vsel %vm1423, %v2799, %v2757
    %v2816 = vsel %vm1423, %v2800, %v2761
    %v2817 = vsel %vm1423, %v2801, %v2765
    %v2818 = vsel %vm1423, %v2802, %v2769
    %v2819 = vmul.f32 %v2803, %v1342
    %v2820 = vmul.f32 %v2804, %v1343
    %v2821 = vmul.f32 %v2805, %v1344
    %v2822 = vmul.f32 %v2806, %v1345
    %v2823 = vmul.f32 %v2807, %v1346
    %v2824 = vmul.f32 %v2808, %v1347
    %v2825 = vmul.f32 %v2809, %v1348
    %v2826 = vmul.f32 %v2810, %v1349
    %v2827 = vmul.f32 %v2811, %v1350
    %v2828 = vmul.f32 %v2812, %v1351
    %v2829 = vmul.f32 %v2813, %v1352
    %v2830 = vmul.f32 %v2814, %v1353
    %v2831 = vmul.f32 %v2815, %v1354
    %v2832 = vmul.f32 %v2816, %v1355
    %v2833 = vmul.f32 %v2817, %v1356
    %v2834 = vmul.f32 %v2818, %v1357
    %v2835 = vsel %vm110, %v2819, 0.0
    %v2836 = vsel %vm110, %v2820, 0.0
    %v2837 = vadd.f32 %v2835, %v2836
    %v2838 = vsel %vm110, %v2821, 0.0
    %v2839 = vadd.f32 %v2837, %v2838
    %v2840 = vsel %vm110, %v2822, 0.0
    %v2841 = vadd.f32 %v2839, %v2840
    %v2842 = vsel %vm110, %v2823, 0.0
    %v2843 = vadd.f32 %v2841, %v2842
    %v2844 = vsel %vm110, %v2824, 0.0
    %v2845 = vadd.f32 %v2843, %v2844
    %v2846 = vsel %vm110, %v2825, 0.0
    %v2847 = vadd.f32 %v2845, %v2846
    %v2848 = vsel %vm110, %v2826, 0.0
    %v2849 = vadd.f32 %v2847, %v2848
    %v2850 = vsel %vm110, %v2827, 0.0
    %v2851 = vadd.f32 %v2849, %v2850
    %v2852 = vsel %vm110, %v2828, 0.0
    %v2853 = vadd.f32 %v2851, %v2852
    %v2854 = vsel %vm110, %v2829, 0.0
    %v2855 = vadd.f32 %v2853, %v2854
    %v2856 = vsel %vm110, %v2830, 0.0
    %v2857 = vadd.f32 %v2855, %v2856
    %v2858 = vsel %vm110, %v2831, 0.0
    %v2859 = vadd.f32 %v2857, %v2858
    %v2860 = vsel %vm110, %v2832, 0.0
    %v2861 = vadd.f32 %v2859, %v2860
    %v2862 = vsel %vm110, %v2833, 0.0
    %v2863 = vadd.f32 %v2861, %v2862
    %v2864 = vsel %vm110, %v2834, 0.0
    %v2865 = vadd.f32 %v2863, %v2864
    %v2866 = vmul.f32 %v2865, %v2865
    %v2867 = vsel %vm1654, %v2866, 0.0
    %2868 = vadd.xlane.f32.xlu0 %v2867
    %v2869 = vpop.xlane.xlu0 %2868
    %2871 = vrot.lane.b32.xlu0 %v2866, 112
    %v2872 = vpop.permute.xlu0 %2871
    %v2874 = vsel %vm1654, %v2872, 0.0
    %2875 = vadd.xlane.f32.xlu0 %v2874
    %v2876 = vpop.xlane.xlu0 %2875
    %2877 = vrot.lane.b32.xlu0 %v2866, 96
    %v2878 = vpop.permute.xlu0 %2877
    %v2880 = vsel %vm1654, %v2878, 0.0
    %2881 = vadd.xlane.f32.xlu0 %v2880
    %v2882 = vpop.xlane.xlu0 %2881
    %2883 = vrot.lane.b32.xlu0 %v2866, 80
    %v2884 = vpop.permute.xlu0 %2883
    %v2886 = vsel %vm1654, %v2884, 0.0
    %2887 = vadd.xlane.f32.xlu0 %v2886
    %v2888 = vpop.xlane.xlu0 %2887
    %v2889 = vsel %vm1677, %v2869, %v2876
    %v2890 = vsel %vm1679, %v2889, %v2882
    %v2891 = vsel %vm1681, %v2890, %v2888
    %v2892 = vadd.f32 %v2891, 1e-09
    %v2893 = vrsqrt.pop %v2892
    %v2894 = vmul.f32 %v2891, %v2893
    %v2895 = vadd.f32 %v2891, 1.0
    %v2896 = vrcp.pop %v2895
    %v2897 = vmul.f32 %v2894, %v2896
    %2899 = vset.pattern.permute.xlu0 0
    %2900 = vperm.xlu0 %2899, %v2897
    %v2901 = vpop.permute.xlu0 %2900
    %2903 = vset.pattern.permute.xlu0 1
    %2904 = vperm.xlu0 %2903, %v2897
    %v2905 = vpop.permute.xlu0 %2904
    %2907 = vset.pattern.permute.xlu0 2
    %2908 = vperm.xlu0 %2907, %v2897
    %v2909 = vpop.permute.xlu0 %2908
    %2911 = vset.pattern.permute.xlu0 3
    %2912 = vperm.xlu0 %2911, %v2897
    %v2913 = vpop.permute.xlu0 %2912
    %v2915 = vsel %vm1417, %v2901, %v2905
    %v2916 = vsel %vm1420, %v2915, %v2909
    %v2917 = vsel %vm1423, %v2916, %v2913
    %v2918 = vmul.f32 %v2865, %v2917
    %v2919 = vmul.f32 %v1342, %v2918
    %v2920 = vmul.f32 %v1343, %v2918
    %v2921 = vmul.f32 %v1344, %v2918
    %v2922 = vmul.f32 %v1345, %v2918
    %v2923 = vmul.f32 %v1346, %v2918
    %v2924 = vmul.f32 %v1347, %v2918
    %v2925 = vmul.f32 %v1348, %v2918
    %v2926 = vmul.f32 %v1349, %v2918
    %v2927 = vmul.f32 %v1350, %v2918
    %v2928 = vmul.f32 %v1351, %v2918
    %v2929 = vmul.f32 %v1352, %v2918
    %v2930 = vmul.f32 %v1353, %v2918
    %v2931 = vmul.f32 %v1354, %v2918
    %v2932 = vmul.f32 %v1355, %v2918
    %v2933 = vmul.f32 %v1356, %v2918
    %v2934 = vmul.f32 %v1357, %v2918
    %v2935 = vsel %vm1654, %v2919, 0.0
    %2936 = vadd.xlane.f32.xlu0 %v2935
    %v2937 = vpop.xlane.xlu0 %2936
    %v2938 = vsel %vm1654, %v2920, 0.0
    %2939 = vadd.xlane.f32.xlu0 %v2938
    %v2940 = vpop.xlane.xlu0 %2939
    %v2941 = vsel %vm1654, %v2921, 0.0
    %2942 = vadd.xlane.f32.xlu0 %v2941
    %v2943 = vpop.xlane.xlu0 %2942
    %v2944 = vsel %vm1654, %v2922, 0.0
    %2945 = vadd.xlane.f32.xlu0 %v2944
    %v2946 = vpop.xlane.xlu0 %2945
    %v2947 = vsel %vm1654, %v2923, 0.0
    %2948 = vadd.xlane.f32.xlu0 %v2947
    %v2949 = vpop.xlane.xlu0 %2948
    %v2950 = vsel %vm1654, %v2924, 0.0
    %2951 = vadd.xlane.f32.xlu0 %v2950
    %v2952 = vpop.xlane.xlu0 %2951
    %v2953 = vsel %vm1654, %v2925, 0.0
    %2954 = vadd.xlane.f32.xlu0 %v2953
    %v2955 = vpop.xlane.xlu0 %2954
    %v2956 = vsel %vm1654, %v2926, 0.0
    %2957 = vadd.xlane.f32.xlu0 %v2956
    %v2958 = vpop.xlane.xlu0 %2957
    %v2959 = vsel %vm1654, %v2927, 0.0
    %2960 = vadd.xlane.f32.xlu0 %v2959
    %v2961 = vpop.xlane.xlu0 %2960
    %v2962 = vsel %vm1654, %v2928, 0.0
    %2963 = vadd.xlane.f32.xlu0 %v2962
    %v2964 = vpop.xlane.xlu0 %2963
    %v2965 = vsel %vm1654, %v2929, 0.0
    %2966 = vadd.xlane.f32.xlu0 %v2965
    %v2967 = vpop.xlane.xlu0 %2966
    %v2968 = vsel %vm1654, %v2930, 0.0
    %2969 = vadd.xlane.f32.xlu0 %v2968
    %v2970 = vpop.xlane.xlu0 %2969
    %v2971 = vsel %vm1654, %v2931, 0.0
    %2972 = vadd.xlane.f32.xlu0 %v2971
    %v2973 = vpop.xlane.xlu0 %2972
    %v2974 = vsel %vm1654, %v2932, 0.0
    %2975 = vadd.xlane.f32.xlu0 %v2974
    %v2976 = vpop.xlane.xlu0 %2975
    %v2977 = vsel %vm1654, %v2933, 0.0
    %2978 = vadd.xlane.f32.xlu0 %v2977
    %v2979 = vpop.xlane.xlu0 %2978
    %v2980 = vsel %vm1654, %v2934, 0.0
    %2981 = vadd.xlane.f32.xlu0 %v2980
    %v2982 = vpop.xlane.xlu0 %2981
    %2999 = vrot.lane.b32.xlu0 %v2919, 112
    %v3000 = vpop.permute.xlu0 %2999
    %3001 = vrot.lane.b32.xlu0 %v2920, 112
    %v3002 = vpop.permute.xlu0 %3001
    %3003 = vrot.lane.b32.xlu0 %v2921, 112
    %v3004 = vpop.permute.xlu0 %3003
    %3005 = vrot.lane.b32.xlu0 %v2922, 112
    %v3006 = vpop.permute.xlu0 %3005
    %3007 = vrot.lane.b32.xlu0 %v2923, 112
    %v3008 = vpop.permute.xlu0 %3007
    %3009 = vrot.lane.b32.xlu0 %v2924, 112
    %v3010 = vpop.permute.xlu0 %3009
    %3011 = vrot.lane.b32.xlu0 %v2925, 112
    %v3012 = vpop.permute.xlu0 %3011
    %3013 = vrot.lane.b32.xlu0 %v2926, 112
    %v3014 = vpop.permute.xlu0 %3013
    %3015 = vrot.lane.b32.xlu0 %v2927, 112
    %v3016 = vpop.permute.xlu0 %3015
    %3017 = vrot.lane.b32.xlu0 %v2928, 112
    %v3018 = vpop.permute.xlu0 %3017
    %3019 = vrot.lane.b32.xlu0 %v2929, 112
    %v3020 = vpop.permute.xlu0 %3019
    %3021 = vrot.lane.b32.xlu0 %v2930, 112
    %v3022 = vpop.permute.xlu0 %3021
    %3023 = vrot.lane.b32.xlu0 %v2931, 112
    %v3024 = vpop.permute.xlu0 %3023
    %3025 = vrot.lane.b32.xlu0 %v2932, 112
    %v3026 = vpop.permute.xlu0 %3025
    %3027 = vrot.lane.b32.xlu0 %v2933, 112
    %v3028 = vpop.permute.xlu0 %3027
    %3029 = vrot.lane.b32.xlu0 %v2934, 112
    %v3030 = vpop.permute.xlu0 %3029
    %v3047 = vsel %vm1654, %v3000, 0.0
    %3048 = vadd.xlane.f32.xlu0 %v3047
    %v3049 = vpop.xlane.xlu0 %3048
    %v3050 = vsel %vm1654, %v3002, 0.0
    %3051 = vadd.xlane.f32.xlu0 %v3050
    %v3052 = vpop.xlane.xlu0 %3051
    %v3053 = vsel %vm1654, %v3004, 0.0
    %3054 = vadd.xlane.f32.xlu0 %v3053
    %v3055 = vpop.xlane.xlu0 %3054
    %v3056 = vsel %vm1654, %v3006, 0.0
    %3057 = vadd.xlane.f32.xlu0 %v3056
    %v3058 = vpop.xlane.xlu0 %3057
    %v3059 = vsel %vm1654, %v3008, 0.0
    %3060 = vadd.xlane.f32.xlu0 %v3059
    %v3061 = vpop.xlane.xlu0 %3060
    %v3062 = vsel %vm1654, %v3010, 0.0
    %3063 = vadd.xlane.f32.xlu0 %v3062
    %v3064 = vpop.xlane.xlu0 %3063
    %v3065 = vsel %vm1654, %v3012, 0.0
    %3066 = vadd.xlane.f32.xlu0 %v3065
    %v3067 = vpop.xlane.xlu0 %3066
    %v3068 = vsel %vm1654, %v3014, 0.0
    %3069 = vadd.xlane.f32.xlu0 %v3068
    %v3070 = vpop.xlane.xlu0 %3069
    %v3071 = vsel %vm1654, %v3016, 0.0
    %3072 = vadd.xlane.f32.xlu0 %v3071
    %v3073 = vpop.xlane.xlu0 %3072
    %v3074 = vsel %vm1654, %v3018, 0.0
    %3075 = vadd.xlane.f32.xlu0 %v3074
    %v3076 = vpop.xlane.xlu0 %3075
    %v3077 = vsel %vm1654, %v3020, 0.0
    %3078 = vadd.xlane.f32.xlu0 %v3077
    %v3079 = vpop.xlane.xlu0 %3078
    %v3080 = vsel %vm1654, %v3022, 0.0
    %3081 = vadd.xlane.f32.xlu0 %v3080
    %v3082 = vpop.xlane.xlu0 %3081
    %v3083 = vsel %vm1654, %v3024, 0.0
    %3084 = vadd.xlane.f32.xlu0 %v3083
    %v3085 = vpop.xlane.xlu0 %3084
    %v3086 = vsel %vm1654, %v3026, 0.0
    %3087 = vadd.xlane.f32.xlu0 %v3086
    %v3088 = vpop.xlane.xlu0 %3087
    %v3089 = vsel %vm1654, %v3028, 0.0
    %3090 = vadd.xlane.f32.xlu0 %v3089
    %v3091 = vpop.xlane.xlu0 %3090
    %v3092 = vsel %vm1654, %v3030, 0.0
    %3093 = vadd.xlane.f32.xlu0 %v3092
    %v3094 = vpop.xlane.xlu0 %3093
    %3095 = vrot.lane.b32.xlu0 %v2919, 96
    %v3096 = vpop.permute.xlu0 %3095
    %3097 = vrot.lane.b32.xlu0 %v2920, 96
    %v3098 = vpop.permute.xlu0 %3097
    %3099 = vrot.lane.b32.xlu0 %v2921, 96
    %v3100 = vpop.permute.xlu0 %3099
    %3101 = vrot.lane.b32.xlu0 %v2922, 96
    %v3102 = vpop.permute.xlu0 %3101
    %3103 = vrot.lane.b32.xlu0 %v2923, 96
    %v3104 = vpop.permute.xlu0 %3103
    %3105 = vrot.lane.b32.xlu0 %v2924, 96
    %v3106 = vpop.permute.xlu0 %3105
    %3107 = vrot.lane.b32.xlu0 %v2925, 96
    %v3108 = vpop.permute.xlu0 %3107
    %3109 = vrot.lane.b32.xlu0 %v2926, 96
    %v3110 = vpop.permute.xlu0 %3109
    %3111 = vrot.lane.b32.xlu0 %v2927, 96
    %v3112 = vpop.permute.xlu0 %3111
    %3113 = vrot.lane.b32.xlu0 %v2928, 96
    %v3114 = vpop.permute.xlu0 %3113
    %3115 = vrot.lane.b32.xlu0 %v2929, 96
    %v3116 = vpop.permute.xlu0 %3115
    %3117 = vrot.lane.b32.xlu0 %v2930, 96
    %v3118 = vpop.permute.xlu0 %3117
    %3119 = vrot.lane.b32.xlu0 %v2931, 96
    %v3120 = vpop.permute.xlu0 %3119
    %3121 = vrot.lane.b32.xlu0 %v2932, 96
    %v3122 = vpop.permute.xlu0 %3121
    %3123 = vrot.lane.b32.xlu0 %v2933, 96
    %v3124 = vpop.permute.xlu0 %3123
    %3125 = vrot.lane.b32.xlu0 %v2934, 96
    %v3126 = vpop.permute.xlu0 %3125
    %v3143 = vsel %vm1654, %v3096, 0.0
    %3144 = vadd.xlane.f32.xlu0 %v3143
    %v3145 = vpop.xlane.xlu0 %3144
    %v3146 = vsel %vm1654, %v3098, 0.0
    %3147 = vadd.xlane.f32.xlu0 %v3146
    %v3148 = vpop.xlane.xlu0 %3147
    %v3149 = vsel %vm1654, %v3100, 0.0
    %3150 = vadd.xlane.f32.xlu0 %v3149
    %v3151 = vpop.xlane.xlu0 %3150
    %v3152 = vsel %vm1654, %v3102, 0.0
    %3153 = vadd.xlane.f32.xlu0 %v3152
    %v3154 = vpop.xlane.xlu0 %3153
    %v3155 = vsel %vm1654, %v3104, 0.0
    %3156 = vadd.xlane.f32.xlu0 %v3155
    %v3157 = vpop.xlane.xlu0 %3156
    %v3158 = vsel %vm1654, %v3106, 0.0
    %3159 = vadd.xlane.f32.xlu0 %v3158
    %v3160 = vpop.xlane.xlu0 %3159
    %v3161 = vsel %vm1654, %v3108, 0.0
    %3162 = vadd.xlane.f32.xlu0 %v3161
    %v3163 = vpop.xlane.xlu0 %3162
    %v3164 = vsel %vm1654, %v3110, 0.0
    %3165 = vadd.xlane.f32.xlu0 %v3164
    %v3166 = vpop.xlane.xlu0 %3165
    %v3167 = vsel %vm1654, %v3112, 0.0
    %3168 = vadd.xlane.f32.xlu0 %v3167
    %v3169 = vpop.xlane.xlu0 %3168
    %v3170 = vsel %vm1654, %v3114, 0.0
    %3171 = vadd.xlane.f32.xlu0 %v3170
    %v3172 = vpop.xlane.xlu0 %3171
    %v3173 = vsel %vm1654, %v3116, 0.0
    %3174 = vadd.xlane.f32.xlu0 %v3173
    %v3175 = vpop.xlane.xlu0 %3174
    %v3176 = vsel %vm1654, %v3118, 0.0
    %3177 = vadd.xlane.f32.xlu0 %v3176
    %v3178 = vpop.xlane.xlu0 %3177
    %v3179 = vsel %vm1654, %v3120, 0.0
    %3180 = vadd.xlane.f32.xlu0 %v3179
    %v3181 = vpop.xlane.xlu0 %3180
    %v3182 = vsel %vm1654, %v3122, 0.0
    %3183 = vadd.xlane.f32.xlu0 %v3182
    %v3184 = vpop.xlane.xlu0 %3183
    %v3185 = vsel %vm1654, %v3124, 0.0
    %3186 = vadd.xlane.f32.xlu0 %v3185
    %v3187 = vpop.xlane.xlu0 %3186
    %v3188 = vsel %vm1654, %v3126, 0.0
    %3189 = vadd.xlane.f32.xlu0 %v3188
    %v3190 = vpop.xlane.xlu0 %3189
    %3191 = vrot.lane.b32.xlu0 %v2919, 80
    %v3192 = vpop.permute.xlu0 %3191
    %3193 = vrot.lane.b32.xlu0 %v2920, 80
    %v3194 = vpop.permute.xlu0 %3193
    %3195 = vrot.lane.b32.xlu0 %v2921, 80
    %v3196 = vpop.permute.xlu0 %3195
    %3197 = vrot.lane.b32.xlu0 %v2922, 80
    %v3198 = vpop.permute.xlu0 %3197
    %3199 = vrot.lane.b32.xlu0 %v2923, 80
    %v3200 = vpop.permute.xlu0 %3199
    %3201 = vrot.lane.b32.xlu0 %v2924, 80
    %v3202 = vpop.permute.xlu0 %3201
    %3203 = vrot.lane.b32.xlu0 %v2925, 80
    %v3204 = vpop.permute.xlu0 %3203
    %3205 = vrot.lane.b32.xlu0 %v2926, 80
    %v3206 = vpop.permute.xlu0 %3205
    %3207 = vrot.lane.b32.xlu0 %v2927, 80
    %v3208 = vpop.permute.xlu0 %3207
    %3209 = vrot.lane.b32.xlu0 %v2928, 80
    %v3210 = vpop.permute.xlu0 %3209
    %3211 = vrot.lane.b32.xlu0 %v2929, 80
    %v3212 = vpop.permute.xlu0 %3211
    %3213 = vrot.lane.b32.xlu0 %v2930, 80
    %v3214 = vpop.permute.xlu0 %3213
    %3215 = vrot.lane.b32.xlu0 %v2931, 80
    %v3216 = vpop.permute.xlu0 %3215
    %3217 = vrot.lane.b32.xlu0 %v2932, 80
    %v3218 = vpop.permute.xlu0 %3217
    %3219 = vrot.lane.b32.xlu0 %v2933, 80
    %v3220 = vpop.permute.xlu0 %3219
    %3221 = vrot.lane.b32.xlu0 %v2934, 80
    %v3222 = vpop.permute.xlu0 %3221
    %v3239 = vsel %vm1654, %v3192, 0.0
    %3240 = vadd.xlane.f32.xlu0 %v3239
    %v3241 = vpop.xlane.xlu0 %3240
    %v3242 = vsel %vm1654, %v3194, 0.0
    %3243 = vadd.xlane.f32.xlu0 %v3242
    %v3244 = vpop.xlane.xlu0 %3243
    %v3245 = vsel %vm1654, %v3196, 0.0
    %3246 = vadd.xlane.f32.xlu0 %v3245
    %v3247 = vpop.xlane.xlu0 %3246
    %v3248 = vsel %vm1654, %v3198, 0.0
    %3249 = vadd.xlane.f32.xlu0 %v3248
    %v3250 = vpop.xlane.xlu0 %3249
    %v3251 = vsel %vm1654, %v3200, 0.0
    %3252 = vadd.xlane.f32.xlu0 %v3251
    %v3253 = vpop.xlane.xlu0 %3252
    %v3254 = vsel %vm1654, %v3202, 0.0
    %3255 = vadd.xlane.f32.xlu0 %v3254
    %v3256 = vpop.xlane.xlu0 %3255
    %v3257 = vsel %vm1654, %v3204, 0.0
    %3258 = vadd.xlane.f32.xlu0 %v3257
    %v3259 = vpop.xlane.xlu0 %3258
    %v3260 = vsel %vm1654, %v3206, 0.0
    %3261 = vadd.xlane.f32.xlu0 %v3260
    %v3262 = vpop.xlane.xlu0 %3261
    %v3263 = vsel %vm1654, %v3208, 0.0
    %3264 = vadd.xlane.f32.xlu0 %v3263
    %v3265 = vpop.xlane.xlu0 %3264
    %v3266 = vsel %vm1654, %v3210, 0.0
    %3267 = vadd.xlane.f32.xlu0 %v3266
    %v3268 = vpop.xlane.xlu0 %3267
    %v3269 = vsel %vm1654, %v3212, 0.0
    %3270 = vadd.xlane.f32.xlu0 %v3269
    %v3271 = vpop.xlane.xlu0 %3270
    %v3272 = vsel %vm1654, %v3214, 0.0
    %3273 = vadd.xlane.f32.xlu0 %v3272
    %v3274 = vpop.xlane.xlu0 %3273
    %v3275 = vsel %vm1654, %v3216, 0.0
    %3276 = vadd.xlane.f32.xlu0 %v3275
    %v3277 = vpop.xlane.xlu0 %3276
    %v3278 = vsel %vm1654, %v3218, 0.0
    %3279 = vadd.xlane.f32.xlu0 %v3278
    %v3280 = vpop.xlane.xlu0 %3279
    %v3281 = vsel %vm1654, %v3220, 0.0
    %3282 = vadd.xlane.f32.xlu0 %v3281
    %v3283 = vpop.xlane.xlu0 %3282
    %v3284 = vsel %vm1654, %v3222, 0.0
    %3285 = vadd.xlane.f32.xlu0 %v3284
    %v3286 = vpop.xlane.xlu0 %3285
    %v3287 = vsel %vm1677, %v2937, %v3049
    %v3288 = vsel %vm1677, %v2940, %v3052
    %v3289 = vsel %vm1677, %v2943, %v3055
    %v3290 = vsel %vm1677, %v2946, %v3058
    %v3291 = vsel %vm1677, %v2949, %v3061
    %v3292 = vsel %vm1677, %v2952, %v3064
    %v3293 = vsel %vm1677, %v2955, %v3067
    %v3294 = vsel %vm1677, %v2958, %v3070
    %v3295 = vsel %vm1677, %v2961, %v3073
    %v3296 = vsel %vm1677, %v2964, %v3076
    %v3297 = vsel %vm1677, %v2967, %v3079
    %v3298 = vsel %vm1677, %v2970, %v3082
    %v3299 = vsel %vm1677, %v2973, %v3085
    %v3300 = vsel %vm1677, %v2976, %v3088
    %v3301 = vsel %vm1677, %v2979, %v3091
    %v3302 = vsel %vm1677, %v2982, %v3094
    %v3303 = vsel %vm1679, %v3287, %v3145
    %v3304 = vsel %vm1679, %v3288, %v3148
    %v3305 = vsel %vm1679, %v3289, %v3151
    %v3306 = vsel %vm1679, %v3290, %v3154
    %v3307 = vsel %vm1679, %v3291, %v3157
    %v3308 = vsel %vm1679, %v3292, %v3160
    %v3309 = vsel %vm1679, %v3293, %v3163
    %v3310 = vsel %vm1679, %v3294, %v3166
    %v3311 = vsel %vm1679, %v3295, %v3169
    %v3312 = vsel %vm1679, %v3296, %v3172
    %v3313 = vsel %vm1679, %v3297, %v3175
    %v3314 = vsel %vm1679, %v3298, %v3178
    %v3315 = vsel %vm1679, %v3299, %v3181
    %v3316 = vsel %vm1679, %v3300, %v3184
    %v3317 = vsel %vm1679, %v3301, %v3187
    %v3318 = vsel %vm1679, %v3302, %v3190
    %v3319 = vsel %vm1681, %v3303, %v3241
    %v3320 = vsel %vm1681, %v3304, %v3244
    %v3321 = vsel %vm1681, %v3305, %v3247
    %v3322 = vsel %vm1681, %v3306, %v3250
    %v3323 = vsel %vm1681, %v3307, %v3253
    %v3324 = vsel %vm1681, %v3308, %v3256
    %v3325 = vsel %vm1681, %v3309, %v3259
    %v3326 = vsel %vm1681, %v3310, %v3262
    %v3327 = vsel %vm1681, %v3311, %v3265
    %v3328 = vsel %vm1681, %v3312, %v3268
    %v3329 = vsel %vm1681, %v3313, %v3271
    %v3330 = vsel %vm1681, %v3314, %v3274
    %v3331 = vsel %vm1681, %v3315, %v3277
    %v3332 = vsel %vm1681, %v3316, %v3280
    %v3333 = vsel %vm1681, %v3317, %v3283
    %v3334 = vsel %vm1681, %v3318, %v3286
    %v3335 = vadd.f32 %v2306, %v3319
    %v3336 = vadd.f32 %v2307, %v3320
    %v3337 = vadd.f32 %v2308, %v3321
    %v3338 = vadd.f32 %v2309, %v3322
    %v3339 = vadd.f32 %v2310, %v3323
    %v3340 = vadd.f32 %v2311, %v3324
    %v3341 = vadd.f32 %v2312, %v3325
    %v3342 = vadd.f32 %v2313, %v3326
    %v3343 = vadd.f32 %v2314, %v3327
    %v3344 = vadd.f32 %v2315, %v3328
    %v3345 = vadd.f32 %v2316, %v3329
    %v3346 = vadd.f32 %v2317, %v3330
    %v3347 = vadd.f32 %v2318, %v3331
    %v3348 = vadd.f32 %v2319, %v3332
    %v3349 = vadd.f32 %v2320, %v3333
    %v3350 = vadd.f32 %v2321, %v3334
    %v3351 = vsel %vm2322, %v3335, -inf
    %3352 = vmax.xlane.f32.xlu0 %v3351
    %v3353 = vpop.xlane.xlu0 %3352
    %v3354 = vsel %vm2322, %v3336, -inf
    %3355 = vmax.xlane.f32.xlu0 %v3354
    %v3356 = vpop.xlane.xlu0 %3355
    %v3357 = vsel %vm2322, %v3337, -inf
    %3358 = vmax.xlane.f32.xlu0 %v3357
    %v3359 = vpop.xlane.xlu0 %3358
    %v3360 = vsel %vm2322, %v3338, -inf
    %3361 = vmax.xlane.f32.xlu0 %v3360
    %v3362 = vpop.xlane.xlu0 %3361
    %v3363 = vsel %vm2322, %v3339, -inf
    %3364 = vmax.xlane.f32.xlu0 %v3363
    %v3365 = vpop.xlane.xlu0 %3364
    %v3366 = vsel %vm2322, %v3340, -inf
    %3367 = vmax.xlane.f32.xlu0 %v3366
    %v3368 = vpop.xlane.xlu0 %3367
    %v3369 = vsel %vm2322, %v3341, -inf
    %3370 = vmax.xlane.f32.xlu0 %v3369
    %v3371 = vpop.xlane.xlu0 %3370
    %v3372 = vsel %vm2322, %v3342, -inf
    %3373 = vmax.xlane.f32.xlu0 %v3372
    %v3374 = vpop.xlane.xlu0 %3373
    %v3375 = vsel %vm2322, %v3343, -inf
    %3376 = vmax.xlane.f32.xlu0 %v3375
    %v3377 = vpop.xlane.xlu0 %3376
    %v3378 = vsel %vm2322, %v3344, -inf
    %3379 = vmax.xlane.f32.xlu0 %v3378
    %v3380 = vpop.xlane.xlu0 %3379
    %v3381 = vsel %vm2322, %v3345, -inf
    %3382 = vmax.xlane.f32.xlu0 %v3381
    %v3383 = vpop.xlane.xlu0 %3382
    %v3384 = vsel %vm2322, %v3346, -inf
    %3385 = vmax.xlane.f32.xlu0 %v3384
    %v3386 = vpop.xlane.xlu0 %3385
    %v3387 = vsel %vm2322, %v3347, -inf
    %3388 = vmax.xlane.f32.xlu0 %v3387
    %v3389 = vpop.xlane.xlu0 %3388
    %v3390 = vsel %vm2322, %v3348, -inf
    %3391 = vmax.xlane.f32.xlu0 %v3390
    %v3392 = vpop.xlane.xlu0 %3391
    %v3393 = vsel %vm2322, %v3349, -inf
    %3394 = vmax.xlane.f32.xlu0 %v3393
    %v3395 = vpop.xlane.xlu0 %3394
    %v3396 = vsel %vm2322, %v3350, -inf
    %3397 = vmax.xlane.f32.xlu0 %v3396
    %v3398 = vpop.xlane.xlu0 %3397
    %v3399 = vsub.f32 %v3335, %v3353
    %v3400 = vsub.f32 %v3336, %v3356
    %v3401 = vsub.f32 %v3337, %v3359
    %v3402 = vsub.f32 %v3338, %v3362
    %v3403 = vsub.f32 %v3339, %v3365
    %v3404 = vsub.f32 %v3340, %v3368
    %v3405 = vsub.f32 %v3341, %v3371
    %v3406 = vsub.f32 %v3342, %v3374
    %v3407 = vsub.f32 %v3343, %v3377
    %v3408 = vsub.f32 %v3344, %v3380
    %v3409 = vsub.f32 %v3345, %v3383
    %v3410 = vsub.f32 %v3346, %v3386
    %v3411 = vsub.f32 %v3347, %v3389
    %v3412 = vsub.f32 %v3348, %v3392
    %v3413 = vsub.f32 %v3349, %v3395
    %v3414 = vsub.f32 %v3350, %v3398
    %v3415 = vmul.f32 %v3399, 1.442695
    %v3416 = vpow.pop %v3415
    %v3417 = vmul.f32 %v3400, 1.442695
    %v3418 = vpow.pop %v3417
    %v3419 = vmul.f32 %v3401, 1.442695
    %v3420 = vpow.pop %v3419
    %v3421 = vmul.f32 %v3402, 1.442695
    %v3422 = vpow.pop %v3421
    %v3423 = vmul.f32 %v3403, 1.442695
    %v3424 = vpow.pop %v3423
    %v3425 = vmul.f32 %v3404, 1.442695
    %v3426 = vpow.pop %v3425
    %v3427 = vmul.f32 %v3405, 1.442695
    %v3428 = vpow.pop %v3427
    %v3429 = vmul.f32 %v3406, 1.442695
    %v3430 = vpow.pop %v3429
    %v3431 = vmul.f32 %v3407, 1.442695
    %v3432 = vpow.pop %v3431
    %v3433 = vmul.f32 %v3408, 1.442695
    %v3434 = vpow.pop %v3433
    %v3435 = vmul.f32 %v3409, 1.442695
    %v3436 = vpow.pop %v3435
    %v3437 = vmul.f32 %v3410, 1.442695
    %v3438 = vpow.pop %v3437
    %v3439 = vmul.f32 %v3411, 1.442695
    %v3440 = vpow.pop %v3439
    %v3441 = vmul.f32 %v3412, 1.442695
    %v3442 = vpow.pop %v3441
    %v3443 = vmul.f32 %v3413, 1.442695
    %v3444 = vpow.pop %v3443
    %v3445 = vmul.f32 %v3414, 1.442695
    %v3446 = vpow.pop %v3445
    %v3447 = vsel %vm2322, %v3416, 0.0
    %3448 = vadd.xlane.f32.xlu0 %v3447
    %v3449 = vpop.xlane.xlu0 %3448
    %v3450 = vsel %vm2322, %v3418, 0.0
    %3451 = vadd.xlane.f32.xlu0 %v3450
    %v3452 = vpop.xlane.xlu0 %3451
    %v3453 = vsel %vm2322, %v3420, 0.0
    %3454 = vadd.xlane.f32.xlu0 %v3453
    %v3455 = vpop.xlane.xlu0 %3454
    %v3456 = vsel %vm2322, %v3422, 0.0
    %3457 = vadd.xlane.f32.xlu0 %v3456
    %v3458 = vpop.xlane.xlu0 %3457
    %v3459 = vsel %vm2322, %v3424, 0.0
    %3460 = vadd.xlane.f32.xlu0 %v3459
    %v3461 = vpop.xlane.xlu0 %3460
    %v3462 = vsel %vm2322, %v3426, 0.0
    %3463 = vadd.xlane.f32.xlu0 %v3462
    %v3464 = vpop.xlane.xlu0 %3463
    %v3465 = vsel %vm2322, %v3428, 0.0
    %3466 = vadd.xlane.f32.xlu0 %v3465
    %v3467 = vpop.xlane.xlu0 %3466
    %v3468 = vsel %vm2322, %v3430, 0.0
    %3469 = vadd.xlane.f32.xlu0 %v3468
    %v3470 = vpop.xlane.xlu0 %3469
    %v3471 = vsel %vm2322, %v3432, 0.0
    %3472 = vadd.xlane.f32.xlu0 %v3471
    %v3473 = vpop.xlane.xlu0 %3472
    %v3474 = vsel %vm2322, %v3434, 0.0
    %3475 = vadd.xlane.f32.xlu0 %v3474
    %v3476 = vpop.xlane.xlu0 %3475
    %v3477 = vsel %vm2322, %v3436, 0.0
    %3478 = vadd.xlane.f32.xlu0 %v3477
    %v3479 = vpop.xlane.xlu0 %3478
    %v3480 = vsel %vm2322, %v3438, 0.0
    %3481 = vadd.xlane.f32.xlu0 %v3480
    %v3482 = vpop.xlane.xlu0 %3481
    %v3483 = vsel %vm2322, %v3440, 0.0
    %3484 = vadd.xlane.f32.xlu0 %v3483
    %v3485 = vpop.xlane.xlu0 %3484
    %v3486 = vsel %vm2322, %v3442, 0.0
    %3487 = vadd.xlane.f32.xlu0 %v3486
    %v3488 = vpop.xlane.xlu0 %3487
    %v3489 = vsel %vm2322, %v3444, 0.0
    %3490 = vadd.xlane.f32.xlu0 %v3489
    %v3491 = vpop.xlane.xlu0 %3490
    %v3492 = vsel %vm2322, %v3446, 0.0
    %3493 = vadd.xlane.f32.xlu0 %v3492
    %v3494 = vpop.xlane.xlu0 %3493
    %v3495 = vrcp.pop %v3449
    %v3496 = vmul.f32 %v3416, %v3495
    %v3497 = vrcp.pop %v3452
    %v3498 = vmul.f32 %v3418, %v3497
    %v3499 = vrcp.pop %v3455
    %v3500 = vmul.f32 %v3420, %v3499
    %v3501 = vrcp.pop %v3458
    %v3502 = vmul.f32 %v3422, %v3501
    %v3503 = vrcp.pop %v3461
    %v3504 = vmul.f32 %v3424, %v3503
    %v3505 = vrcp.pop %v3464
    %v3506 = vmul.f32 %v3426, %v3505
    %v3507 = vrcp.pop %v3467
    %v3508 = vmul.f32 %v3428, %v3507
    %v3509 = vrcp.pop %v3470
    %v3510 = vmul.f32 %v3430, %v3509
    %v3511 = vrcp.pop %v3473
    %v3512 = vmul.f32 %v3432, %v3511
    %v3513 = vrcp.pop %v3476
    %v3514 = vmul.f32 %v3434, %v3513
    %v3515 = vrcp.pop %v3479
    %v3516 = vmul.f32 %v3436, %v3515
    %v3517 = vrcp.pop %v3482
    %v3518 = vmul.f32 %v3438, %v3517
    %v3519 = vrcp.pop %v3485
    %v3520 = vmul.f32 %v3440, %v3519
    %v3521 = vrcp.pop %v3488
    %v3522 = vmul.f32 %v3442, %v3521
    %v3523 = vrcp.pop %v3491
    %v3524 = vmul.f32 %v3444, %v3523
    %v3525 = vrcp.pop %v3494
    %v3526 = vmul.f32 %v3446, %v3525
    %3528 = vset.pattern.permute.xlu0 0
    %3529 = vperm.xlu0 %3528, %v3496
    %v3530 = vpop.permute.xlu0 %3529
    %3533 = vset.pattern.permute.xlu0 0
    %3534 = vperm.xlu0 %3533, %v3498
    %v3535 = vpop.permute.xlu0 %3534
    %3538 = vset.pattern.permute.xlu0 0
    %3539 = vperm.xlu0 %3538, %v3500
    %v3540 = vpop.permute.xlu0 %3539
    %3543 = vset.pattern.permute.xlu0 0
    %3544 = vperm.xlu0 %3543, %v3502
    %v3545 = vpop.permute.xlu0 %3544
    %3548 = vset.pattern.permute.xlu0 0
    %3549 = vperm.xlu0 %3548, %v3504
    %v3550 = vpop.permute.xlu0 %3549
    %3553 = vset.pattern.permute.xlu0 0
    %3554 = vperm.xlu0 %3553, %v3506
    %v3555 = vpop.permute.xlu0 %3554
    %3558 = vset.pattern.permute.xlu0 0
    %3559 = vperm.xlu0 %3558, %v3508
    %v3560 = vpop.permute.xlu0 %3559
    %3563 = vset.pattern.permute.xlu0 0
    %3564 = vperm.xlu0 %3563, %v3510
    %v3565 = vpop.permute.xlu0 %3564
    %3568 = vset.pattern.permute.xlu0 0
    %3569 = vperm.xlu0 %3568, %v3512
    %v3570 = vpop.permute.xlu0 %3569
    %3573 = vset.pattern.permute.xlu0 0
    %3574 = vperm.xlu0 %3573, %v3514
    %v3575 = vpop.permute.xlu0 %3574
    %3578 = vset.pattern.permute.xlu0 0
    %3579 = vperm.xlu0 %3578, %v3516
    %v3580 = vpop.permute.xlu0 %3579
    %3583 = vset.pattern.permute.xlu0 0
    %3584 = vperm.xlu0 %3583, %v3518
    %v3585 = vpop.permute.xlu0 %3584
    %3588 = vset.pattern.permute.xlu0 0
    %3589 = vperm.xlu0 %3588, %v3520
    %v3590 = vpop.permute.xlu0 %3589
    %3593 = vset.pattern.permute.xlu0 0
    %3594 = vperm.xlu0 %3593, %v3522
    %v3595 = vpop.permute.xlu0 %3594
    %3598 = vset.pattern.permute.xlu0 0
    %3599 = vperm.xlu0 %3598, %v3524
    %v3600 = vpop.permute.xlu0 %3599
    %3603 = vset.pattern.permute.xlu0 0
    %3604 = vperm.xlu0 %3603, %v3526
    %v3605 = vpop.permute.xlu0 %3604
    %3607 = vset.pattern.permute.xlu0 1
    %3608 = vperm.xlu0 %3607, %v3496
    %v3609 = vpop.permute.xlu0 %3608
    %3611 = vset.pattern.permute.xlu0 1
    %3612 = vperm.xlu0 %3611, %v3498
    %v3613 = vpop.permute.xlu0 %3612
    %3615 = vset.pattern.permute.xlu0 1
    %3616 = vperm.xlu0 %3615, %v3500
    %v3617 = vpop.permute.xlu0 %3616
    %3619 = vset.pattern.permute.xlu0 1
    %3620 = vperm.xlu0 %3619, %v3502
    %v3621 = vpop.permute.xlu0 %3620
    %3623 = vset.pattern.permute.xlu0 1
    %3624 = vperm.xlu0 %3623, %v3504
    %v3625 = vpop.permute.xlu0 %3624
    %3627 = vset.pattern.permute.xlu0 1
    %3628 = vperm.xlu0 %3627, %v3506
    %v3629 = vpop.permute.xlu0 %3628
    %3631 = vset.pattern.permute.xlu0 1
    %3632 = vperm.xlu0 %3631, %v3508
    %v3633 = vpop.permute.xlu0 %3632
    %3635 = vset.pattern.permute.xlu0 1
    %3636 = vperm.xlu0 %3635, %v3510
    %v3637 = vpop.permute.xlu0 %3636
    %3639 = vset.pattern.permute.xlu0 1
    %3640 = vperm.xlu0 %3639, %v3512
    %v3641 = vpop.permute.xlu0 %3640
    %3643 = vset.pattern.permute.xlu0 1
    %3644 = vperm.xlu0 %3643, %v3514
    %v3645 = vpop.permute.xlu0 %3644
    %3647 = vset.pattern.permute.xlu0 1
    %3648 = vperm.xlu0 %3647, %v3516
    %v3649 = vpop.permute.xlu0 %3648
    %3651 = vset.pattern.permute.xlu0 1
    %3652 = vperm.xlu0 %3651, %v3518
    %v3653 = vpop.permute.xlu0 %3652
    %3655 = vset.pattern.permute.xlu0 1
    %3656 = vperm.xlu0 %3655, %v3520
    %v3657 = vpop.permute.xlu0 %3656
    %3659 = vset.pattern.permute.xlu0 1
    %3660 = vperm.xlu0 %3659, %v3522
    %v3661 = vpop.permute.xlu0 %3660
    %3663 = vset.pattern.permute.xlu0 1
    %3664 = vperm.xlu0 %3663, %v3524
    %v3665 = vpop.permute.xlu0 %3664
    %3667 = vset.pattern.permute.xlu0 1
    %3668 = vperm.xlu0 %3667, %v3526
    %v3669 = vpop.permute.xlu0 %3668
    %3671 = vset.pattern.permute.xlu0 2
    %3672 = vperm.xlu0 %3671, %v3496
    %v3673 = vpop.permute.xlu0 %3672
    %3675 = vset.pattern.permute.xlu0 2
    %3676 = vperm.xlu0 %3675, %v3498
    %v3677 = vpop.permute.xlu0 %3676
    %3679 = vset.pattern.permute.xlu0 2
    %3680 = vperm.xlu0 %3679, %v3500
    %v3681 = vpop.permute.xlu0 %3680
    %3683 = vset.pattern.permute.xlu0 2
    %3684 = vperm.xlu0 %3683, %v3502
    %v3685 = vpop.permute.xlu0 %3684
    %3687 = vset.pattern.permute.xlu0 2
    %3688 = vperm.xlu0 %3687, %v3504
    %v3689 = vpop.permute.xlu0 %3688
    %3691 = vset.pattern.permute.xlu0 2
    %3692 = vperm.xlu0 %3691, %v3506
    %v3693 = vpop.permute.xlu0 %3692
    %3695 = vset.pattern.permute.xlu0 2
    %3696 = vperm.xlu0 %3695, %v3508
    %v3697 = vpop.permute.xlu0 %3696
    %3699 = vset.pattern.permute.xlu0 2
    %3700 = vperm.xlu0 %3699, %v3510
    %v3701 = vpop.permute.xlu0 %3700
    %3703 = vset.pattern.permute.xlu0 2
    %3704 = vperm.xlu0 %3703, %v3512
    %v3705 = vpop.permute.xlu0 %3704
    %3707 = vset.pattern.permute.xlu0 2
    %3708 = vperm.xlu0 %3707, %v3514
    %v3709 = vpop.permute.xlu0 %3708
    %3711 = vset.pattern.permute.xlu0 2
    %3712 = vperm.xlu0 %3711, %v3516
    %v3713 = vpop.permute.xlu0 %3712
    %3715 = vset.pattern.permute.xlu0 2
    %3716 = vperm.xlu0 %3715, %v3518
    %v3717 = vpop.permute.xlu0 %3716
    %3719 = vset.pattern.permute.xlu0 2
    %3720 = vperm.xlu0 %3719, %v3520
    %v3721 = vpop.permute.xlu0 %3720
    %3723 = vset.pattern.permute.xlu0 2
    %3724 = vperm.xlu0 %3723, %v3522
    %v3725 = vpop.permute.xlu0 %3724
    %3727 = vset.pattern.permute.xlu0 2
    %3728 = vperm.xlu0 %3727, %v3524
    %v3729 = vpop.permute.xlu0 %3728
    %3731 = vset.pattern.permute.xlu0 2
    %3732 = vperm.xlu0 %3731, %v3526
    %v3733 = vpop.permute.xlu0 %3732
    %3735 = vset.pattern.permute.xlu0 3
    %3736 = vperm.xlu0 %3735, %v3496
    %v3737 = vpop.permute.xlu0 %3736
    %3739 = vset.pattern.permute.xlu0 3
    %3740 = vperm.xlu0 %3739, %v3498
    %v3741 = vpop.permute.xlu0 %3740
    %3743 = vset.pattern.permute.xlu0 3
    %3744 = vperm.xlu0 %3743, %v3500
    %v3745 = vpop.permute.xlu0 %3744
    %3747 = vset.pattern.permute.xlu0 3
    %3748 = vperm.xlu0 %3747, %v3502
    %v3749 = vpop.permute.xlu0 %3748
    %3751 = vset.pattern.permute.xlu0 3
    %3752 = vperm.xlu0 %3751, %v3504
    %v3753 = vpop.permute.xlu0 %3752
    %3755 = vset.pattern.permute.xlu0 3
    %3756 = vperm.xlu0 %3755, %v3506
    %v3757 = vpop.permute.xlu0 %3756
    %3759 = vset.pattern.permute.xlu0 3
    %3760 = vperm.xlu0 %3759, %v3508
    %v3761 = vpop.permute.xlu0 %3760
    %3763 = vset.pattern.permute.xlu0 3
    %3764 = vperm.xlu0 %3763, %v3510
    %v3765 = vpop.permute.xlu0 %3764
    %3767 = vset.pattern.permute.xlu0 3
    %3768 = vperm.xlu0 %3767, %v3512
    %v3769 = vpop.permute.xlu0 %3768
    %3771 = vset.pattern.permute.xlu0 3
    %3772 = vperm.xlu0 %3771, %v3514
    %v3773 = vpop.permute.xlu0 %3772
    %3775 = vset.pattern.permute.xlu0 3
    %3776 = vperm.xlu0 %3775, %v3516
    %v3777 = vpop.permute.xlu0 %3776
    %3779 = vset.pattern.permute.xlu0 3
    %3780 = vperm.xlu0 %3779, %v3518
    %v3781 = vpop.permute.xlu0 %3780
    %3783 = vset.pattern.permute.xlu0 3
    %3784 = vperm.xlu0 %3783, %v3520
    %v3785 = vpop.permute.xlu0 %3784
    %3787 = vset.pattern.permute.xlu0 3
    %3788 = vperm.xlu0 %3787, %v3522
    %v3789 = vpop.permute.xlu0 %3788
    %3791 = vset.pattern.permute.xlu0 3
    %3792 = vperm.xlu0 %3791, %v3524
    %v3793 = vpop.permute.xlu0 %3792
    %3795 = vset.pattern.permute.xlu0 3
    %3796 = vperm.xlu0 %3795, %v3526
    %v3797 = vpop.permute.xlu0 %3796
    %v3799 = vsel %vm1417, %v3530, %v3609
    %v3800 = vsel %vm1417, %v3535, %v3613
    %v3801 = vsel %vm1417, %v3540, %v3617
    %v3802 = vsel %vm1417, %v3545, %v3621
    %v3803 = vsel %vm1417, %v3550, %v3625
    %v3804 = vsel %vm1417, %v3555, %v3629
    %v3805 = vsel %vm1417, %v3560, %v3633
    %v3806 = vsel %vm1417, %v3565, %v3637
    %v3807 = vsel %vm1417, %v3570, %v3641
    %v3808 = vsel %vm1417, %v3575, %v3645
    %v3809 = vsel %vm1417, %v3580, %v3649
    %v3810 = vsel %vm1417, %v3585, %v3653
    %v3811 = vsel %vm1417, %v3590, %v3657
    %v3812 = vsel %vm1417, %v3595, %v3661
    %v3813 = vsel %vm1417, %v3600, %v3665
    %v3814 = vsel %vm1417, %v3605, %v3669
    %v3815 = vsel %vm1420, %v3799, %v3673
    %v3816 = vsel %vm1420, %v3800, %v3677
    %v3817 = vsel %vm1420, %v3801, %v3681
    %v3818 = vsel %vm1420, %v3802, %v3685
    %v3819 = vsel %vm1420, %v3803, %v3689
    %v3820 = vsel %vm1420, %v3804, %v3693
    %v3821 = vsel %vm1420, %v3805, %v3697
    %v3822 = vsel %vm1420, %v3806, %v3701
    %v3823 = vsel %vm1420, %v3807, %v3705
    %v3824 = vsel %vm1420, %v3808, %v3709
    %v3825 = vsel %vm1420, %v3809, %v3713
    %v3826 = vsel %vm1420, %v3810, %v3717
    %v3827 = vsel %vm1420, %v3811, %v3721
    %v3828 = vsel %vm1420, %v3812, %v3725
    %v3829 = vsel %vm1420, %v3813, %v3729
    %v3830 = vsel %vm1420, %v3814, %v3733
    %v3831 = vsel %vm1423, %v3815, %v3737
    %v3832 = vsel %vm1423, %v3816, %v3741
    %v3833 = vsel %vm1423, %v3817, %v3745
    %v3834 = vsel %vm1423, %v3818, %v3749
    %v3835 = vsel %vm1423, %v3819, %v3753
    %v3836 = vsel %vm1423, %v3820, %v3757
    %v3837 = vsel %vm1423, %v3821, %v3761
    %v3838 = vsel %vm1423, %v3822, %v3765
    %v3839 = vsel %vm1423, %v3823, %v3769
    %v3840 = vsel %vm1423, %v3824, %v3773
    %v3841 = vsel %vm1423, %v3825, %v3777
    %v3842 = vsel %vm1423, %v3826, %v3781
    %v3843 = vsel %vm1423, %v3827, %v3785
    %v3844 = vsel %vm1423, %v3828, %v3789
    %v3845 = vsel %vm1423, %v3829, %v3793
    %v3846 = vsel %vm1423, %v3830, %v3797
    %v3847 = vmul.f32 %v3831, %v1342
    %v3848 = vmul.f32 %v3832, %v1343
    %v3849 = vmul.f32 %v3833, %v1344
    %v3850 = vmul.f32 %v3834, %v1345
    %v3851 = vmul.f32 %v3835, %v1346
    %v3852 = vmul.f32 %v3836, %v1347
    %v3853 = vmul.f32 %v3837, %v1348
    %v3854 = vmul.f32 %v3838, %v1349
    %v3855 = vmul.f32 %v3839, %v1350
    %v3856 = vmul.f32 %v3840, %v1351
    %v3857 = vmul.f32 %v3841, %v1352
    %v3858 = vmul.f32 %v3842, %v1353
    %v3859 = vmul.f32 %v3843, %v1354
    %v3860 = vmul.f32 %v3844, %v1355
    %v3861 = vmul.f32 %v3845, %v1356
    %v3862 = vmul.f32 %v3846, %v1357
    %v3863 = vsel %vm110, %v3847, 0.0
    %v3864 = vsel %vm110, %v3848, 0.0
    %v3865 = vadd.f32 %v3863, %v3864
    %v3866 = vsel %vm110, %v3849, 0.0
    %v3867 = vadd.f32 %v3865, %v3866
    %v3868 = vsel %vm110, %v3850, 0.0
    %v3869 = vadd.f32 %v3867, %v3868
    %v3870 = vsel %vm110, %v3851, 0.0
    %v3871 = vadd.f32 %v3869, %v3870
    %v3872 = vsel %vm110, %v3852, 0.0
    %v3873 = vadd.f32 %v3871, %v3872
    %v3874 = vsel %vm110, %v3853, 0.0
    %v3875 = vadd.f32 %v3873, %v3874
    %v3876 = vsel %vm110, %v3854, 0.0
    %v3877 = vadd.f32 %v3875, %v3876
    %v3878 = vsel %vm110, %v3855, 0.0
    %v3879 = vadd.f32 %v3877, %v3878
    %v3880 = vsel %vm110, %v3856, 0.0
    %v3881 = vadd.f32 %v3879, %v3880
    %v3882 = vsel %vm110, %v3857, 0.0
    %v3883 = vadd.f32 %v3881, %v3882
    %v3884 = vsel %vm110, %v3858, 0.0
    %v3885 = vadd.f32 %v3883, %v3884
    %v3886 = vsel %vm110, %v3859, 0.0
    %v3887 = vadd.f32 %v3885, %v3886
    %v3888 = vsel %vm110, %v3860, 0.0
    %v3889 = vadd.f32 %v3887, %v3888
    %v3890 = vsel %vm110, %v3861, 0.0
    %v3891 = vadd.f32 %v3889, %v3890
    %v3892 = vsel %vm110, %v3862, 0.0
    %v3893 = vadd.f32 %v3891, %v3892
    %v3894 = vmul.f32 %v3893, %v3893
    %v3895 = vsel %vm1654, %v3894, 0.0
    %3896 = vadd.xlane.f32.xlu0 %v3895
    %v3897 = vpop.xlane.xlu0 %3896
    %3899 = vrot.lane.b32.xlu0 %v3894, 112
    %v3900 = vpop.permute.xlu0 %3899
    %v3902 = vsel %vm1654, %v3900, 0.0
    %3903 = vadd.xlane.f32.xlu0 %v3902
    %v3904 = vpop.xlane.xlu0 %3903
    %3905 = vrot.lane.b32.xlu0 %v3894, 96
    %v3906 = vpop.permute.xlu0 %3905
    %v3908 = vsel %vm1654, %v3906, 0.0
    %3909 = vadd.xlane.f32.xlu0 %v3908
    %v3910 = vpop.xlane.xlu0 %3909
    %3911 = vrot.lane.b32.xlu0 %v3894, 80
    %v3912 = vpop.permute.xlu0 %3911
    %v3914 = vsel %vm1654, %v3912, 0.0
    %3915 = vadd.xlane.f32.xlu0 %v3914
    %v3916 = vpop.xlane.xlu0 %3915
    %v3917 = vsel %vm1677, %v3897, %v3904
    %v3918 = vsel %vm1679, %v3917, %v3910
    %v3919 = vsel %vm1681, %v3918, %v3916
    %v3920 = vadd.f32 %v3919, 1e-09
    %v3921 = vrsqrt.pop %v3920
    %v3922 = vmul.f32 %v3919, %v3921
    %v3923 = vadd.f32 %v3919, 1.0
    %v3924 = vrcp.pop %v3923
    %v3925 = vmul.f32 %v3922, %v3924
    %3927 = vset.pattern.permute.xlu0 0
    %3928 = vperm.xlu0 %3927, %v3925
    %v3929 = vpop.permute.xlu0 %3928
    %3931 = vset.pattern.permute.xlu0 1
    %3932 = vperm.xlu0 %3931, %v3925
    %v3933 = vpop.permute.xlu0 %3932
    %3935 = vset.pattern.permute.xlu0 2
    %3936 = vperm.xlu0 %3935, %v3925
    %v3937 = vpop.permute.xlu0 %3936
    %3939 = vset.pattern.permute.xlu0 3
    %3940 = vperm.xlu0 %3939, %v3925
    %v3941 = vpop.permute.xlu0 %3940
    %v3943 = vsel %vm1417, %v3929, %v3933
    %v3944 = vsel %vm1420, %v3943, %v3937
    %v3945 = vsel %vm1423, %v3944, %v3941
    %v3946 = vmul.f32 %v3893, %v3945
    %v3947 = vmul.f32 %v1342, %v3946
    %v3948 = vmul.f32 %v1343, %v3946
    %v3949 = vmul.f32 %v1344, %v3946
    %v3950 = vmul.f32 %v1345, %v3946
    %v3951 = vmul.f32 %v1346, %v3946
    %v3952 = vmul.f32 %v1347, %v3946
    %v3953 = vmul.f32 %v1348, %v3946
    %v3954 = vmul.f32 %v1349, %v3946
    %v3955 = vmul.f32 %v1350, %v3946
    %v3956 = vmul.f32 %v1351, %v3946
    %v3957 = vmul.f32 %v1352, %v3946
    %v3958 = vmul.f32 %v1353, %v3946
    %v3959 = vmul.f32 %v1354, %v3946
    %v3960 = vmul.f32 %v1355, %v3946
    %v3961 = vmul.f32 %v1356, %v3946
    %v3962 = vmul.f32 %v1357, %v3946
    %v3963 = vsel %vm1654, %v3947, 0.0
    %3964 = vadd.xlane.f32.xlu0 %v3963
    %v3965 = vpop.xlane.xlu0 %3964
    %v3966 = vsel %vm1654, %v3948, 0.0
    %3967 = vadd.xlane.f32.xlu0 %v3966
    %v3968 = vpop.xlane.xlu0 %3967
    %v3969 = vsel %vm1654, %v3949, 0.0
    %3970 = vadd.xlane.f32.xlu0 %v3969
    %v3971 = vpop.xlane.xlu0 %3970
    %v3972 = vsel %vm1654, %v3950, 0.0
    %3973 = vadd.xlane.f32.xlu0 %v3972
    %v3974 = vpop.xlane.xlu0 %3973
    %v3975 = vsel %vm1654, %v3951, 0.0
    %3976 = vadd.xlane.f32.xlu0 %v3975
    %v3977 = vpop.xlane.xlu0 %3976
    %v3978 = vsel %vm1654, %v3952, 0.0
    %3979 = vadd.xlane.f32.xlu0 %v3978
    %v3980 = vpop.xlane.xlu0 %3979
    %v3981 = vsel %vm1654, %v3953, 0.0
    %3982 = vadd.xlane.f32.xlu0 %v3981
    %v3983 = vpop.xlane.xlu0 %3982
    %v3984 = vsel %vm1654, %v3954, 0.0
    %3985 = vadd.xlane.f32.xlu0 %v3984
    %v3986 = vpop.xlane.xlu0 %3985
    %v3987 = vsel %vm1654, %v3955, 0.0
    %3988 = vadd.xlane.f32.xlu0 %v3987
    %v3989 = vpop.xlane.xlu0 %3988
    %v3990 = vsel %vm1654, %v3956, 0.0
    %3991 = vadd.xlane.f32.xlu0 %v3990
    %v3992 = vpop.xlane.xlu0 %3991
    %v3993 = vsel %vm1654, %v3957, 0.0
    %3994 = vadd.xlane.f32.xlu0 %v3993
    %v3995 = vpop.xlane.xlu0 %3994
    %v3996 = vsel %vm1654, %v3958, 0.0
    %3997 = vadd.xlane.f32.xlu0 %v3996
    %v3998 = vpop.xlane.xlu0 %3997
    %v3999 = vsel %vm1654, %v3959, 0.0
    %4000 = vadd.xlane.f32.xlu0 %v3999
    %v4001 = vpop.xlane.xlu0 %4000
    %v4002 = vsel %vm1654, %v3960, 0.0
    %4003 = vadd.xlane.f32.xlu0 %v4002
    %v4004 = vpop.xlane.xlu0 %4003
    %v4005 = vsel %vm1654, %v3961, 0.0
    %4006 = vadd.xlane.f32.xlu0 %v4005
    %v4007 = vpop.xlane.xlu0 %4006
    %v4008 = vsel %vm1654, %v3962, 0.0
    %4009 = vadd.xlane.f32.xlu0 %v4008
    %v4010 = vpop.xlane.xlu0 %4009
    %4027 = vrot.lane.b32.xlu0 %v3947, 112
    %v4028 = vpop.permute.xlu0 %4027
    %4029 = vrot.lane.b32.xlu0 %v3948, 112
    %v4030 = vpop.permute.xlu0 %4029
    %4031 = vrot.lane.b32.xlu0 %v3949, 112
    %v4032 = vpop.permute.xlu0 %4031
    %4033 = vrot.lane.b32.xlu0 %v3950, 112
    %v4034 = vpop.permute.xlu0 %4033
    %4035 = vrot.lane.b32.xlu0 %v3951, 112
    %v4036 = vpop.permute.xlu0 %4035
    %4037 = vrot.lane.b32.xlu0 %v3952, 112
    %v4038 = vpop.permute.xlu0 %4037
    %4039 = vrot.lane.b32.xlu0 %v3953, 112
    %v4040 = vpop.permute.xlu0 %4039
    %4041 = vrot.lane.b32.xlu0 %v3954, 112
    %v4042 = vpop.permute.xlu0 %4041
    %4043 = vrot.lane.b32.xlu0 %v3955, 112
    %v4044 = vpop.permute.xlu0 %4043
    %4045 = vrot.lane.b32.xlu0 %v3956, 112
    %v4046 = vpop.permute.xlu0 %4045
    %4047 = vrot.lane.b32.xlu0 %v3957, 112
    %v4048 = vpop.permute.xlu0 %4047
    %4049 = vrot.lane.b32.xlu0 %v3958, 112
    %v4050 = vpop.permute.xlu0 %4049
    %4051 = vrot.lane.b32.xlu0 %v3959, 112
    %v4052 = vpop.permute.xlu0 %4051
    %4053 = vrot.lane.b32.xlu0 %v3960, 112
    %v4054 = vpop.permute.xlu0 %4053
    %4055 = vrot.lane.b32.xlu0 %v3961, 112
    %v4056 = vpop.permute.xlu0 %4055
    %4057 = vrot.lane.b32.xlu0 %v3962, 112
    %v4058 = vpop.permute.xlu0 %4057
    %v4075 = vsel %vm1654, %v4028, 0.0
    %4076 = vadd.xlane.f32.xlu0 %v4075
    %v4077 = vpop.xlane.xlu0 %4076
    %v4078 = vsel %vm1654, %v4030, 0.0
    %4079 = vadd.xlane.f32.xlu0 %v4078
    %v4080 = vpop.xlane.xlu0 %4079
    %v4081 = vsel %vm1654, %v4032, 0.0
    %4082 = vadd.xlane.f32.xlu0 %v4081
    %v4083 = vpop.xlane.xlu0 %4082
    %v4084 = vsel %vm1654, %v4034, 0.0
    %4085 = vadd.xlane.f32.xlu0 %v4084
    %v4086 = vpop.xlane.xlu0 %4085
    %v4087 = vsel %vm1654, %v4036, 0.0
    %4088 = vadd.xlane.f32.xlu0 %v4087
    %v4089 = vpop.xlane.xlu0 %4088
    %v4090 = vsel %vm1654, %v4038, 0.0
    %4091 = vadd.xlane.f32.xlu0 %v4090
    %v4092 = vpop.xlane.xlu0 %4091
    %v4093 = vsel %vm1654, %v4040, 0.0
    %4094 = vadd.xlane.f32.xlu0 %v4093
    %v4095 = vpop.xlane.xlu0 %4094
    %v4096 = vsel %vm1654, %v4042, 0.0
    %4097 = vadd.xlane.f32.xlu0 %v4096
    %v4098 = vpop.xlane.xlu0 %4097
    %v4099 = vsel %vm1654, %v4044, 0.0
    %4100 = vadd.xlane.f32.xlu0 %v4099
    %v4101 = vpop.xlane.xlu0 %4100
    %v4102 = vsel %vm1654, %v4046, 0.0
    %4103 = vadd.xlane.f32.xlu0 %v4102
    %v4104 = vpop.xlane.xlu0 %4103
    %v4105 = vsel %vm1654, %v4048, 0.0
    %4106 = vadd.xlane.f32.xlu0 %v4105
    %v4107 = vpop.xlane.xlu0 %4106
    %v4108 = vsel %vm1654, %v4050, 0.0
    %4109 = vadd.xlane.f32.xlu0 %v4108
    %v4110 = vpop.xlane.xlu0 %4109
    %v4111 = vsel %vm1654, %v4052, 0.0
    %4112 = vadd.xlane.f32.xlu0 %v4111
    %v4113 = vpop.xlane.xlu0 %4112
    %v4114 = vsel %vm1654, %v4054, 0.0
    %4115 = vadd.xlane.f32.xlu0 %v4114
    %v4116 = vpop.xlane.xlu0 %4115
    %v4117 = vsel %vm1654, %v4056, 0.0
    %4118 = vadd.xlane.f32.xlu0 %v4117
    %v4119 = vpop.xlane.xlu0 %4118
    %v4120 = vsel %vm1654, %v4058, 0.0
    %4121 = vadd.xlane.f32.xlu0 %v4120
    %v4122 = vpop.xlane.xlu0 %4121
    %4123 = vrot.lane.b32.xlu0 %v3947, 96
    %v4124 = vpop.permute.xlu0 %4123
    %4125 = vrot.lane.b32.xlu0 %v3948, 96
    %v4126 = vpop.permute.xlu0 %4125
    %4127 = vrot.lane.b32.xlu0 %v3949, 96
    %v4128 = vpop.permute.xlu0 %4127
    %4129 = vrot.lane.b32.xlu0 %v3950, 96
    %v4130 = vpop.permute.xlu0 %4129
    %4131 = vrot.lane.b32.xlu0 %v3951, 96
    %v4132 = vpop.permute.xlu0 %4131
    %4133 = vrot.lane.b32.xlu0 %v3952, 96
    %v4134 = vpop.permute.xlu0 %4133
    %4135 = vrot.lane.b32.xlu0 %v3953, 96
    %v4136 = vpop.permute.xlu0 %4135
    %4137 = vrot.lane.b32.xlu0 %v3954, 96
    %v4138 = vpop.permute.xlu0 %4137
    %4139 = vrot.lane.b32.xlu0 %v3955, 96
    %v4140 = vpop.permute.xlu0 %4139
    %4141 = vrot.lane.b32.xlu0 %v3956, 96
    %v4142 = vpop.permute.xlu0 %4141
    %4143 = vrot.lane.b32.xlu0 %v3957, 96
    %v4144 = vpop.permute.xlu0 %4143
    %4145 = vrot.lane.b32.xlu0 %v3958, 96
    %v4146 = vpop.permute.xlu0 %4145
    %4147 = vrot.lane.b32.xlu0 %v3959, 96
    %v4148 = vpop.permute.xlu0 %4147
    %4149 = vrot.lane.b32.xlu0 %v3960, 96
    %v4150 = vpop.permute.xlu0 %4149
    %4151 = vrot.lane.b32.xlu0 %v3961, 96
    %v4152 = vpop.permute.xlu0 %4151
    %4153 = vrot.lane.b32.xlu0 %v3962, 96
    %v4154 = vpop.permute.xlu0 %4153
    %v4171 = vsel %vm1654, %v4124, 0.0
    %4172 = vadd.xlane.f32.xlu0 %v4171
    %v4173 = vpop.xlane.xlu0 %4172
    %v4174 = vsel %vm1654, %v4126, 0.0
    %4175 = vadd.xlane.f32.xlu0 %v4174
    %v4176 = vpop.xlane.xlu0 %4175
    %v4177 = vsel %vm1654, %v4128, 0.0
    %4178 = vadd.xlane.f32.xlu0 %v4177
    %v4179 = vpop.xlane.xlu0 %4178
    %v4180 = vsel %vm1654, %v4130, 0.0
    %4181 = vadd.xlane.f32.xlu0 %v4180
    %v4182 = vpop.xlane.xlu0 %4181
    %v4183 = vsel %vm1654, %v4132, 0.0
    %4184 = vadd.xlane.f32.xlu0 %v4183
    %v4185 = vpop.xlane.xlu0 %4184
    %v4186 = vsel %vm1654, %v4134, 0.0
    %4187 = vadd.xlane.f32.xlu0 %v4186
    %v4188 = vpop.xlane.xlu0 %4187
    %v4189 = vsel %vm1654, %v4136, 0.0
    %4190 = vadd.xlane.f32.xlu0 %v4189
    %v4191 = vpop.xlane.xlu0 %4190
    %v4192 = vsel %vm1654, %v4138, 0.0
    %4193 = vadd.xlane.f32.xlu0 %v4192
    %v4194 = vpop.xlane.xlu0 %4193
    %v4195 = vsel %vm1654, %v4140, 0.0
    %4196 = vadd.xlane.f32.xlu0 %v4195
    %v4197 = vpop.xlane.xlu0 %4196
    %v4198 = vsel %vm1654, %v4142, 0.0
    %4199 = vadd.xlane.f32.xlu0 %v4198
    %v4200 = vpop.xlane.xlu0 %4199
    %v4201 = vsel %vm1654, %v4144, 0.0
    %4202 = vadd.xlane.f32.xlu0 %v4201
    %v4203 = vpop.xlane.xlu0 %4202
    %v4204 = vsel %vm1654, %v4146, 0.0
    %4205 = vadd.xlane.f32.xlu0 %v4204
    %v4206 = vpop.xlane.xlu0 %4205
    %v4207 = vsel %vm1654, %v4148, 0.0
    %4208 = vadd.xlane.f32.xlu0 %v4207
    %v4209 = vpop.xlane.xlu0 %4208
    %v4210 = vsel %vm1654, %v4150, 0.0
    %4211 = vadd.xlane.f32.xlu0 %v4210
    %v4212 = vpop.xlane.xlu0 %4211
    %v4213 = vsel %vm1654, %v4152, 0.0
    %4214 = vadd.xlane.f32.xlu0 %v4213
    %v4215 = vpop.xlane.xlu0 %4214
    %v4216 = vsel %vm1654, %v4154, 0.0
    %4217 = vadd.xlane.f32.xlu0 %v4216
    %v4218 = vpop.xlane.xlu0 %4217
    %4219 = vrot.lane.b32.xlu0 %v3947, 80
    %v4220 = vpop.permute.xlu0 %4219
    %4221 = vrot.lane.b32.xlu0 %v3948, 80
    %v4222 = vpop.permute.xlu0 %4221
    %4223 = vrot.lane.b32.xlu0 %v3949, 80
    %v4224 = vpop.permute.xlu0 %4223
    %4225 = vrot.lane.b32.xlu0 %v3950, 80
    %v4226 = vpop.permute.xlu0 %4225
    %4227 = vrot.lane.b32.xlu0 %v3951, 80
    %v4228 = vpop.permute.xlu0 %4227
    %4229 = vrot.lane.b32.xlu0 %v3952, 80
    %v4230 = vpop.permute.xlu0 %4229
    %4231 = vrot.lane.b32.xlu0 %v3953, 80
    %v4232 = vpop.permute.xlu0 %4231
    %4233 = vrot.lane.b32.xlu0 %v3954, 80
    %v4234 = vpop.permute.xlu0 %4233
    %4235 = vrot.lane.b32.xlu0 %v3955, 80
    %v4236 = vpop.permute.xlu0 %4235
    %4237 = vrot.lane.b32.xlu0 %v3956, 80
    %v4238 = vpop.permute.xlu0 %4237
    %4239 = vrot.lane.b32.xlu0 %v3957, 80
    %v4240 = vpop.permute.xlu0 %4239
    %4241 = vrot.lane.b32.xlu0 %v3958, 80
    %v4242 = vpop.permute.xlu0 %4241
    %4243 = vrot.lane.b32.xlu0 %v3959, 80
    %v4244 = vpop.permute.xlu0 %4243
    %4245 = vrot.lane.b32.xlu0 %v3960, 80
    %v4246 = vpop.permute.xlu0 %4245
    %4247 = vrot.lane.b32.xlu0 %v3961, 80
    %v4248 = vpop.permute.xlu0 %4247
    %4249 = vrot.lane.b32.xlu0 %v3962, 80
    %v4250 = vpop.permute.xlu0 %4249
    %v4267 = vsel %vm1654, %v4220, 0.0
    %4268 = vadd.xlane.f32.xlu0 %v4267
    %v4269 = vpop.xlane.xlu0 %4268
    %v4270 = vsel %vm1654, %v4222, 0.0
    %4271 = vadd.xlane.f32.xlu0 %v4270
    %v4272 = vpop.xlane.xlu0 %4271
    %v4273 = vsel %vm1654, %v4224, 0.0
    %4274 = vadd.xlane.f32.xlu0 %v4273
    %v4275 = vpop.xlane.xlu0 %4274
    %v4276 = vsel %vm1654, %v4226, 0.0
    %4277 = vadd.xlane.f32.xlu0 %v4276
    %v4278 = vpop.xlane.xlu0 %4277
    %v4279 = vsel %vm1654, %v4228, 0.0
    %4280 = vadd.xlane.f32.xlu0 %v4279
    %v4281 = vpop.xlane.xlu0 %4280
    %v4282 = vsel %vm1654, %v4230, 0.0
    %4283 = vadd.xlane.f32.xlu0 %v4282
    %v4284 = vpop.xlane.xlu0 %4283
    %v4285 = vsel %vm1654, %v4232, 0.0
    %4286 = vadd.xlane.f32.xlu0 %v4285
    %v4287 = vpop.xlane.xlu0 %4286
    %v4288 = vsel %vm1654, %v4234, 0.0
    %4289 = vadd.xlane.f32.xlu0 %v4288
    %v4290 = vpop.xlane.xlu0 %4289
    %v4291 = vsel %vm1654, %v4236, 0.0
    %4292 = vadd.xlane.f32.xlu0 %v4291
    %v4293 = vpop.xlane.xlu0 %4292
    %v4294 = vsel %vm1654, %v4238, 0.0
    %4295 = vadd.xlane.f32.xlu0 %v4294
    %v4296 = vpop.xlane.xlu0 %4295
    %v4297 = vsel %vm1654, %v4240, 0.0
    %4298 = vadd.xlane.f32.xlu0 %v4297
    %v4299 = vpop.xlane.xlu0 %4298
    %v4300 = vsel %vm1654, %v4242, 0.0
    %4301 = vadd.xlane.f32.xlu0 %v4300
    %v4302 = vpop.xlane.xlu0 %4301
    %v4303 = vsel %vm1654, %v4244, 0.0
    %4304 = vadd.xlane.f32.xlu0 %v4303
    %v4305 = vpop.xlane.xlu0 %4304
    %v4306 = vsel %vm1654, %v4246, 0.0
    %4307 = vadd.xlane.f32.xlu0 %v4306
    %v4308 = vpop.xlane.xlu0 %4307
    %v4309 = vsel %vm1654, %v4248, 0.0
    %4310 = vadd.xlane.f32.xlu0 %v4309
    %v4311 = vpop.xlane.xlu0 %4310
    %v4312 = vsel %vm1654, %v4250, 0.0
    %4313 = vadd.xlane.f32.xlu0 %v4312
    %v4314 = vpop.xlane.xlu0 %4313
    %v4315 = vsel %vm1677, %v3965, %v4077
    %v4316 = vsel %vm1677, %v3968, %v4080
    %v4317 = vsel %vm1677, %v3971, %v4083
    %v4318 = vsel %vm1677, %v3974, %v4086
    %v4319 = vsel %vm1677, %v3977, %v4089
    %v4320 = vsel %vm1677, %v3980, %v4092
    %v4321 = vsel %vm1677, %v3983, %v4095
    %v4322 = vsel %vm1677, %v3986, %v4098
    %v4323 = vsel %vm1677, %v3989, %v4101
    %v4324 = vsel %vm1677, %v3992, %v4104
    %v4325 = vsel %vm1677, %v3995, %v4107
    %v4326 = vsel %vm1677, %v3998, %v4110
    %v4327 = vsel %vm1677, %v4001, %v4113
    %v4328 = vsel %vm1677, %v4004, %v4116
    %v4329 = vsel %vm1677, %v4007, %v4119
    %v4330 = vsel %vm1677, %v4010, %v4122
    %v4331 = vsel %vm1679, %v4315, %v4173
    %v4332 = vsel %vm1679, %v4316, %v4176
    %v4333 = vsel %vm1679, %v4317, %v4179
    %v4334 = vsel %vm1679, %v4318, %v4182
    %v4335 = vsel %vm1679, %v4319, %v4185
    %v4336 = vsel %vm1679, %v4320, %v4188
    %v4337 = vsel %vm1679, %v4321, %v4191
    %v4338 = vsel %vm1679, %v4322, %v4194
    %v4339 = vsel %vm1679, %v4323, %v4197
    %v4340 = vsel %vm1679, %v4324, %v4200
    %v4341 = vsel %vm1679, %v4325, %v4203
    %v4342 = vsel %vm1679, %v4326, %v4206
    %v4343 = vsel %vm1679, %v4327, %v4209
    %v4344 = vsel %vm1679, %v4328, %v4212
    %v4345 = vsel %vm1679, %v4329, %v4215
    %v4346 = vsel %vm1679, %v4330, %v4218
    %v4347 = vsel %vm1681, %v4331, %v4269
    %v4348 = vsel %vm1681, %v4332, %v4272
    %v4349 = vsel %vm1681, %v4333, %v4275
    %v4350 = vsel %vm1681, %v4334, %v4278
    %v4351 = vsel %vm1681, %v4335, %v4281
    %v4352 = vsel %vm1681, %v4336, %v4284
    %v4353 = vsel %vm1681, %v4337, %v4287
    %v4354 = vsel %vm1681, %v4338, %v4290
    %v4355 = vsel %vm1681, %v4339, %v4293
    %v4356 = vsel %vm1681, %v4340, %v4296
    %v4357 = vsel %vm1681, %v4341, %v4299
    %v4358 = vsel %vm1681, %v4342, %v4302
    %v4359 = vsel %vm1681, %v4343, %v4305
    %v4360 = vsel %vm1681, %v4344, %v4308
    %v4361 = vsel %vm1681, %v4345, %v4311
    %v4362 = vsel %vm1681, %v4346, %v4314
    %v4363 = vadd.f32 %v3335, %v4347
    %v4364 = vadd.f32 %v3336, %v4348
    %v4365 = vadd.f32 %v3337, %v4349
    %v4366 = vadd.f32 %v3338, %v4350
    %v4367 = vadd.f32 %v3339, %v4351
    %v4368 = vadd.f32 %v3340, %v4352
    %v4369 = vadd.f32 %v3341, %v4353
    %v4370 = vadd.f32 %v3342, %v4354
    %v4371 = vadd.f32 %v3343, %v4355
    %v4372 = vadd.f32 %v3344, %v4356
    %v4373 = vadd.f32 %v3345, %v4357
    %v4374 = vadd.f32 %v3346, %v4358
    %v4375 = vadd.f32 %v3347, %v4359
    %v4376 = vadd.f32 %v3348, %v4360
    %v4377 = vadd.f32 %v3349, %v4361
    %v4378 = vadd.f32 %v3350, %v4362
    %v4379 = vsel %vm2322, %v4363, -inf
    %4380 = vmax.xlane.f32.xlu0 %v4379
    %v4381 = vpop.xlane.xlu0 %4380
    %v4382 = vsel %vm2322, %v4364, -inf
    %4383 = vmax.xlane.f32.xlu0 %v4382
    %v4384 = vpop.xlane.xlu0 %4383
    %v4385 = vsel %vm2322, %v4365, -inf
    %4386 = vmax.xlane.f32.xlu0 %v4385
    %v4387 = vpop.xlane.xlu0 %4386
    %v4388 = vsel %vm2322, %v4366, -inf
    %4389 = vmax.xlane.f32.xlu0 %v4388
    %v4390 = vpop.xlane.xlu0 %4389
    %v4391 = vsel %vm2322, %v4367, -inf
    %4392 = vmax.xlane.f32.xlu0 %v4391
    %v4393 = vpop.xlane.xlu0 %4392
    %v4394 = vsel %vm2322, %v4368, -inf
    %4395 = vmax.xlane.f32.xlu0 %v4394
    %v4396 = vpop.xlane.xlu0 %4395
    %v4397 = vsel %vm2322, %v4369, -inf
    %4398 = vmax.xlane.f32.xlu0 %v4397
    %v4399 = vpop.xlane.xlu0 %4398
    %v4400 = vsel %vm2322, %v4370, -inf
    %4401 = vmax.xlane.f32.xlu0 %v4400
    %v4402 = vpop.xlane.xlu0 %4401
    %v4403 = vsel %vm2322, %v4371, -inf
    %4404 = vmax.xlane.f32.xlu0 %v4403
    %v4405 = vpop.xlane.xlu0 %4404
    %v4406 = vsel %vm2322, %v4372, -inf
    %4407 = vmax.xlane.f32.xlu0 %v4406
    %v4408 = vpop.xlane.xlu0 %4407
    %v4409 = vsel %vm2322, %v4373, -inf
    %4410 = vmax.xlane.f32.xlu0 %v4409
    %v4411 = vpop.xlane.xlu0 %4410
    %v4412 = vsel %vm2322, %v4374, -inf
    %4413 = vmax.xlane.f32.xlu0 %v4412
    %v4414 = vpop.xlane.xlu0 %4413
    %v4415 = vsel %vm2322, %v4375, -inf
    %4416 = vmax.xlane.f32.xlu0 %v4415
    %v4417 = vpop.xlane.xlu0 %4416
    %v4418 = vsel %vm2322, %v4376, -inf
    %4419 = vmax.xlane.f32.xlu0 %v4418
    %v4420 = vpop.xlane.xlu0 %4419
    %v4421 = vsel %vm2322, %v4377, -inf
    %4422 = vmax.xlane.f32.xlu0 %v4421
    %v4423 = vpop.xlane.xlu0 %4422
    %v4424 = vsel %vm2322, %v4378, -inf
    %4425 = vmax.xlane.f32.xlu0 %v4424
    %v4426 = vpop.xlane.xlu0 %4425
    %v4427 = vsub.f32 %v4363, %v4381
    %v4428 = vsub.f32 %v4364, %v4384
    %v4429 = vsub.f32 %v4365, %v4387
    %v4430 = vsub.f32 %v4366, %v4390
    %v4431 = vsub.f32 %v4367, %v4393
    %v4432 = vsub.f32 %v4368, %v4396
    %v4433 = vsub.f32 %v4369, %v4399
    %v4434 = vsub.f32 %v4370, %v4402
    %v4435 = vsub.f32 %v4371, %v4405
    %v4436 = vsub.f32 %v4372, %v4408
    %v4437 = vsub.f32 %v4373, %v4411
    %v4438 = vsub.f32 %v4374, %v4414
    %v4439 = vsub.f32 %v4375, %v4417
    %v4440 = vsub.f32 %v4376, %v4420
    %v4441 = vsub.f32 %v4377, %v4423
    %v4442 = vsub.f32 %v4378, %v4426
    %v4443 = vmul.f32 %v4427, 1.442695
    %v4444 = vpow.pop %v4443
    %v4445 = vmul.f32 %v4428, 1.442695
    %v4446 = vpow.pop %v4445
    %v4447 = vmul.f32 %v4429, 1.442695
    %v4448 = vpow.pop %v4447
    %v4449 = vmul.f32 %v4430, 1.442695
    %v4450 = vpow.pop %v4449
    %v4451 = vmul.f32 %v4431, 1.442695
    %v4452 = vpow.pop %v4451
    %v4453 = vmul.f32 %v4432, 1.442695
    %v4454 = vpow.pop %v4453
    %v4455 = vmul.f32 %v4433, 1.442695
    %v4456 = vpow.pop %v4455
    %v4457 = vmul.f32 %v4434, 1.442695
    %v4458 = vpow.pop %v4457
    %v4459 = vmul.f32 %v4435, 1.442695
    %v4460 = vpow.pop %v4459
    %v4461 = vmul.f32 %v4436, 1.442695
    %v4462 = vpow.pop %v4461
    %v4463 = vmul.f32 %v4437, 1.442695
    %v4464 = vpow.pop %v4463
    %v4465 = vmul.f32 %v4438, 1.442695
    %v4466 = vpow.pop %v4465
    %v4467 = vmul.f32 %v4439, 1.442695
    %v4468 = vpow.pop %v4467
    %v4469 = vmul.f32 %v4440, 1.442695
    %v4470 = vpow.pop %v4469
    %v4471 = vmul.f32 %v4441, 1.442695
    %v4472 = vpow.pop %v4471
    %v4473 = vmul.f32 %v4442, 1.442695
    %v4474 = vpow.pop %v4473
    %v4475 = vsel %vm2322, %v4444, 0.0
    %4476 = vadd.xlane.f32.xlu0 %v4475
    %v4477 = vpop.xlane.xlu0 %4476
    %v4478 = vsel %vm2322, %v4446, 0.0
    %4479 = vadd.xlane.f32.xlu0 %v4478
    %v4480 = vpop.xlane.xlu0 %4479
    %v4481 = vsel %vm2322, %v4448, 0.0
    %4482 = vadd.xlane.f32.xlu0 %v4481
    %v4483 = vpop.xlane.xlu0 %4482
    %v4484 = vsel %vm2322, %v4450, 0.0
    %4485 = vadd.xlane.f32.xlu0 %v4484
    %v4486 = vpop.xlane.xlu0 %4485
    %v4487 = vsel %vm2322, %v4452, 0.0
    %4488 = vadd.xlane.f32.xlu0 %v4487
    %v4489 = vpop.xlane.xlu0 %4488
    %v4490 = vsel %vm2322, %v4454, 0.0
    %4491 = vadd.xlane.f32.xlu0 %v4490
    %v4492 = vpop.xlane.xlu0 %4491
    %v4493 = vsel %vm2322, %v4456, 0.0
    %4494 = vadd.xlane.f32.xlu0 %v4493
    %v4495 = vpop.xlane.xlu0 %4494
    %v4496 = vsel %vm2322, %v4458, 0.0
    %4497 = vadd.xlane.f32.xlu0 %v4496
    %v4498 = vpop.xlane.xlu0 %4497
    %v4499 = vsel %vm2322, %v4460, 0.0
    %4500 = vadd.xlane.f32.xlu0 %v4499
    %v4501 = vpop.xlane.xlu0 %4500
    %v4502 = vsel %vm2322, %v4462, 0.0
    %4503 = vadd.xlane.f32.xlu0 %v4502
    %v4504 = vpop.xlane.xlu0 %4503
    %v4505 = vsel %vm2322, %v4464, 0.0
    %4506 = vadd.xlane.f32.xlu0 %v4505
    %v4507 = vpop.xlane.xlu0 %4506
    %v4508 = vsel %vm2322, %v4466, 0.0
    %4509 = vadd.xlane.f32.xlu0 %v4508
    %v4510 = vpop.xlane.xlu0 %4509
    %v4511 = vsel %vm2322, %v4468, 0.0
    %4512 = vadd.xlane.f32.xlu0 %v4511
    %v4513 = vpop.xlane.xlu0 %4512
    %v4514 = vsel %vm2322, %v4470, 0.0
    %4515 = vadd.xlane.f32.xlu0 %v4514
    %v4516 = vpop.xlane.xlu0 %4515
    %v4517 = vsel %vm2322, %v4472, 0.0
    %4518 = vadd.xlane.f32.xlu0 %v4517
    %v4519 = vpop.xlane.xlu0 %4518
    %v4520 = vsel %vm2322, %v4474, 0.0
    %4521 = vadd.xlane.f32.xlu0 %v4520
    %v4522 = vpop.xlane.xlu0 %4521
    %v4523 = vrcp.pop %v4477
    %v4524 = vmul.f32 %v4444, %v4523
    %v4525 = vrcp.pop %v4480
    %v4526 = vmul.f32 %v4446, %v4525
    %v4527 = vrcp.pop %v4483
    %v4528 = vmul.f32 %v4448, %v4527
    %v4529 = vrcp.pop %v4486
    %v4530 = vmul.f32 %v4450, %v4529
    %v4531 = vrcp.pop %v4489
    %v4532 = vmul.f32 %v4452, %v4531
    %v4533 = vrcp.pop %v4492
    %v4534 = vmul.f32 %v4454, %v4533
    %v4535 = vrcp.pop %v4495
    %v4536 = vmul.f32 %v4456, %v4535
    %v4537 = vrcp.pop %v4498
    %v4538 = vmul.f32 %v4458, %v4537
    %v4539 = vrcp.pop %v4501
    %v4540 = vmul.f32 %v4460, %v4539
    %v4541 = vrcp.pop %v4504
    %v4542 = vmul.f32 %v4462, %v4541
    %v4543 = vrcp.pop %v4507
    %v4544 = vmul.f32 %v4464, %v4543
    %v4545 = vrcp.pop %v4510
    %v4546 = vmul.f32 %v4466, %v4545
    %v4547 = vrcp.pop %v4513
    %v4548 = vmul.f32 %v4468, %v4547
    %v4549 = vrcp.pop %v4516
    %v4550 = vmul.f32 %v4470, %v4549
    %v4551 = vrcp.pop %v4519
    %v4552 = vmul.f32 %v4472, %v4551
    %v4553 = vrcp.pop %v4522
    %v4554 = vmul.f32 %v4474, %v4553
    %4556 = vset.pattern.permute.xlu0 0
    %4557 = vperm.xlu0 %4556, %v4524
    %v4558 = vpop.permute.xlu0 %4557
    %4561 = vset.pattern.permute.xlu0 0
    %4562 = vperm.xlu0 %4561, %v4526
    %v4563 = vpop.permute.xlu0 %4562
    %4566 = vset.pattern.permute.xlu0 0
    %4567 = vperm.xlu0 %4566, %v4528
    %v4568 = vpop.permute.xlu0 %4567
    %4571 = vset.pattern.permute.xlu0 0
    %4572 = vperm.xlu0 %4571, %v4530
    %v4573 = vpop.permute.xlu0 %4572
    %4576 = vset.pattern.permute.xlu0 0
    %4577 = vperm.xlu0 %4576, %v4532
    %v4578 = vpop.permute.xlu0 %4577
    %4581 = vset.pattern.permute.xlu0 0
    %4582 = vperm.xlu0 %4581, %v4534
    %v4583 = vpop.permute.xlu0 %4582
    %4586 = vset.pattern.permute.xlu0 0
    %4587 = vperm.xlu0 %4586, %v4536
    %v4588 = vpop.permute.xlu0 %4587
    %4591 = vset.pattern.permute.xlu0 0
    %4592 = vperm.xlu0 %4591, %v4538
    %v4593 = vpop.permute.xlu0 %4592
    %4596 = vset.pattern.permute.xlu0 0
    %4597 = vperm.xlu0 %4596, %v4540
    %v4598 = vpop.permute.xlu0 %4597
    %4601 = vset.pattern.permute.xlu0 0
    %4602 = vperm.xlu0 %4601, %v4542
    %v4603 = vpop.permute.xlu0 %4602
    %4606 = vset.pattern.permute.xlu0 0
    %4607 = vperm.xlu0 %4606, %v4544
    %v4608 = vpop.permute.xlu0 %4607
    %4611 = vset.pattern.permute.xlu0 0
    %4612 = vperm.xlu0 %4611, %v4546
    %v4613 = vpop.permute.xlu0 %4612
    %4616 = vset.pattern.permute.xlu0 0
    %4617 = vperm.xlu0 %4616, %v4548
    %v4618 = vpop.permute.xlu0 %4617
    %4621 = vset.pattern.permute.xlu0 0
    %4622 = vperm.xlu0 %4621, %v4550
    %v4623 = vpop.permute.xlu0 %4622
    %4626 = vset.pattern.permute.xlu0 0
    %4627 = vperm.xlu0 %4626, %v4552
    %v4628 = vpop.permute.xlu0 %4627
    %4631 = vset.pattern.permute.xlu0 0
    %4632 = vperm.xlu0 %4631, %v4554
    %v4633 = vpop.permute.xlu0 %4632
    %4635 = vset.pattern.permute.xlu0 1
    %4636 = vperm.xlu0 %4635, %v4524
    %v4637 = vpop.permute.xlu0 %4636
    %4639 = vset.pattern.permute.xlu0 1
    %4640 = vperm.xlu0 %4639, %v4526
    %v4641 = vpop.permute.xlu0 %4640
    %4643 = vset.pattern.permute.xlu0 1
    %4644 = vperm.xlu0 %4643, %v4528
    %v4645 = vpop.permute.xlu0 %4644
    %4647 = vset.pattern.permute.xlu0 1
    %4648 = vperm.xlu0 %4647, %v4530
    %v4649 = vpop.permute.xlu0 %4648
    %4651 = vset.pattern.permute.xlu0 1
    %4652 = vperm.xlu0 %4651, %v4532
    %v4653 = vpop.permute.xlu0 %4652
    %4655 = vset.pattern.permute.xlu0 1
    %4656 = vperm.xlu0 %4655, %v4534
    %v4657 = vpop.permute.xlu0 %4656
    %4659 = vset.pattern.permute.xlu0 1
    %4660 = vperm.xlu0 %4659, %v4536
    %v4661 = vpop.permute.xlu0 %4660
    %4663 = vset.pattern.permute.xlu0 1
    %4664 = vperm.xlu0 %4663, %v4538
    %v4665 = vpop.permute.xlu0 %4664
    %4667 = vset.pattern.permute.xlu0 1
    %4668 = vperm.xlu0 %4667, %v4540
    %v4669 = vpop.permute.xlu0 %4668
    %4671 = vset.pattern.permute.xlu0 1
    %4672 = vperm.xlu0 %4671, %v4542
    %v4673 = vpop.permute.xlu0 %4672
    %4675 = vset.pattern.permute.xlu0 1
    %4676 = vperm.xlu0 %4675, %v4544
    %v4677 = vpop.permute.xlu0 %4676
    %4679 = vset.pattern.permute.xlu0 1
    %4680 = vperm.xlu0 %4679, %v4546
    %v4681 = vpop.permute.xlu0 %4680
    %4683 = vset.pattern.permute.xlu0 1
    %4684 = vperm.xlu0 %4683, %v4548
    %v4685 = vpop.permute.xlu0 %4684
    %4687 = vset.pattern.permute.xlu0 1
    %4688 = vperm.xlu0 %4687, %v4550
    %v4689 = vpop.permute.xlu0 %4688
    %4691 = vset.pattern.permute.xlu0 1
    %4692 = vperm.xlu0 %4691, %v4552
    %v4693 = vpop.permute.xlu0 %4692
    %4695 = vset.pattern.permute.xlu0 1
    %4696 = vperm.xlu0 %4695, %v4554
    %v4697 = vpop.permute.xlu0 %4696
    %4699 = vset.pattern.permute.xlu0 2
    %4700 = vperm.xlu0 %4699, %v4524
    %v4701 = vpop.permute.xlu0 %4700
    %4703 = vset.pattern.permute.xlu0 2
    %4704 = vperm.xlu0 %4703, %v4526
    %v4705 = vpop.permute.xlu0 %4704
    %4707 = vset.pattern.permute.xlu0 2
    %4708 = vperm.xlu0 %4707, %v4528
    %v4709 = vpop.permute.xlu0 %4708
    %4711 = vset.pattern.permute.xlu0 2
    %4712 = vperm.xlu0 %4711, %v4530
    %v4713 = vpop.permute.xlu0 %4712
    %4715 = vset.pattern.permute.xlu0 2
    %4716 = vperm.xlu0 %4715, %v4532
    %v4717 = vpop.permute.xlu0 %4716
    %4719 = vset.pattern.permute.xlu0 2
    %4720 = vperm.xlu0 %4719, %v4534
    %v4721 = vpop.permute.xlu0 %4720
    %4723 = vset.pattern.permute.xlu0 2
    %4724 = vperm.xlu0 %4723, %v4536
    %v4725 = vpop.permute.xlu0 %4724
    %4727 = vset.pattern.permute.xlu0 2
    %4728 = vperm.xlu0 %4727, %v4538
    %v4729 = vpop.permute.xlu0 %4728
    %4731 = vset.pattern.permute.xlu0 2
    %4732 = vperm.xlu0 %4731, %v4540
    %v4733 = vpop.permute.xlu0 %4732
    %4735 = vset.pattern.permute.xlu0 2
    %4736 = vperm.xlu0 %4735, %v4542
    %v4737 = vpop.permute.xlu0 %4736
    %4739 = vset.pattern.permute.xlu0 2
    %4740 = vperm.xlu0 %4739, %v4544
    %v4741 = vpop.permute.xlu0 %4740
    %4743 = vset.pattern.permute.xlu0 2
    %4744 = vperm.xlu0 %4743, %v4546
    %v4745 = vpop.permute.xlu0 %4744
    %4747 = vset.pattern.permute.xlu0 2
    %4748 = vperm.xlu0 %4747, %v4548
    %v4749 = vpop.permute.xlu0 %4748
    %4751 = vset.pattern.permute.xlu0 2
    %4752 = vperm.xlu0 %4751, %v4550
    %v4753 = vpop.permute.xlu0 %4752
    %4755 = vset.pattern.permute.xlu0 2
    %4756 = vperm.xlu0 %4755, %v4552
    %v4757 = vpop.permute.xlu0 %4756
    %4759 = vset.pattern.permute.xlu0 2
    %4760 = vperm.xlu0 %4759, %v4554
    %v4761 = vpop.permute.xlu0 %4760
    %4763 = vset.pattern.permute.xlu0 3
    %4764 = vperm.xlu0 %4763, %v4524
    %v4765 = vpop.permute.xlu0 %4764
    %4767 = vset.pattern.permute.xlu0 3
    %4768 = vperm.xlu0 %4767, %v4526
    %v4769 = vpop.permute.xlu0 %4768
    %4771 = vset.pattern.permute.xlu0 3
    %4772 = vperm.xlu0 %4771, %v4528
    %v4773 = vpop.permute.xlu0 %4772
    %4775 = vset.pattern.permute.xlu0 3
    %4776 = vperm.xlu0 %4775, %v4530
    %v4777 = vpop.permute.xlu0 %4776
    %4779 = vset.pattern.permute.xlu0 3
    %4780 = vperm.xlu0 %4779, %v4532
    %v4781 = vpop.permute.xlu0 %4780
    %4783 = vset.pattern.permute.xlu0 3
    %4784 = vperm.xlu0 %4783, %v4534
    %v4785 = vpop.permute.xlu0 %4784
    %4787 = vset.pattern.permute.xlu0 3
    %4788 = vperm.xlu0 %4787, %v4536
    %v4789 = vpop.permute.xlu0 %4788
    %4791 = vset.pattern.permute.xlu0 3
    %4792 = vperm.xlu0 %4791, %v4538
    %v4793 = vpop.permute.xlu0 %4792
    %4795 = vset.pattern.permute.xlu0 3
    %4796 = vperm.xlu0 %4795, %v4540
    %v4797 = vpop.permute.xlu0 %4796
    %4799 = vset.pattern.permute.xlu0 3
    %4800 = vperm.xlu0 %4799, %v4542
    %v4801 = vpop.permute.xlu0 %4800
    %4803 = vset.pattern.permute.xlu0 3
    %4804 = vperm.xlu0 %4803, %v4544
    %v4805 = vpop.permute.xlu0 %4804
    %4807 = vset.pattern.permute.xlu0 3
    %4808 = vperm.xlu0 %4807, %v4546
    %v4809 = vpop.permute.xlu0 %4808
    %4811 = vset.pattern.permute.xlu0 3
    %4812 = vperm.xlu0 %4811, %v4548
    %v4813 = vpop.permute.xlu0 %4812
    %4815 = vset.pattern.permute.xlu0 3
    %4816 = vperm.xlu0 %4815, %v4550
    %v4817 = vpop.permute.xlu0 %4816
    %4819 = vset.pattern.permute.xlu0 3
    %4820 = vperm.xlu0 %4819, %v4552
    %v4821 = vpop.permute.xlu0 %4820
    %4823 = vset.pattern.permute.xlu0 3
    %4824 = vperm.xlu0 %4823, %v4554
    %v4825 = vpop.permute.xlu0 %4824
    %v4827 = vsel %vm1417, %v4558, %v4637
    %v4828 = vsel %vm1417, %v4563, %v4641
    %v4829 = vsel %vm1417, %v4568, %v4645
    %v4830 = vsel %vm1417, %v4573, %v4649
    %v4831 = vsel %vm1417, %v4578, %v4653
    %v4832 = vsel %vm1417, %v4583, %v4657
    %v4833 = vsel %vm1417, %v4588, %v4661
    %v4834 = vsel %vm1417, %v4593, %v4665
    %v4835 = vsel %vm1417, %v4598, %v4669
    %v4836 = vsel %vm1417, %v4603, %v4673
    %v4837 = vsel %vm1417, %v4608, %v4677
    %v4838 = vsel %vm1417, %v4613, %v4681
    %v4839 = vsel %vm1417, %v4618, %v4685
    %v4840 = vsel %vm1417, %v4623, %v4689
    %v4841 = vsel %vm1417, %v4628, %v4693
    %v4842 = vsel %vm1417, %v4633, %v4697
    %v4843 = vsel %vm1420, %v4827, %v4701
    %v4844 = vsel %vm1420, %v4828, %v4705
    %v4845 = vsel %vm1420, %v4829, %v4709
    %v4846 = vsel %vm1420, %v4830, %v4713
    %v4847 = vsel %vm1420, %v4831, %v4717
    %v4848 = vsel %vm1420, %v4832, %v4721
    %v4849 = vsel %vm1420, %v4833, %v4725
    %v4850 = vsel %vm1420, %v4834, %v4729
    %v4851 = vsel %vm1420, %v4835, %v4733
    %v4852 = vsel %vm1420, %v4836, %v4737
    %v4853 = vsel %vm1420, %v4837, %v4741
    %v4854 = vsel %vm1420, %v4838, %v4745
    %v4855 = vsel %vm1420, %v4839, %v4749
    %v4856 = vsel %vm1420, %v4840, %v4753
    %v4857 = vsel %vm1420, %v4841, %v4757
    %v4858 = vsel %vm1420, %v4842, %v4761
    %v4859 = vsel %vm1423, %v4843, %v4765
    %v4860 = vsel %vm1423, %v4844, %v4769
    %v4861 = vsel %vm1423, %v4845, %v4773
    %v4862 = vsel %vm1423, %v4846, %v4777
    %v4863 = vsel %vm1423, %v4847, %v4781
    %v4864 = vsel %vm1423, %v4848, %v4785
    %v4865 = vsel %vm1423, %v4849, %v4789
    %v4866 = vsel %vm1423, %v4850, %v4793
    %v4867 = vsel %vm1423, %v4851, %v4797
    %v4868 = vsel %vm1423, %v4852, %v4801
    %v4869 = vsel %vm1423, %v4853, %v4805
    %v4870 = vsel %vm1423, %v4854, %v4809
    %v4871 = vsel %vm1423, %v4855, %v4813
    %v4872 = vsel %vm1423, %v4856, %v4817
    %v4873 = vsel %vm1423, %v4857, %v4821
    %v4874 = vsel %vm1423, %v4858, %v4825
    %v4875 = vmul.f32 %v4859, %v1342
    %v4876 = vmul.f32 %v4860, %v1343
    %v4877 = vmul.f32 %v4861, %v1344
    %v4878 = vmul.f32 %v4862, %v1345
    %v4879 = vmul.f32 %v4863, %v1346
    %v4880 = vmul.f32 %v4864, %v1347
    %v4881 = vmul.f32 %v4865, %v1348
    %v4882 = vmul.f32 %v4866, %v1349
    %v4883 = vmul.f32 %v4867, %v1350
    %v4884 = vmul.f32 %v4868, %v1351
    %v4885 = vmul.f32 %v4869, %v1352
    %v4886 = vmul.f32 %v4870, %v1353
    %v4887 = vmul.f32 %v4871, %v1354
    %v4888 = vmul.f32 %v4872, %v1355
    %v4889 = vmul.f32 %v4873, %v1356
    %v4890 = vmul.f32 %v4874, %v1357
    %v4891 = vsel %vm110, %v4875, 0.0
    %v4892 = vsel %vm110, %v4876, 0.0
    %v4893 = vadd.f32 %v4891, %v4892
    %v4894 = vsel %vm110, %v4877, 0.0
    %v4895 = vadd.f32 %v4893, %v4894
    %v4896 = vsel %vm110, %v4878, 0.0
    %v4897 = vadd.f32 %v4895, %v4896
    %v4898 = vsel %vm110, %v4879, 0.0
    %v4899 = vadd.f32 %v4897, %v4898
    %v4900 = vsel %vm110, %v4880, 0.0
    %v4901 = vadd.f32 %v4899, %v4900
    %v4902 = vsel %vm110, %v4881, 0.0
    %v4903 = vadd.f32 %v4901, %v4902
    %v4904 = vsel %vm110, %v4882, 0.0
    %v4905 = vadd.f32 %v4903, %v4904
    %v4906 = vsel %vm110, %v4883, 0.0
    %v4907 = vadd.f32 %v4905, %v4906
    %v4908 = vsel %vm110, %v4884, 0.0
    %v4909 = vadd.f32 %v4907, %v4908
    %v4910 = vsel %vm110, %v4885, 0.0
    %v4911 = vadd.f32 %v4909, %v4910
    %v4912 = vsel %vm110, %v4886, 0.0
    %v4913 = vadd.f32 %v4911, %v4912
    %v4914 = vsel %vm110, %v4887, 0.0
    %v4915 = vadd.f32 %v4913, %v4914
    %v4916 = vsel %vm110, %v4888, 0.0
    %v4917 = vadd.f32 %v4915, %v4916
    %v4918 = vsel %vm110, %v4889, 0.0
    %v4919 = vadd.f32 %v4917, %v4918
    %v4920 = vsel %vm110, %v4890, 0.0
    %v4921 = vadd.f32 %v4919, %v4920
    %v4922 = vmul.f32 %v4921, %v4921
    %v4923 = vsel %vm1654, %v4922, 0.0
    %4924 = vadd.xlane.f32.xlu0 %v4923
    %v4925 = vpop.xlane.xlu0 %4924
    %4927 = vrot.lane.b32.xlu0 %v4922, 112
    %v4928 = vpop.permute.xlu0 %4927
    %v4930 = vsel %vm1654, %v4928, 0.0
    %4931 = vadd.xlane.f32.xlu0 %v4930
    %v4932 = vpop.xlane.xlu0 %4931
    %4933 = vrot.lane.b32.xlu0 %v4922, 96
    %v4934 = vpop.permute.xlu0 %4933
    %v4936 = vsel %vm1654, %v4934, 0.0
    %4937 = vadd.xlane.f32.xlu0 %v4936
    %v4938 = vpop.xlane.xlu0 %4937
    %4939 = vrot.lane.b32.xlu0 %v4922, 80
    %v4940 = vpop.permute.xlu0 %4939
    %v4942 = vsel %vm1654, %v4940, 0.0
    %4943 = vadd.xlane.f32.xlu0 %v4942
    %v4944 = vpop.xlane.xlu0 %4943
    %v4945 = vsel %vm1677, %v4925, %v4932
    %v4946 = vsel %vm1679, %v4945, %v4938
    %v4947 = vsel %vm1681, %v4946, %v4944
    %v4948 = vadd.f32 %v4947, 1e-09
    %v4949 = vrsqrt.pop %v4948
    %v4950 = vmul.f32 %v4947, %v4949
    %v4951 = vadd.f32 %v4947, 1.0
    %v4952 = vrcp.pop %v4951
    %v4953 = vmul.f32 %v4950, %v4952
    %4955 = vset.pattern.permute.xlu0 0
    %4956 = vperm.xlu0 %4955, %v4953
    %v4957 = vpop.permute.xlu0 %4956
    %4959 = vset.pattern.permute.xlu0 1
    %4960 = vperm.xlu0 %4959, %v4953
    %v4961 = vpop.permute.xlu0 %4960
    %4963 = vset.pattern.permute.xlu0 2
    %4964 = vperm.xlu0 %4963, %v4953
    %v4965 = vpop.permute.xlu0 %4964
    %4967 = vset.pattern.permute.xlu0 3
    %4968 = vperm.xlu0 %4967, %v4953
    %v4969 = vpop.permute.xlu0 %4968
    %v4971 = vsel %vm1417, %v4957, %v4961
    %v4972 = vsel %vm1420, %v4971, %v4965
    %v4973 = vsel %vm1423, %v4972, %v4969
    %v4974 = vmul.f32 %v4921, %v4973
    %4975 = vst.msk [vmem:[#allocation6] sm:$0x3] %vm110, %v4974
    // Predicated region
    $region18: #{tpu_custom_call.1} parent=1 // pred_check
      _
    $region19: #{tpu_custom_call.1} parent=1 // pred_check_branch
      %4977 = sbr.rel (0) target = $region21
    $region20: #{tpu_custom_call.1} parent=1 // pred_region
      %s4979 = ssub.s32 32, 32
      %4980 = vsyncadd [#allocation5], %s4979
      %s4982 = sshll.u32 [#allocation6], 4
      %s4983 = int_to_ptr.vmem [resolvable:$true] %s4982
      %4985 = dma.vmem_to_hbm [thread:$0]  %s4983, 32, %s3, [#allocation5]
    $region21: #{tpu_custom_call.1} parent=1 // pred_fallthru
      _
    // Predicated region
    $region22: #{tpu_custom_call.1} parent=1 // pred_check
      _
    $region23: #{tpu_custom_call.1} parent=1 // pred_check_branch
      %4987 = sbr.rel (0) target = $region25
    $region24: #{tpu_custom_call.1} parent=1 // pred_region
      %4988 = dma.done [#allocation5], 32
    $region25: #{tpu_custom_call.1} parent=1 // pred_fallthru
      _
    %4989 = vsyncpa [#allocation4], 1
    %4990 = vsyncpa [#allocation5], 1

</llo_original>
